<compile_context>
chip_gen: v5e
topology: v5e:2x2
jax: 0.10.0
libtpu: 0.0.40
codegen_flags: <defaults>
</compile_context>

<pallas_src>
import functools

import jax
import jax.numpy as jnp
from jax.experimental import pallas as pl
from jax.experimental.pallas import tpu as pltpu

LANE = 128
SUBLANE = 8


def _round_up(x, m):
    return (x + m - 1) // m * m


def _make_lstm_kernel(num_layers, seq_len, block_b, hidden_pad, out_dtype,
                      unroll):
    Hp = hidden_pad
    T = seq_len
    Bb = block_b
    L = num_layers

    def kernel(*refs):
        # refs: x, (wih, whh, b) * L, fc_w, fc_b, out, hseq, gx
        x_ref = refs[0]                       # (1, T*Bb, D) time-major slab
        layer_refs = refs[1:1 + 3 * L]
        fcw_ref = refs[1 + 3 * L]             # (Hp, Op)
        fcb_ref = refs[2 + 3 * L]             # (1, Op)
        out_ref = refs[3 + 3 * L]             # (Bb, Op)
        hseq_ref = refs[4 + 3 * L]            # (T*Bb, Hp) per-layer h sequence
        gx_ref = refs[5 + 3 * L]              # (T*Bb, 4*Hp) gate pre-acts

        h_last = jnp.zeros((Bb, Hp), jnp.float32)

        for l in range(L):
            wih_ref = layer_refs[3 * l]
            whh_ref = layer_refs[3 * l + 1]
            b_ref = layer_refs[3 * l + 2]

            # Batched input projection across ALL timesteps in one dense MXU
            # matmul (M = T*Bb), bias folded in.  Only the tiny recurrent
            # h @ W_hh stays inside the time loop.
            src = x_ref[0] if l == 0 else hseq_ref[...]
            gx_ref[...] = (
                jnp.dot(src.astype(wih_ref.dtype), wih_ref[...],
                        preferred_element_type=jnp.float32)
                + b_ref[...]
            )

            write_hseq = l < L - 1   # last layer's full sequence is unused

            def step(t, carry, _whh_ref=whh_ref, _write=write_hseq):
                h, c = carry
                row = pl.multiple_of(t * Bb, Bb)
                gates = gx_ref[pl.ds(row, Bb), :] + jnp.dot(
                    h.astype(_whh_ref.dtype), _whh_ref[...],
                    preferred_element_type=jnp.float32)
                # Gate order is [i, f, o, g]; Hp is a 128-lane multiple so all
                # slices below are lane-aligned (plain VPU ops, no realign).
                sig = jax.nn.sigmoid(gates[:, :3 * Hp])
                g = jnp.tanh(gates[:, 3 * Hp:])
                c_new = sig[:, Hp:2 * Hp] * c + sig[:, :Hp] * g
                h_new = sig[:, 2 * Hp:3 * Hp] * jnp.tanh(c_new)
                if _write:
                    hseq_ref[pl.ds(row, Bb), :] = h_new
                return h_new, c_new

            h0 = jnp.zeros((Bb, Hp), jnp.float32)
            c0 = jnp.zeros((Bb, Hp), jnp.float32)
            h_last, _ = jax.lax.fori_loop(0, T, step, (h0, c0), unroll=unroll)

        # Final Linear on the last timestep of the top layer (lane-dense Op).
        y = jnp.dot(h_last.astype(fcw_ref.dtype), fcw_ref[...],
                    preferred_element_type=jnp.float32) + fcb_ref[...]
        out_ref[...] = y.astype(out_dtype)

    return kernel


def prepare_params(params, *, input_dim, hidden_dim, output_dim, num_layers,
                   matmul_dtype=jnp.float32):
    """One-time parameter preparation (do NOT redo this per forward call).

    - Reorders gate columns from PyTorch's [i, f, g, o] to [i, f, o, g].
    - Zero-pads each gate block from H to Hp (128-lane multiple) columns and
      pads recurrent/input rows of W_hh / W_ih (l>0) / fc_w to Hp, and fc
      output columns to Op.  Zero padding keeps the recurrence exact.
    - Optionally stores the matmul weights in bf16 (v6e/v7x MXU-native);
      biases stay f32 and all elementwise math stays f32 (v5e-safe).
    """
    H = hidden_dim
    Hp = _round_up(H, LANE)
    Op = _round_up(output_dim, LANE)

    def permute_pad_gates(w):
        # w: (rows, 4H) in [i, f, g, o]; -> (rows, 4Hp) in [i, f, o, g].
        blocks = [w[:, 0 * H:1 * H], w[:, 1 * H:2 * H],
                  w[:, 3 * H:4 * H], w[:, 2 * H:3 * H]]
        blocks = [jnp.pad(b, ((0, 0), (0, Hp - H))) for b in blocks]
        return jnp.concatenate(blocks, axis=1)

    prepared = []
    for l in range(num_layers):
        wih = permute_pad_gates(params[f"wih_l{l}"].astype(jnp.float32))
        whh = permute_pad_gates(params[f"whh_l{l}"].astype(jnp.float32))
        b = permute_pad_gates(params[f"b_l{l}"].astype(jnp.float32))
        if l > 0:
            wih = jnp.pad(wih, ((0, Hp - H), (0, 0)))   # zero rows for padded h
        whh = jnp.pad(whh, ((0, Hp - H), (0, 0)))
        prepared += [wih.astype(matmul_dtype), whh.astype(matmul_dtype), b]

    fc_w = jnp.pad(params["fc_w"].astype(jnp.float32),
                   ((0, Hp - H), (0, Op - output_dim)))
    fc_b = jnp.pad(params["fc_b"].astype(jnp.float32),
                   ((0, 0), (0, Op - output_dim)))
    prepared += [fc_w.astype(matmul_dtype), fc_b]

    meta = dict(input_dim=input_dim, hidden_dim=hidden_dim, hidden_pad=Hp,
                output_dim=output_dim, output_pad=Op, num_layers=num_layers,
                matmul_dtype=matmul_dtype)
    return prepared, meta


def lstm_model_forward(x, prepared, *, input_dim, hidden_dim, hidden_pad,
                       output_dim, output_pad, num_layers,
                       matmul_dtype=jnp.float32, block_b=None):
    """Stacked LSTM + FC forward as a single batch-parallel Pallas kernel."""
    batch, seq_len, in_dim = x.shape
    assert in_dim == input_dim
    Hp, Op, L, T = hidden_pad, output_pad, num_layers, seq_len

    # ---- block_b selection (batch rows per grid step) --------------------
    b8 = _round_up(batch, SUBLANE)
    if block_b is None:
        block_b = min(128, b8)
        # Prefer >= 2 grid steps when batch allows, so ("parallel",) shards
        # the batch across v7x's two TensorCores (no-op on v5e/v6e).
        if b8 // block_b < 2 and b8 >= 2 * SUBLANE:
            block_b = _round_up(b8 // 2, SUBLANE)
    block_b = _round_up(block_b, SUBLANE)
    Bb = block_b
    b_pad = _round_up(batch, Bb)
    nb = b_pad // Bb

    # ---- wrapper-side layout: time-major flat slab per batch block -------
    # Row (t*Bb + j) of block b holds x[b*Bb + j, t, :].  The kernel consumes
    # it directly in the layer-0 projection: no in-kernel staging copies.
    x_tm = jnp.transpose(x, (1, 0, 2)).astype(jnp.float32)
    if b_pad != batch:
        x_tm = jnp.pad(x_tm, ((0, 0), (0, b_pad - batch), (0, 0)))
    x_slab = x_tm.reshape(T, nb, Bb, input_dim).transpose(1, 0, 2, 3)
    x_slab = x_slab.reshape(nb, T * Bb, input_dim)

    kernel = _make_lstm_kernel(L, T, Bb, Hp, jnp.float32, unroll=min(T, 8))

    in_specs = [pl.BlockSpec((1, T * Bb, input_dim), lambda b: (b, 0, 0))]
    for l in range(L):
        w_in = input_dim if l == 0 else Hp
        in_specs += [pl.BlockSpec((w_in, 4 * Hp), lambda b: (0, 0)),
                     pl.BlockSpec((Hp, 4 * Hp), lambda b: (0, 0)),
                     pl.BlockSpec((1, 4 * Hp), lambda b: (0, 0))]
    in_specs += [pl.BlockSpec((Hp, Op), lambda b: (0, 0)),
                 pl.BlockSpec((1, Op), lambda b: (0, 0))]
    # NOTE: for very large H the constant-index weight specs could be
    # single-buffered (pipeline_mode=pl.Buffered(1)) to free VMEM on v7x.

    # ---- VMEM budget: raise the scoped limit only when needed ------------
    f32 = 4
    w_item = jnp.dtype(matmul_dtype).itemsize
    w_bytes = 0
    for l in range(L):
        w_in = input_dim if l == 0 else Hp
        w_bytes += (w_in * 4 * Hp + Hp * 4 * Hp) * w_item + 4 * Hp * f32
    w_bytes += Hp * Op * w_item + Op * f32
    vmem_est = (2 * T * Bb * input_dim * f32     # double-buffered x block
                + 2 * w_bytes                    # double-buffered weights
                + 2 * Bb * Op * f32              # double-buffered out block
                + T * Bb * (Hp + 4 * Hp) * f32)  # hseq + gx scratch
    compiler_kwargs = {}
    if vmem_est > 24 * 2**20:
        compiler_kwargs["vmem_limit_bytes"] = int(
            min(100 * 2**20, 1.5 * vmem_est))

    out = pl.pallas_call(
        kernel,
        out_shape=jax.ShapeDtypeStruct((b_pad, Op), jnp.float32),
        grid=(nb,),
        in_specs=in_specs,
        out_specs=pl.BlockSpec((Bb, Op), lambda b: (b, 0)),
        scratch_shapes=[
            pltpu.VMEM((T * Bb, Hp), jnp.float32),       # per-layer h sequence
            pltpu.VMEM((T * Bb, 4 * Hp), jnp.float32),   # batched gate pre-acts
        ],
        compiler_params=pltpu.CompilerParams(
            dimension_semantics=("parallel",), **compiler_kwargs),
    )(x_slab, *prepared)
    return out[:batch, :output_dim]


def init_params(key, input_dim, hidden_dim, output_dim, num_layers):
    """Deterministic init mimicking PyTorch's uniform(-1/sqrt(H), 1/sqrt(H))."""
    params = {}
    k = 1.0 / jnp.sqrt(hidden_dim)
    for l in range(num_layers):
        in_dim = input_dim if l == 0 else hidden_dim
        key, k1, k2, k3, k4 = jax.random.split(key, 5)
        # PyTorch stores W_ih as (4H, in) — we keep the transpose (in, 4H).
        w_ih = jax.random.uniform(k1, (in_dim, 4 * hidden_dim), jnp.float32, -k, k)
        w_hh = jax.random.uniform(k2, (hidden_dim, 4 * hidden_dim), jnp.float32, -k, k)
        b_ih = jax.random.uniform(k3, (4 * hidden_dim,), jnp.float32, -k, k)
        b_hh = jax.random.uniform(k4, (4 * hidden_dim,), jnp.float32, -k, k)
        params[f"wih_l{l}"] = w_ih
        params[f"whh_l{l}"] = w_hh
        params[f"b_l{l}"] = (b_ih + b_hh).reshape(1, 4 * hidden_dim)
    key, k1, k2 = jax.random.split(key, 3)
    kf = 1.0 / jnp.sqrt(hidden_dim)
    params["fc_w"] = jax.random.uniform(k1, (hidden_dim, output_dim), jnp.float32, -kf, kf)
    params["fc_b"] = jax.random.uniform(k2, (1, output_dim), jnp.float32, -kf, kf)
    return params


def lstm_model_reference(x, params, *, num_layers, hidden_dim, output_dim):
    """Pure-JAX reference (PyTorch gate order, un-permuted / un-padded params)."""
    batch, seq_len, _ = x.shape
    H = hidden_dim
    h = [jnp.zeros((batch, H), jnp.float32) for _ in range(num_layers)]
    c = [jnp.zeros((batch, H), jnp.float32) for _ in range(num_layers)]
    inp = None
    for t in range(seq_len):
        inp = x[:, t, :]
        for l in range(num_layers):
            gates = inp @ params[f"wih_l{l}"] + h[l] @ params[f"whh_l{l}"] + params[f"b_l{l}"]
            i_g = jax.nn.sigmoid(gates[:, 0 * H:1 * H])
            f_g = jax.nn.sigmoid(gates[:, 1 * H:2 * H])
            g_g = jnp.tanh(gates[:, 2 * H:3 * H])
            o_g = jax.nn.sigmoid(gates[:, 3 * H:4 * H])
            c[l] = f_g * c[l] + i_g * g_g
            h[l] = o_g * jnp.tanh(c[l])
            inp = h[l]
    return inp @ params["fc_w"] + params["fc_b"]


if __name__ == "__main__":
    # Small shapes consistent with the module's forward.
    batch, seq_len = 2, 8
    input_dim, hidden_dim, output_dim, num_layers = 16, 32, 8, 2

    key = jax.random.PRNGKey(0)
    key, xk = jax.random.split(key)
    x = jax.random.normal(xk, (batch, seq_len, input_dim), jnp.float32)

    params = init_params(key, input_dim, hidden_dim, output_dim, num_layers)

    # One-time param prep (gate permutation + lane padding).  For v6e/v7x
    # throughput at large H, use matmul_dtype=jnp.bfloat16 here.
    prepared, meta = prepare_params(
        params, input_dim=input_dim, hidden_dim=hidden_dim,
        output_dim=output_dim, num_layers=num_layers,
        matmul_dtype=jnp.float32)

    fwd = jax.jit(functools.partial(lstm_model_forward, **meta))
    out = fwd(x, prepared)
    out = jax.block_until_ready(out)

    ref = lstm_model_reference(
        x, params, num_layers=num_layers, hidden_dim=hidden_dim,
        output_dim=output_dim)
    assert out.shape == (batch, output_dim)
    assert jnp.allclose(out, ref, atol=2e-5, rtol=2e-5)
    print("KERNEL_OK")
</pallas_src>

<mosaic_0001>
module attributes {stable_mosaic.version = 11 : i64} {
  func.func @kernel(%arg0: i32, %arg1: memref<1x64x16xf32, #tpu.memory_space<vmem>>, %arg2: memref<16x512xf32, #tpu.memory_space<vmem>>, %arg3: memref<128x512xf32, #tpu.memory_space<vmem>>, %arg4: memref<1x512xf32, #tpu.memory_space<vmem>>, %arg5: memref<128x512xf32, #tpu.memory_space<vmem>>, %arg6: memref<128x512xf32, #tpu.memory_space<vmem>>, %arg7: memref<1x512xf32, #tpu.memory_space<vmem>>, %arg8: memref<128x128xf32, #tpu.memory_space<vmem>>, %arg9: memref<1x128xf32, #tpu.memory_space<vmem>>, %arg10: memref<8x128xf32, #tpu.memory_space<vmem>>, %arg11: memref<64x128xf32, #tpu.memory_space<vmem>>, %arg12: memref<64x512xf32, #tpu.memory_space<vmem>>) attributes {dimension_semantics = [#tpu.dimension_semantics<parallel>], iteration_bounds = array<i64: 1>, scalar_prefetch = 0 : i64, scratch_operands = 2 : i64, tpu.core_type = #tpu.core_type<tc>, window_params = [{transform_indices = @transform_0, window_bounds = array<i64: 1, 64, 16>}, {pipeline_mode = #tpu.pipeline_mode<synchronous>, transform_indices = @transform_1, window_bounds = array<i64: 16, 512>}, {pipeline_mode = #tpu.pipeline_mode<synchronous>, transform_indices = @transform_2, window_bounds = array<i64: 128, 512>}, {pipeline_mode = #tpu.pipeline_mode<synchronous>, transform_indices = @transform_3, window_bounds = array<i64: 1, 512>}, {pipeline_mode = #tpu.pipeline_mode<synchronous>, transform_indices = @transform_4, window_bounds = array<i64: 128, 512>}, {pipeline_mode = #tpu.pipeline_mode<synchronous>, transform_indices = @transform_5, window_bounds = array<i64: 128, 512>}, {pipeline_mode = #tpu.pipeline_mode<synchronous>, transform_indices = @transform_6, window_bounds = array<i64: 1, 512>}, {pipeline_mode = #tpu.pipeline_mode<synchronous>, transform_indices = @transform_7, window_bounds = array<i64: 128, 128>}, {pipeline_mode = #tpu.pipeline_mode<synchronous>, transform_indices = @transform_8, window_bounds = array<i64: 1, 128>}, {transform_indices = @transform_9, window_bounds = array<i64: 8, 128>}]} {
    %c0 = arith.constant 0 : index
    %c0_0 = arith.constant 0 : index
    %c0_1 = arith.constant 0 : index
    %0 = vector.load %arg1[%c0, %c0_0, %c0_1] : memref<1x64x16xf32, #tpu.memory_space<vmem>>, vector<1x64x16xf32>
    %1 = vector.shape_cast %0 : vector<1x64x16xf32> to vector<64x16xf32>
    %c0_2 = arith.constant 0 : index
    %c0_3 = arith.constant 0 : index
    %2 = vector.load %arg2[%c0_2, %c0_3] : memref<16x512xf32, #tpu.memory_space<vmem>>, vector<16x512xf32>
    %cst = arith.constant dense<0.000000e+00> : vector<64x512xf32>
    %3 = tpu.matmul %1, %2, %cst {dimension_numbers = #tpu.dot_dimension_numbers<[1], [0], [0], [1], [0, 0, 1, 1], [], []>} : vector<64x16xf32>, vector<16x512xf32>, vector<64x512xf32> -> vector<64x512xf32>
    %c0_4 = arith.constant 0 : index
    %c0_5 = arith.constant 0 : index
    %4 = vector.load %arg4[%c0_4, %c0_5] : memref<1x512xf32, #tpu.memory_space<vmem>>, vector<1x512xf32>
    %5 = vector.broadcast %4 : vector<1x512xf32> to vector<64x512xf32>
    %6 = arith.addf %3, %5 : vector<64x512xf32>
    %c0_6 = arith.constant 0 : index
    %c0_7 = arith.constant 0 : index
    %7 = vector.load %arg12[%c0_6, %c0_7] : memref<64x512xf32, #tpu.memory_space<vmem>>, vector<64x512xf32>
    tpu.vector_store %arg12[%c0_6, %c0_7], %6 {strides = array<i32>} : memref<64x512xf32, #tpu.memory_space<vmem>>, vector<64x512xf32>,
    %cst_8 = arith.constant 0.000000e+00 : f32
    %8 = vector.broadcast %cst_8 : f32 to vector<8x128xf32>
    %cst_9 = arith.constant 0.000000e+00 : f32
    %9 = vector.broadcast %cst_9 : f32 to vector<8x128xf32>
    %c0_i32 = arith.constant 0 : i32
    %c8_i32 = arith.constant 8 : i32
    %10 = arith.muli %c0_i32, %c8_i32 : i32
    %11 = tpu.assume_multiple %10, 8 : i32
    %12 = arith.index_cast %11 : i32 to index
    %c0_10 = arith.constant 0 : index
    %13 = vector.load %arg12[%12, %c0_10] : memref<64x512xf32, #tpu.memory_space<vmem>>, vector<8x512xf32>
    %c0_11 = arith.constant 0 : index
    %c0_12 = arith.constant 0 : index
    %14 = vector.load %arg3[%c0_11, %c0_12] : memref<128x512xf32, #tpu.memory_space<vmem>>, vector<128x512xf32>
    %cst_13 = arith.constant dense<0.000000e+00> : vector<8x512xf32>
    %15 = tpu.matmul %8, %14, %cst_13 {dimension_numbers = #tpu.dot_dimension_numbers<[1], [0], [0], [1], [0, 0, 1, 1], [], []>} : vector<8x128xf32>, vector<128x512xf32>, vector<8x512xf32> -> vector<8x512xf32>
    %16 = arith.addf %13, %15 : vector<8x512xf32>
    %17 = vector.extract_strided_slice %16 {offsets = [0, 0], sizes = [8, 384], strides = [1, 1]} : vector<8x512xf32> to vector<8x384xf32>
    %18 = arith.negf %17 : vector<8x384xf32>
    %19 = math.exp %18 : vector<8x384xf32>
    %cst_14 = arith.constant 1.000000e+00 : f32
    %20 = vector.broadcast %cst_14 : f32 to vector<8x384xf32>
    %21 = arith.addf %20, %19 : vector<8x384xf32>
    %22 = arith.divf %20, %21 : vector<8x384xf32>
    %23 = vector.extract_strided_slice %16 {offsets = [0, 384], sizes = [8, 128], strides = [1, 1]} : vector<8x512xf32> to vector<8x128xf32>
    %24 = math.tanh %23 : vector<8x128xf32>
    %25 = vector.extract_strided_slice %22 {offsets = [0, 128], sizes = [8, 128], strides = [1, 1]} : vector<8x384xf32> to vector<8x128xf32>
    %26 = arith.mulf %25, %9 : vector<8x128xf32>
    %27 = vector.extract_strided_slice %22 {offsets = [0, 0], sizes = [8, 128], strides = [1, 1]} : vector<8x384xf32> to vector<8x128xf32>
    %28 = arith.mulf %27, %24 : vector<8x128xf32>
    %29 = arith.addf %26, %28 : vector<8x128xf32>
    %30 = vector.extract_strided_slice %22 {offsets = [0, 256], sizes = [8, 128], strides = [1, 1]} : vector<8x384xf32> to vector<8x128xf32>
    %31 = math.tanh %29 : vector<8x128xf32>
    %32 = arith.mulf %30, %31 : vector<8x128xf32>
    %33 = arith.index_cast %11 : i32 to index
    %c0_15 = arith.constant 0 : index
    %34 = vector.load %arg11[%33, %c0_15] : memref<64x128xf32, #tpu.memory_space<vmem>>, vector<8x128xf32>
    tpu.vector_store %arg11[%33, %c0_15], %32 {strides = array<i32>} : memref<64x128xf32, #tpu.memory_space<vmem>>, vector<8x128xf32>,
    %c1_i32 = arith.constant 1 : i32
    %c8_i32_16 = arith.constant 8 : i32
    %35 = arith.muli %c1_i32, %c8_i32_16 : i32
    %36 = tpu.assume_multiple %35, 8 : i32
    %37 = arith.index_cast %36 : i32 to index
    %c0_17 = arith.constant 0 : index
    %38 = vector.load %arg12[%37, %c0_17] : memref<64x512xf32, #tpu.memory_space<vmem>>, vector<8x512xf32>
    %c0_18 = arith.constant 0 : index
    %c0_19 = arith.constant 0 : index
    %39 = vector.load %arg3[%c0_18, %c0_19] : memref<128x512xf32, #tpu.memory_space<vmem>>, vector<128x512xf32>
    %cst_20 = arith.constant dense<0.000000e+00> : vector<8x512xf32>
    %40 = tpu.matmul %32, %39, %cst_20 {dimension_numbers = #tpu.dot_dimension_numbers<[1], [0], [0], [1], [0, 0, 1, 1], [], []>} : vector<8x128xf32>, vector<128x512xf32>, vector<8x512xf32> -> vector<8x512xf32>
    %41 = arith.addf %38, %40 : vector<8x512xf32>
    %42 = vector.extract_strided_slice %41 {offsets = [0, 0], sizes = [8, 384], strides = [1, 1]} : vector<8x512xf32> to vector<8x384xf32>
    %43 = arith.negf %42 : vector<8x384xf32>
    %44 = math.exp %43 : vector<8x384xf32>
    %cst_21 = arith.constant 1.000000e+00 : f32
    %45 = vector.broadcast %cst_21 : f32 to vector<8x384xf32>
    %46 = arith.addf %45, %44 : vector<8x384xf32>
    %47 = arith.divf %45, %46 : vector<8x384xf32>
    %48 = vector.extract_strided_slice %41 {offsets = [0, 384], sizes = [8, 128], strides = [1, 1]} : vector<8x512xf32> to vector<8x128xf32>
    %49 = math.tanh %48 : vector<8x128xf32>
    %50 = vector.extract_strided_slice %47 {offsets = [0, 128], sizes = [8, 128], strides = [1, 1]} : vector<8x384xf32> to vector<8x128xf32>
    %51 = arith.mulf %50, %29 : vector<8x128xf32>
    %52 = vector.extract_strided_slice %47 {offsets = [0, 0], sizes = [8, 128], strides = [1, 1]} : vector<8x384xf32> to vector<8x128xf32>
    %53 = arith.mulf %52, %49 : vector<8x128xf32>
    %54 = arith.addf %51, %53 : vector<8x128xf32>
    %55 = vector.extract_strided_slice %47 {offsets = [0, 256], sizes = [8, 128], strides = [1, 1]} : vector<8x384xf32> to vector<8x128xf32>
    %56 = math.tanh %54 : vector<8x128xf32>
    %57 = arith.mulf %55, %56 : vector<8x128xf32>
    %58 = arith.index_cast %36 : i32 to index
    %c0_22 = arith.constant 0 : index
    %59 = vector.load %arg11[%58, %c0_22] : memref<64x128xf32, #tpu.memory_space<vmem>>, vector<8x128xf32>
    tpu.vector_store %arg11[%58, %c0_22], %57 {strides = array<i32>} : memref<64x128xf32, #tpu.memory_space<vmem>>, vector<8x128xf32>,
    %c2_i32 = arith.constant 2 : i32
    %c8_i32_23 = arith.constant 8 : i32
    %60 = arith.muli %c2_i32, %c8_i32_23 : i32
    %61 = tpu.assume_multiple %60, 8 : i32
    %62 = arith.index_cast %61 : i32 to index
    %c0_24 = arith.constant 0 : index
    %63 = vector.load %arg12[%62, %c0_24] : memref<64x512xf32, #tpu.memory_space<vmem>>, vector<8x512xf32>
    %c0_25 = arith.constant 0 : index
    %c0_26 = arith.constant 0 : index
    %64 = vector.load %arg3[%c0_25, %c0_26] : memref<128x512xf32, #tpu.memory_space<vmem>>, vector<128x512xf32>
    %cst_27 = arith.constant dense<0.000000e+00> : vector<8x512xf32>
    %65 = tpu.matmul %57, %64, %cst_27 {dimension_numbers = #tpu.dot_dimension_numbers<[1], [0], [0], [1], [0, 0, 1, 1], [], []>} : vector<8x128xf32>, vector<128x512xf32>, vector<8x512xf32> -> vector<8x512xf32>
    %66 = arith.addf %63, %65 : vector<8x512xf32>
    %67 = vector.extract_strided_slice %66 {offsets = [0, 0], sizes = [8, 384], strides = [1, 1]} : vector<8x512xf32> to vector<8x384xf32>
    %68 = arith.negf %67 : vector<8x384xf32>
    %69 = math.exp %68 : vector<8x384xf32>
    %cst_28 = arith.constant 1.000000e+00 : f32
    %70 = vector.broadcast %cst_28 : f32 to vector<8x384xf32>
    %71 = arith.addf %70, %69 : vector<8x384xf32>
    %72 = arith.divf %70, %71 : vector<8x384xf32>
    %73 = vector.extract_strided_slice %66 {offsets = [0, 384], sizes = [8, 128], strides = [1, 1]} : vector<8x512xf32> to vector<8x128xf32>
    %74 = math.tanh %73 : vector<8x128xf32>
    %75 = vector.extract_strided_slice %72 {offsets = [0, 128], sizes = [8, 128], strides = [1, 1]} : vector<8x384xf32> to vector<8x128xf32>
    %76 = arith.mulf %75, %54 : vector<8x128xf32>
    %77 = vector.extract_strided_slice %72 {offsets = [0, 0], sizes = [8, 128], strides = [1, 1]} : vector<8x384xf32> to vector<8x128xf32>
    %78 = arith.mulf %77, %74 : vector<8x128xf32>
    %79 = arith.addf %76, %78 : vector<8x128xf32>
    %80 = vector.extract_strided_slice %72 {offsets = [0, 256], sizes = [8, 128], strides = [1, 1]} : vector<8x384xf32> to vector<8x128xf32>
    %81 = math.tanh %79 : vector<8x128xf32>
    %82 = arith.mulf %80, %81 : vector<8x128xf32>
    %83 = arith.index_cast %61 : i32 to index
    %c0_29 = arith.constant 0 : index
    %84 = vector.load %arg11[%83, %c0_29] : memref<64x128xf32, #tpu.memory_space<vmem>>, vector<8x128xf32>
    tpu.vector_store %arg11[%83, %c0_29], %82 {strides = array<i32>} : memref<64x128xf32, #tpu.memory_space<vmem>>, vector<8x128xf32>,
    %c3_i32 = arith.constant 3 : i32
    %c8_i32_30 = arith.constant 8 : i32
    %85 = arith.muli %c3_i32, %c8_i32_30 : i32
    %86 = tpu.assume_multiple %85, 8 : i32
    %87 = arith.index_cast %86 : i32 to index
    %c0_31 = arith.constant 0 : index
    %88 = vector.load %arg12[%87, %c0_31] : memref<64x512xf32, #tpu.memory_space<vmem>>, vector<8x512xf32>
    %c0_32 = arith.constant 0 : index
    %c0_33 = arith.constant 0 : index
    %89 = vector.load %arg3[%c0_32, %c0_33] : memref<128x512xf32, #tpu.memory_space<vmem>>, vector<128x512xf32>
    %cst_34 = arith.constant dense<0.000000e+00> : vector<8x512xf32>
    %90 = tpu.matmul %82, %89, %cst_34 {dimension_numbers = #tpu.dot_dimension_numbers<[1], [0], [0], [1], [0, 0, 1, 1], [], []>} : vector<8x128xf32>, vector<128x512xf32>, vector<8x512xf32> -> vector<8x512xf32>
    %91 = arith.addf %88, %90 : vector<8x512xf32>
    %92 = vector.extract_strided_slice %91 {offsets = [0, 0], sizes = [8, 384], strides = [1, 1]} : vector<8x512xf32> to vector<8x384xf32>
    %93 = arith.negf %92 : vector<8x384xf32>
    %94 = math.exp %93 : vector<8x384xf32>
    %cst_35 = arith.constant 1.000000e+00 : f32
    %95 = vector.broadcast %cst_35 : f32 to vector<8x384xf32>
    %96 = arith.addf %95, %94 : vector<8x384xf32>
    %97 = arith.divf %95, %96 : vector<8x384xf32>
    %98 = vector.extract_strided_slice %91 {offsets = [0, 384], sizes = [8, 128], strides = [1, 1]} : vector<8x512xf32> to vector<8x128xf32>
    %99 = math.tanh %98 : vector<8x128xf32>
    %100 = vector.extract_strided_slice %97 {offsets = [0, 128], sizes = [8, 128], strides = [1, 1]} : vector<8x384xf32> to vector<8x128xf32>
    %101 = arith.mulf %100, %79 : vector<8x128xf32>
    %102 = vector.extract_strided_slice %97 {offsets = [0, 0], sizes = [8, 128], strides = [1, 1]} : vector<8x384xf32> to vector<8x128xf32>
    %103 = arith.mulf %102, %99 : vector<8x128xf32>
    %104 = arith.addf %101, %103 : vector<8x128xf32>
    %105 = vector.extract_strided_slice %97 {offsets = [0, 256], sizes = [8, 128], strides = [1, 1]} : vector<8x384xf32> to vector<8x128xf32>
    %106 = math.tanh %104 : vector<8x128xf32>
    %107 = arith.mulf %105, %106 : vector<8x128xf32>
    %108 = arith.index_cast %86 : i32 to index
    %c0_36 = arith.constant 0 : index
    %109 = vector.load %arg11[%108, %c0_36] : memref<64x128xf32, #tpu.memory_space<vmem>>, vector<8x128xf32>
    tpu.vector_store %arg11[%108, %c0_36], %107 {strides = array<i32>} : memref<64x128xf32, #tpu.memory_space<vmem>>, vector<8x128xf32>,
    %c4_i32 = arith.constant 4 : i32
    %c8_i32_37 = arith.constant 8 : i32
    %110 = arith.muli %c4_i32, %c8_i32_37 : i32
    %111 = tpu.assume_multiple %110, 8 : i32
    %112 = arith.index_cast %111 : i32 to index
    %c0_38 = arith.constant 0 : index
    %113 = vector.load %arg12[%112, %c0_38] : memref<64x512xf32, #tpu.memory_space<vmem>>, vector<8x512xf32>
    %c0_39 = arith.constant 0 : index
    %c0_40 = arith.constant 0 : index
    %114 = vector.load %arg3[%c0_39, %c0_40] : memref<128x512xf32, #tpu.memory_space<vmem>>, vector<128x512xf32>
    %cst_41 = arith.constant dense<0.000000e+00> : vector<8x512xf32>
    %115 = tpu.matmul %107, %114, %cst_41 {dimension_numbers = #tpu.dot_dimension_numbers<[1], [0], [0], [1], [0, 0, 1, 1], [], []>} : vector<8x128xf32>, vector<128x512xf32>, vector<8x512xf32> -> vector<8x512xf32>
    %116 = arith.addf %113, %115 : vector<8x512xf32>
    %117 = vector.extract_strided_slice %116 {offsets = [0, 0], sizes = [8, 384], strides = [1, 1]} : vector<8x512xf32> to vector<8x384xf32>
    %118 = arith.negf %117 : vector<8x384xf32>
    %119 = math.exp %118 : vector<8x384xf32>
    %cst_42 = arith.constant 1.000000e+00 : f32
    %120 = vector.broadcast %cst_42 : f32 to vector<8x384xf32>
    %121 = arith.addf %120, %119 : vector<8x384xf32>
    %122 = arith.divf %120, %121 : vector<8x384xf32>
    %123 = vector.extract_strided_slice %116 {offsets = [0, 384], sizes = [8, 128], strides = [1, 1]} : vector<8x512xf32> to vector<8x128xf32>
    %124 = math.tanh %123 : vector<8x128xf32>
    %125 = vector.extract_strided_slice %122 {offsets = [0, 128], sizes = [8, 128], strides = [1, 1]} : vector<8x384xf32> to vector<8x128xf32>
    %126 = arith.mulf %125, %104 : vector<8x128xf32>
    %127 = vector.extract_strided_slice %122 {offsets = [0, 0], sizes = [8, 128], strides = [1, 1]} : vector<8x384xf32> to vector<8x128xf32>
    %128 = arith.mulf %127, %124 : vector<8x128xf32>
    %129 = arith.addf %126, %128 : vector<8x128xf32>
    %130 = vector.extract_strided_slice %122 {offsets = [0, 256], sizes = [8, 128], strides = [1, 1]} : vector<8x384xf32> to vector<8x128xf32>
    %131 = math.tanh %129 : vector<8x128xf32>
    %132 = arith.mulf %130, %131 : vector<8x128xf32>
    %133 = arith.index_cast %111 : i32 to index
    %c0_43 = arith.constant 0 : index
    %134 = vector.load %arg11[%133, %c0_43] : memref<64x128xf32, #tpu.memory_space<vmem>>, vector<8x128xf32>
    tpu.vector_store %arg11[%133, %c0_43], %132 {strides = array<i32>} : memref<64x128xf32, #tpu.memory_space<vmem>>, vector<8x128xf32>,
    %c5_i32 = arith.constant 5 : i32
    %c8_i32_44 = arith.constant 8 : i32
    %135 = arith.muli %c5_i32, %c8_i32_44 : i32
    %136 = tpu.assume_multiple %135, 8 : i32
    %137 = arith.index_cast %136 : i32 to index
    %c0_45 = arith.constant 0 : index
    %138 = vector.load %arg12[%137, %c0_45] : memref<64x512xf32, #tpu.memory_space<vmem>>, vector<8x512xf32>
    %c0_46 = arith.constant 0 : index
    %c0_47 = arith.constant 0 : index
    %139 = vector.load %arg3[%c0_46, %c0_47] : memref<128x512xf32, #tpu.memory_space<vmem>>, vector<128x512xf32>
    %cst_48 = arith.constant dense<0.000000e+00> : vector<8x512xf32>
    %140 = tpu.matmul %132, %139, %cst_48 {dimension_numbers = #tpu.dot_dimension_numbers<[1], [0], [0], [1], [0, 0, 1, 1], [], []>} : vector<8x128xf32>, vector<128x512xf32>, vector<8x512xf32> -> vector<8x512xf32>
    %141 = arith.addf %138, %140 : vector<8x512xf32>
    %142 = vector.extract_strided_slice %141 {offsets = [0, 0], sizes = [8, 384], strides = [1, 1]} : vector<8x512xf32> to vector<8x384xf32>
    %143 = arith.negf %142 : vector<8x384xf32>
    %144 = math.exp %143 : vector<8x384xf32>
    %cst_49 = arith.constant 1.000000e+00 : f32
    %145 = vector.broadcast %cst_49 : f32 to vector<8x384xf32>
    %146 = arith.addf %145, %144 : vector<8x384xf32>
    %147 = arith.divf %145, %146 : vector<8x384xf32>
    %148 = vector.extract_strided_slice %141 {offsets = [0, 384], sizes = [8, 128], strides = [1, 1]} : vector<8x512xf32> to vector<8x128xf32>
    %149 = math.tanh %148 : vector<8x128xf32>
    %150 = vector.extract_strided_slice %147 {offsets = [0, 128], sizes = [8, 128], strides = [1, 1]} : vector<8x384xf32> to vector<8x128xf32>
    %151 = arith.mulf %150, %129 : vector<8x128xf32>
    %152 = vector.extract_strided_slice %147 {offsets = [0, 0], sizes = [8, 128], strides = [1, 1]} : vector<8x384xf32> to vector<8x128xf32>
    %153 = arith.mulf %152, %149 : vector<8x128xf32>
    %154 = arith.addf %151, %153 : vector<8x128xf32>
    %155 = vector.extract_strided_slice %147 {offsets = [0, 256], sizes = [8, 128], strides = [1, 1]} : vector<8x384xf32> to vector<8x128xf32>
    %156 = math.tanh %154 : vector<8x128xf32>
    %157 = arith.mulf %155, %156 : vector<8x128xf32>
    %158 = arith.index_cast %136 : i32 to index
    %c0_50 = arith.constant 0 : index
    %159 = vector.load %arg11[%158, %c0_50] : memref<64x128xf32, #tpu.memory_space<vmem>>, vector<8x128xf32>
    tpu.vector_store %arg11[%158, %c0_50], %157 {strides = array<i32>} : memref<64x128xf32, #tpu.memory_space<vmem>>, vector<8x128xf32>,
    %c6_i32 = arith.constant 6 : i32
    %c8_i32_51 = arith.constant 8 : i32
    %160 = arith.muli %c6_i32, %c8_i32_51 : i32
    %161 = tpu.assume_multiple %160, 8 : i32
    %162 = arith.index_cast %161 : i32 to index
    %c0_52 = arith.constant 0 : index
    %163 = vector.load %arg12[%162, %c0_52] : memref<64x512xf32, #tpu.memory_space<vmem>>, vector<8x512xf32>
    %c0_53 = arith.constant 0 : index
    %c0_54 = arith.constant 0 : index
    %164 = vector.load %arg3[%c0_53, %c0_54] : memref<128x512xf32, #tpu.memory_space<vmem>>, vector<128x512xf32>
    %cst_55 = arith.constant dense<0.000000e+00> : vector<8x512xf32>
    %165 = tpu.matmul %157, %164, %cst_55 {dimension_numbers = #tpu.dot_dimension_numbers<[1], [0], [0], [1], [0, 0, 1, 1], [], []>} : vector<8x128xf32>, vector<128x512xf32>, vector<8x512xf32> -> vector<8x512xf32>
    %166 = arith.addf %163, %165 : vector<8x512xf32>
    %167 = vector.extract_strided_slice %166 {offsets = [0, 0], sizes = [8, 384], strides = [1, 1]} : vector<8x512xf32> to vector<8x384xf32>
    %168 = arith.negf %167 : vector<8x384xf32>
    %169 = math.exp %168 : vector<8x384xf32>
    %cst_56 = arith.constant 1.000000e+00 : f32
    %170 = vector.broadcast %cst_56 : f32 to vector<8x384xf32>
    %171 = arith.addf %170, %169 : vector<8x384xf32>
    %172 = arith.divf %170, %171 : vector<8x384xf32>
    %173 = vector.extract_strided_slice %166 {offsets = [0, 384], sizes = [8, 128], strides = [1, 1]} : vector<8x512xf32> to vector<8x128xf32>
    %174 = math.tanh %173 : vector<8x128xf32>
    %175 = vector.extract_strided_slice %172 {offsets = [0, 128], sizes = [8, 128], strides = [1, 1]} : vector<8x384xf32> to vector<8x128xf32>
    %176 = arith.mulf %175, %154 : vector<8x128xf32>
    %177 = vector.extract_strided_slice %172 {offsets = [0, 0], sizes = [8, 128], strides = [1, 1]} : vector<8x384xf32> to vector<8x128xf32>
    %178 = arith.mulf %177, %174 : vector<8x128xf32>
    %179 = arith.addf %176, %178 : vector<8x128xf32>
    %180 = vector.extract_strided_slice %172 {offsets = [0, 256], sizes = [8, 128], strides = [1, 1]} : vector<8x384xf32> to vector<8x128xf32>
    %181 = math.tanh %179 : vector<8x128xf32>
    %182 = arith.mulf %180, %181 : vector<8x128xf32>
    %183 = arith.index_cast %161 : i32 to index
    %c0_57 = arith.constant 0 : index
    %184 = vector.load %arg11[%183, %c0_57] : memref<64x128xf32, #tpu.memory_space<vmem>>, vector<8x128xf32>
    tpu.vector_store %arg11[%183, %c0_57], %182 {strides = array<i32>} : memref<64x128xf32, #tpu.memory_space<vmem>>, vector<8x128xf32>,
    %c7_i32 = arith.constant 7 : i32
    %c8_i32_58 = arith.constant 8 : i32
    %185 = arith.muli %c7_i32, %c8_i32_58 : i32
    %186 = tpu.assume_multiple %185, 8 : i32
    %187 = arith.index_cast %186 : i32 to index
    %c0_59 = arith.constant 0 : index
    %188 = vector.load %arg12[%187, %c0_59] : memref<64x512xf32, #tpu.memory_space<vmem>>, vector<8x512xf32>
    %c0_60 = arith.constant 0 : index
    %c0_61 = arith.constant 0 : index
    %189 = vector.load %arg3[%c0_60, %c0_61] : memref<128x512xf32, #tpu.memory_space<vmem>>, vector<128x512xf32>
    %cst_62 = arith.constant dense<0.000000e+00> : vector<8x512xf32>
    %190 = tpu.matmul %182, %189, %cst_62 {dimension_numbers = #tpu.dot_dimension_numbers<[1], [0], [0], [1], [0, 0, 1, 1], [], []>} : vector<8x128xf32>, vector<128x512xf32>, vector<8x512xf32> -> vector<8x512xf32>
    %191 = arith.addf %188, %190 : vector<8x512xf32>
    %192 = vector.extract_strided_slice %191 {offsets = [0, 0], sizes = [8, 384], strides = [1, 1]} : vector<8x512xf32> to vector<8x384xf32>
    %193 = arith.negf %192 : vector<8x384xf32>
    %194 = math.exp %193 : vector<8x384xf32>
    %cst_63 = arith.constant 1.000000e+00 : f32
    %195 = vector.broadcast %cst_63 : f32 to vector<8x384xf32>
    %196 = arith.addf %195, %194 : vector<8x384xf32>
    %197 = arith.divf %195, %196 : vector<8x384xf32>
    %198 = vector.extract_strided_slice %191 {offsets = [0, 384], sizes = [8, 128], strides = [1, 1]} : vector<8x512xf32> to vector<8x128xf32>
    %199 = math.tanh %198 : vector<8x128xf32>
    %200 = vector.extract_strided_slice %197 {offsets = [0, 128], sizes = [8, 128], strides = [1, 1]} : vector<8x384xf32> to vector<8x128xf32>
    %201 = arith.mulf %200, %179 : vector<8x128xf32>
    %202 = vector.extract_strided_slice %197 {offsets = [0, 0], sizes = [8, 128], strides = [1, 1]} : vector<8x384xf32> to vector<8x128xf32>
    %203 = arith.mulf %202, %199 : vector<8x128xf32>
    %204 = arith.addf %201, %203 : vector<8x128xf32>
    %205 = vector.extract_strided_slice %197 {offsets = [0, 256], sizes = [8, 128], strides = [1, 1]} : vector<8x384xf32> to vector<8x128xf32>
    %206 = math.tanh %204 : vector<8x128xf32>
    %207 = arith.mulf %205, %206 : vector<8x128xf32>
    %208 = arith.index_cast %186 : i32 to index
    %c0_64 = arith.constant 0 : index
    %209 = vector.load %arg11[%208, %c0_64] : memref<64x128xf32, #tpu.memory_space<vmem>>, vector<8x128xf32>
    tpu.vector_store %arg11[%208, %c0_64], %207 {strides = array<i32>} : memref<64x128xf32, #tpu.memory_space<vmem>>, vector<8x128xf32>,
    %c8_i32_65 = arith.constant 8 : i32
    %c0_66 = arith.constant 0 : index
    %c0_67 = arith.constant 0 : index
    %210 = vector.load %arg11[%c0_66, %c0_67] : memref<64x128xf32, #tpu.memory_space<vmem>>, vector<64x128xf32>
    %c0_68 = arith.constant 0 : index
    %c0_69 = arith.constant 0 : index
    %211 = vector.load %arg5[%c0_68, %c0_69] : memref<128x512xf32, #tpu.memory_space<vmem>>, vector<128x512xf32>
    %cst_70 = arith.constant dense<0.000000e+00> : vector<64x512xf32>
    %212 = tpu.matmul %210, %211, %cst_70 {dimension_numbers = #tpu.dot_dimension_numbers<[1], [0], [0], [1], [0, 0, 1, 1], [], []>} : vector<64x128xf32>, vector<128x512xf32>, vector<64x512xf32> -> vector<64x512xf32>
    %c0_71 = arith.constant 0 : index
    %c0_72 = arith.constant 0 : index
    %213 = vector.load %arg7[%c0_71, %c0_72] : memref<1x512xf32, #tpu.memory_space<vmem>>, vector<1x512xf32>
    %214 = vector.broadcast %213 : vector<1x512xf32> to vector<64x512xf32>
    %215 = arith.addf %212, %214 : vector<64x512xf32>
    %c0_73 = arith.constant 0 : index
    %c0_74 = arith.constant 0 : index
    %216 = vector.load %arg12[%c0_73, %c0_74] : memref<64x512xf32, #tpu.memory_space<vmem>>, vector<64x512xf32>
    tpu.vector_store %arg12[%c0_73, %c0_74], %215 {strides = array<i32>} : memref<64x512xf32, #tpu.memory_space<vmem>>, vector<64x512xf32>,
    %cst_75 = arith.constant 0.000000e+00 : f32
    %217 = vector.broadcast %cst_75 : f32 to vector<8x128xf32>
    %cst_76 = arith.constant 0.000000e+00 : f32
    %218 = vector.broadcast %cst_76 : f32 to vector<8x128xf32>
    %c0_i32_77 = arith.constant 0 : i32
    %c8_i32_78 = arith.constant 8 : i32
    %219 = arith.muli %c0_i32_77, %c8_i32_78 : i32
    %220 = tpu.assume_multiple %219, 8 : i32
    %221 = arith.index_cast %220 : i32 to index
    %c0_79 = arith.constant 0 : index
    %222 = vector.load %arg12[%221, %c0_79] : memref<64x512xf32, #tpu.memory_space<vmem>>, vector<8x512xf32>
    %c0_80 = arith.constant 0 : index
    %c0_81 = arith.constant 0 : index
    %223 = vector.load %arg6[%c0_80, %c0_81] : memref<128x512xf32, #tpu.memory_space<vmem>>, vector<128x512xf32>
    %cst_82 = arith.constant dense<0.000000e+00> : vector<8x512xf32>
    %224 = tpu.matmul %217, %223, %cst_82 {dimension_numbers = #tpu.dot_dimension_numbers<[1], [0], [0], [1], [0, 0, 1, 1], [], []>} : vector<8x128xf32>, vector<128x512xf32>, vector<8x512xf32> -> vector<8x512xf32>
    %225 = arith.addf %222, %224 : vector<8x512xf32>
    %226 = vector.extract_strided_slice %225 {offsets = [0, 0], sizes = [8, 384], strides = [1, 1]} : vector<8x512xf32> to vector<8x384xf32>
    %227 = arith.negf %226 : vector<8x384xf32>
    %228 = math.exp %227 : vector<8x384xf32>
    %cst_83 = arith.constant 1.000000e+00 : f32
    %229 = vector.broadcast %cst_83 : f32 to vector<8x384xf32>
    %230 = arith.addf %229, %228 : vector<8x384xf32>
    %231 = arith.divf %229, %230 : vector<8x384xf32>
    %232 = vector.extract_strided_slice %225 {offsets = [0, 384], sizes = [8, 128], strides = [1, 1]} : vector<8x512xf32> to vector<8x128xf32>
    %233 = math.tanh %232 : vector<8x128xf32>
    %234 = vector.extract_strided_slice %231 {offsets = [0, 128], sizes = [8, 128], strides = [1, 1]} : vector<8x384xf32> to vector<8x128xf32>
    %235 = arith.mulf %234, %218 : vector<8x128xf32>
    %236 = vector.extract_strided_slice %231 {offsets = [0, 0], sizes = [8, 128], strides = [1, 1]} : vector<8x384xf32> to vector<8x128xf32>
    %237 = arith.mulf %236, %233 : vector<8x128xf32>
    %238 = arith.addf %235, %237 : vector<8x128xf32>
    %239 = vector.extract_strided_slice %231 {offsets = [0, 256], sizes = [8, 128], strides = [1, 1]} : vector<8x384xf32> to vector<8x128xf32>
    %240 = math.tanh %238 : vector<8x128xf32>
    %241 = arith.mulf %239, %240 : vector<8x128xf32>
    %c1_i32_84 = arith.constant 1 : i32
    %c8_i32_85 = arith.constant 8 : i32
    %242 = arith.muli %c1_i32_84, %c8_i32_85 : i32
    %243 = tpu.assume_multiple %242, 8 : i32
    %244 = arith.index_cast %243 : i32 to index
    %c0_86 = arith.constant 0 : index
    %245 = vector.load %arg12[%244, %c0_86] : memref<64x512xf32, #tpu.memory_space<vmem>>, vector<8x512xf32>
    %c0_87 = arith.constant 0 : index
    %c0_88 = arith.constant 0 : index
    %246 = vector.load %arg6[%c0_87, %c0_88] : memref<128x512xf32, #tpu.memory_space<vmem>>, vector<128x512xf32>
    %cst_89 = arith.constant dense<0.000000e+00> : vector<8x512xf32>
    %247 = tpu.matmul %241, %246, %cst_89 {dimension_numbers = #tpu.dot_dimension_numbers<[1], [0], [0], [1], [0, 0, 1, 1], [], []>} : vector<8x128xf32>, vector<128x512xf32>, vector<8x512xf32> -> vector<8x512xf32>
    %248 = arith.addf %245, %247 : vector<8x512xf32>
    %249 = vector.extract_strided_slice %248 {offsets = [0, 0], sizes = [8, 384], strides = [1, 1]} : vector<8x512xf32> to vector<8x384xf32>
    %250 = arith.negf %249 : vector<8x384xf32>
    %251 = math.exp %250 : vector<8x384xf32>
    %cst_90 = arith.constant 1.000000e+00 : f32
    %252 = vector.broadcast %cst_90 : f32 to vector<8x384xf32>
    %253 = arith.addf %252, %251 : vector<8x384xf32>
    %254 = arith.divf %252, %253 : vector<8x384xf32>
    %255 = vector.extract_strided_slice %248 {offsets = [0, 384], sizes = [8, 128], strides = [1, 1]} : vector<8x512xf32> to vector<8x128xf32>
    %256 = math.tanh %255 : vector<8x128xf32>
    %257 = vector.extract_strided_slice %254 {offsets = [0, 128], sizes = [8, 128], strides = [1, 1]} : vector<8x384xf32> to vector<8x128xf32>
    %258 = arith.mulf %257, %238 : vector<8x128xf32>
    %259 = vector.extract_strided_slice %254 {offsets = [0, 0], sizes = [8, 128], strides = [1, 1]} : vector<8x384xf32> to vector<8x128xf32>
    %260 = arith.mulf %259, %256 : vector<8x128xf32>
    %261 = arith.addf %258, %260 : vector<8x128xf32>
    %262 = vector.extract_strided_slice %254 {offsets = [0, 256], sizes = [8, 128], strides = [1, 1]} : vector<8x384xf32> to vector<8x128xf32>
    %263 = math.tanh %261 : vector<8x128xf32>
    %264 = arith.mulf %262, %263 : vector<8x128xf32>
    %c2_i32_91 = arith.constant 2 : i32
    %c8_i32_92 = arith.constant 8 : i32
    %265 = arith.muli %c2_i32_91, %c8_i32_92 : i32
    %266 = tpu.assume_multiple %265, 8 : i32
    %267 = arith.index_cast %266 : i32 to index
    %c0_93 = arith.constant 0 : index
    %268 = vector.load %arg12[%267, %c0_93] : memref<64x512xf32, #tpu.memory_space<vmem>>, vector<8x512xf32>
    %c0_94 = arith.constant 0 : index
    %c0_95 = arith.constant 0 : index
    %269 = vector.load %arg6[%c0_94, %c0_95] : memref<128x512xf32, #tpu.memory_space<vmem>>, vector<128x512xf32>
    %cst_96 = arith.constant dense<0.000000e+00> : vector<8x512xf32>
    %270 = tpu.matmul %264, %269, %cst_96 {dimension_numbers = #tpu.dot_dimension_numbers<[1], [0], [0], [1], [0, 0, 1, 1], [], []>} : vector<8x128xf32>, vector<128x512xf32>, vector<8x512xf32> -> vector<8x512xf32>
    %271 = arith.addf %268, %270 : vector<8x512xf32>
    %272 = vector.extract_strided_slice %271 {offsets = [0, 0], sizes = [8, 384], strides = [1, 1]} : vector<8x512xf32> to vector<8x384xf32>
    %273 = arith.negf %272 : vector<8x384xf32>
    %274 = math.exp %273 : vector<8x384xf32>
    %cst_97 = arith.constant 1.000000e+00 : f32
    %275 = vector.broadcast %cst_97 : f32 to vector<8x384xf32>
    %276 = arith.addf %275, %274 : vector<8x384xf32>
    %277 = arith.divf %275, %276 : vector<8x384xf32>
    %278 = vector.extract_strided_slice %271 {offsets = [0, 384], sizes = [8, 128], strides = [1, 1]} : vector<8x512xf32> to vector<8x128xf32>
    %279 = math.tanh %278 : vector<8x128xf32>
    %280 = vector.extract_strided_slice %277 {offsets = [0, 128], sizes = [8, 128], strides = [1, 1]} : vector<8x384xf32> to vector<8x128xf32>
    %281 = arith.mulf %280, %261 : vector<8x128xf32>
    %282 = vector.extract_strided_slice %277 {offsets = [0, 0], sizes = [8, 128], strides = [1, 1]} : vector<8x384xf32> to vector<8x128xf32>
    %283 = arith.mulf %282, %279 : vector<8x128xf32>
    %284 = arith.addf %281, %283 : vector<8x128xf32>
    %285 = vector.extract_strided_slice %277 {offsets = [0, 256], sizes = [8, 128], strides = [1, 1]} : vector<8x384xf32> to vector<8x128xf32>
    %286 = math.tanh %284 : vector<8x128xf32>
    %287 = arith.mulf %285, %286 : vector<8x128xf32>
    %c3_i32_98 = arith.constant 3 : i32
    %c8_i32_99 = arith.constant 8 : i32
    %288 = arith.muli %c3_i32_98, %c8_i32_99 : i32
    %289 = tpu.assume_multiple %288, 8 : i32
    %290 = arith.index_cast %289 : i32 to index
    %c0_100 = arith.constant 0 : index
    %291 = vector.load %arg12[%290, %c0_100] : memref<64x512xf32, #tpu.memory_space<vmem>>, vector<8x512xf32>
    %c0_101 = arith.constant 0 : index
    %c0_102 = arith.constant 0 : index
    %292 = vector.load %arg6[%c0_101, %c0_102] : memref<128x512xf32, #tpu.memory_space<vmem>>, vector<128x512xf32>
    %cst_103 = arith.constant dense<0.000000e+00> : vector<8x512xf32>
    %293 = tpu.matmul %287, %292, %cst_103 {dimension_numbers = #tpu.dot_dimension_numbers<[1], [0], [0], [1], [0, 0, 1, 1], [], []>} : vector<8x128xf32>, vector<128x512xf32>, vector<8x512xf32> -> vector<8x512xf32>
    %294 = arith.addf %291, %293 : vector<8x512xf32>
    %295 = vector.extract_strided_slice %294 {offsets = [0, 0], sizes = [8, 384], strides = [1, 1]} : vector<8x512xf32> to vector<8x384xf32>
    %296 = arith.negf %295 : vector<8x384xf32>
    %297 = math.exp %296 : vector<8x384xf32>
    %cst_104 = arith.constant 1.000000e+00 : f32
    %298 = vector.broadcast %cst_104 : f32 to vector<8x384xf32>
    %299 = arith.addf %298, %297 : vector<8x384xf32>
    %300 = arith.divf %298, %299 : vector<8x384xf32>
    %301 = vector.extract_strided_slice %294 {offsets = [0, 384], sizes = [8, 128], strides = [1, 1]} : vector<8x512xf32> to vector<8x128xf32>
    %302 = math.tanh %301 : vector<8x128xf32>
    %303 = vector.extract_strided_slice %300 {offsets = [0, 128], sizes = [8, 128], strides = [1, 1]} : vector<8x384xf32> to vector<8x128xf32>
    %304 = arith.mulf %303, %284 : vector<8x128xf32>
    %305 = vector.extract_strided_slice %300 {offsets = [0, 0], sizes = [8, 128], strides = [1, 1]} : vector<8x384xf32> to vector<8x128xf32>
    %306 = arith.mulf %305, %302 : vector<8x128xf32>
    %307 = arith.addf %304, %306 : vector<8x128xf32>
    %308 = vector.extract_strided_slice %300 {offsets = [0, 256], sizes = [8, 128], strides = [1, 1]} : vector<8x384xf32> to vector<8x128xf32>
    %309 = math.tanh %307 : vector<8x128xf32>
    %310 = arith.mulf %308, %309 : vector<8x128xf32>
    %c4_i32_105 = arith.constant 4 : i32
    %c8_i32_106 = arith.constant 8 : i32
    %311 = arith.muli %c4_i32_105, %c8_i32_106 : i32
    %312 = tpu.assume_multiple %311, 8 : i32
    %313 = arith.index_cast %312 : i32 to index
    %c0_107 = arith.constant 0 : index
    %314 = vector.load %arg12[%313, %c0_107] : memref<64x512xf32, #tpu.memory_space<vmem>>, vector<8x512xf32>
    %c0_108 = arith.constant 0 : index
    %c0_109 = arith.constant 0 : index
    %315 = vector.load %arg6[%c0_108, %c0_109] : memref<128x512xf32, #tpu.memory_space<vmem>>, vector<128x512xf32>
    %cst_110 = arith.constant dense<0.000000e+00> : vector<8x512xf32>
    %316 = tpu.matmul %310, %315, %cst_110 {dimension_numbers = #tpu.dot_dimension_numbers<[1], [0], [0], [1], [0, 0, 1, 1], [], []>} : vector<8x128xf32>, vector<128x512xf32>, vector<8x512xf32> -> vector<8x512xf32>
    %317 = arith.addf %314, %316 : vector<8x512xf32>
    %318 = vector.extract_strided_slice %317 {offsets = [0, 0], sizes = [8, 384], strides = [1, 1]} : vector<8x512xf32> to vector<8x384xf32>
    %319 = arith.negf %318 : vector<8x384xf32>
    %320 = math.exp %319 : vector<8x384xf32>
    %cst_111 = arith.constant 1.000000e+00 : f32
    %321 = vector.broadcast %cst_111 : f32 to vector<8x384xf32>
    %322 = arith.addf %321, %320 : vector<8x384xf32>
    %323 = arith.divf %321, %322 : vector<8x384xf32>
    %324 = vector.extract_strided_slice %317 {offsets = [0, 384], sizes = [8, 128], strides = [1, 1]} : vector<8x512xf32> to vector<8x128xf32>
    %325 = math.tanh %324 : vector<8x128xf32>
    %326 = vector.extract_strided_slice %323 {offsets = [0, 128], sizes = [8, 128], strides = [1, 1]} : vector<8x384xf32> to vector<8x128xf32>
    %327 = arith.mulf %326, %307 : vector<8x128xf32>
    %328 = vector.extract_strided_slice %323 {offsets = [0, 0], sizes = [8, 128], strides = [1, 1]} : vector<8x384xf32> to vector<8x128xf32>
    %329 = arith.mulf %328, %325 : vector<8x128xf32>
    %330 = arith.addf %327, %329 : vector<8x128xf32>
    %331 = vector.extract_strided_slice %323 {offsets = [0, 256], sizes = [8, 128], strides = [1, 1]} : vector<8x384xf32> to vector<8x128xf32>
    %332 = math.tanh %330 : vector<8x128xf32>
    %333 = arith.mulf %331, %332 : vector<8x128xf32>
    %c5_i32_112 = arith.constant 5 : i32
    %c8_i32_113 = arith.constant 8 : i32
    %334 = arith.muli %c5_i32_112, %c8_i32_113 : i32
    %335 = tpu.assume_multiple %334, 8 : i32
    %336 = arith.index_cast %335 : i32 to index
    %c0_114 = arith.constant 0 : index
    %337 = vector.load %arg12[%336, %c0_114] : memref<64x512xf32, #tpu.memory_space<vmem>>, vector<8x512xf32>
    %c0_115 = arith.constant 0 : index
    %c0_116 = arith.constant 0 : index
    %338 = vector.load %arg6[%c0_115, %c0_116] : memref<128x512xf32, #tpu.memory_space<vmem>>, vector<128x512xf32>
    %cst_117 = arith.constant dense<0.000000e+00> : vector<8x512xf32>
    %339 = tpu.matmul %333, %338, %cst_117 {dimension_numbers = #tpu.dot_dimension_numbers<[1], [0], [0], [1], [0, 0, 1, 1], [], []>} : vector<8x128xf32>, vector<128x512xf32>, vector<8x512xf32> -> vector<8x512xf32>
    %340 = arith.addf %337, %339 : vector<8x512xf32>
    %341 = vector.extract_strided_slice %340 {offsets = [0, 0], sizes = [8, 384], strides = [1, 1]} : vector<8x512xf32> to vector<8x384xf32>
    %342 = arith.negf %341 : vector<8x384xf32>
    %343 = math.exp %342 : vector<8x384xf32>
    %cst_118 = arith.constant 1.000000e+00 : f32
    %344 = vector.broadcast %cst_118 : f32 to vector<8x384xf32>
    %345 = arith.addf %344, %343 : vector<8x384xf32>
    %346 = arith.divf %344, %345 : vector<8x384xf32>
    %347 = vector.extract_strided_slice %340 {offsets = [0, 384], sizes = [8, 128], strides = [1, 1]} : vector<8x512xf32> to vector<8x128xf32>
    %348 = math.tanh %347 : vector<8x128xf32>
    %349 = vector.extract_strided_slice %346 {offsets = [0, 128], sizes = [8, 128], strides = [1, 1]} : vector<8x384xf32> to vector<8x128xf32>
    %350 = arith.mulf %349, %330 : vector<8x128xf32>
    %351 = vector.extract_strided_slice %346 {offsets = [0, 0], sizes = [8, 128], strides = [1, 1]} : vector<8x384xf32> to vector<8x128xf32>
    %352 = arith.mulf %351, %348 : vector<8x128xf32>
    %353 = arith.addf %350, %352 : vector<8x128xf32>
    %354 = vector.extract_strided_slice %346 {offsets = [0, 256], sizes = [8, 128], strides = [1, 1]} : vector<8x384xf32> to vector<8x128xf32>
    %355 = math.tanh %353 : vector<8x128xf32>
    %356 = arith.mulf %354, %355 : vector<8x128xf32>
    %c6_i32_119 = arith.constant 6 : i32
    %c8_i32_120 = arith.constant 8 : i32
    %357 = arith.muli %c6_i32_119, %c8_i32_120 : i32
    %358 = tpu.assume_multiple %357, 8 : i32
    %359 = arith.index_cast %358 : i32 to index
    %c0_121 = arith.constant 0 : index
    %360 = vector.load %arg12[%359, %c0_121] : memref<64x512xf32, #tpu.memory_space<vmem>>, vector<8x512xf32>
    %c0_122 = arith.constant 0 : index
    %c0_123 = arith.constant 0 : index
    %361 = vector.load %arg6[%c0_122, %c0_123] : memref<128x512xf32, #tpu.memory_space<vmem>>, vector<128x512xf32>
    %cst_124 = arith.constant dense<0.000000e+00> : vector<8x512xf32>
    %362 = tpu.matmul %356, %361, %cst_124 {dimension_numbers = #tpu.dot_dimension_numbers<[1], [0], [0], [1], [0, 0, 1, 1], [], []>} : vector<8x128xf32>, vector<128x512xf32>, vector<8x512xf32> -> vector<8x512xf32>
    %363 = arith.addf %360, %362 : vector<8x512xf32>
    %364 = vector.extract_strided_slice %363 {offsets = [0, 0], sizes = [8, 384], strides = [1, 1]} : vector<8x512xf32> to vector<8x384xf32>
    %365 = arith.negf %364 : vector<8x384xf32>
    %366 = math.exp %365 : vector<8x384xf32>
    %cst_125 = arith.constant 1.000000e+00 : f32
    %367 = vector.broadcast %cst_125 : f32 to vector<8x384xf32>
    %368 = arith.addf %367, %366 : vector<8x384xf32>
    %369 = arith.divf %367, %368 : vector<8x384xf32>
    %370 = vector.extract_strided_slice %363 {offsets = [0, 384], sizes = [8, 128], strides = [1, 1]} : vector<8x512xf32> to vector<8x128xf32>
    %371 = math.tanh %370 : vector<8x128xf32>
    %372 = vector.extract_strided_slice %369 {offsets = [0, 128], sizes = [8, 128], strides = [1, 1]} : vector<8x384xf32> to vector<8x128xf32>
    %373 = arith.mulf %372, %353 : vector<8x128xf32>
    %374 = vector.extract_strided_slice %369 {offsets = [0, 0], sizes = [8, 128], strides = [1, 1]} : vector<8x384xf32> to vector<8x128xf32>
    %375 = arith.mulf %374, %371 : vector<8x128xf32>
    %376 = arith.addf %373, %375 : vector<8x128xf32>
    %377 = vector.extract_strided_slice %369 {offsets = [0, 256], sizes = [8, 128], strides = [1, 1]} : vector<8x384xf32> to vector<8x128xf32>
    %378 = math.tanh %376 : vector<8x128xf32>
    %379 = arith.mulf %377, %378 : vector<8x128xf32>
    %c7_i32_126 = arith.constant 7 : i32
    %c8_i32_127 = arith.constant 8 : i32
    %380 = arith.muli %c7_i32_126, %c8_i32_127 : i32
    %381 = tpu.assume_multiple %380, 8 : i32
    %382 = arith.index_cast %381 : i32 to index
    %c0_128 = arith.constant 0 : index
    %383 = vector.load %arg12[%382, %c0_128] : memref<64x512xf32, #tpu.memory_space<vmem>>, vector<8x512xf32>
    %c0_129 = arith.constant 0 : index
    %c0_130 = arith.constant 0 : index
    %384 = vector.load %arg6[%c0_129, %c0_130] : memref<128x512xf32, #tpu.memory_space<vmem>>, vector<128x512xf32>
    %cst_131 = arith.constant dense<0.000000e+00> : vector<8x512xf32>
    %385 = tpu.matmul %379, %384, %cst_131 {dimension_numbers = #tpu.dot_dimension_numbers<[1], [0], [0], [1], [0, 0, 1, 1], [], []>} : vector<8x128xf32>, vector<128x512xf32>, vector<8x512xf32> -> vector<8x512xf32>
    %386 = arith.addf %383, %385 : vector<8x512xf32>
    %387 = vector.extract_strided_slice %386 {offsets = [0, 0], sizes = [8, 384], strides = [1, 1]} : vector<8x512xf32> to vector<8x384xf32>
    %388 = arith.negf %387 : vector<8x384xf32>
    %389 = math.exp %388 : vector<8x384xf32>
    %cst_132 = arith.constant 1.000000e+00 : f32
    %390 = vector.broadcast %cst_132 : f32 to vector<8x384xf32>
    %391 = arith.addf %390, %389 : vector<8x384xf32>
    %392 = arith.divf %390, %391 : vector<8x384xf32>
    %393 = vector.extract_strided_slice %386 {offsets = [0, 384], sizes = [8, 128], strides = [1, 1]} : vector<8x512xf32> to vector<8x128xf32>
    %394 = math.tanh %393 : vector<8x128xf32>
    %395 = vector.extract_strided_slice %392 {offsets = [0, 128], sizes = [8, 128], strides = [1, 1]} : vector<8x384xf32> to vector<8x128xf32>
    %396 = arith.mulf %395, %376 : vector<8x128xf32>
    %397 = vector.extract_strided_slice %392 {offsets = [0, 0], sizes = [8, 128], strides = [1, 1]} : vector<8x384xf32> to vector<8x128xf32>
    %398 = arith.mulf %397, %394 : vector<8x128xf32>
    %399 = arith.addf %396, %398 : vector<8x128xf32>
    %400 = vector.extract_strided_slice %392 {offsets = [0, 256], sizes = [8, 128], strides = [1, 1]} : vector<8x384xf32> to vector<8x128xf32>
    %401 = math.tanh %399 : vector<8x128xf32>
    %402 = arith.mulf %400, %401 : vector<8x128xf32>
    %c8_i32_133 = arith.constant 8 : i32
    %c0_134 = arith.constant 0 : index
    %c0_135 = arith.constant 0 : index
    %403 = vector.load %arg8[%c0_134, %c0_135] : memref<128x128xf32, #tpu.memory_space<vmem>>, vector<128x128xf32>
    %cst_136 = arith.constant dense<0.000000e+00> : vector<8x128xf32>
    %404 = tpu.matmul %402, %403, %cst_136 {dimension_numbers = #tpu.dot_dimension_numbers<[1], [0], [0], [1], [0, 0, 1, 1], [], []>} : vector<8x128xf32>, vector<128x128xf32>, vector<8x128xf32> -> vector<8x128xf32>
    %c0_137 = arith.constant 0 : index
    %c0_138 = arith.constant 0 : index
    %405 = vector.load %arg9[%c0_137, %c0_138] : memref<1x128xf32, #tpu.memory_space<vmem>>, vector<1x128xf32>
    %406 = vector.broadcast %405 : vector<1x128xf32> to vector<8x128xf32>
    %407 = arith.addf %404, %406 : vector<8x128xf32>
    %c0_139 = arith.constant 0 : index
    %c0_140 = arith.constant 0 : index
    %408 = vector.load %arg10[%c0_139, %c0_140] : memref<8x128xf32, #tpu.memory_space<vmem>>, vector<8x128xf32>
    tpu.vector_store %arg10[%c0_139, %c0_140], %407 {strides = array<i32>} : memref<8x128xf32, #tpu.memory_space<vmem>>, vector<8x128xf32>,
    return
  }
  func.func @transform_0(%arg0: i32) -> (i32, i32, i32) {
    %c0_i32 = arith.constant 0 : i32
    %c0_i32_0 = arith.constant 0 : i32
    %c0_i32_1 = arith.constant 0 : i32
    return %arg0, %c0_i32, %c0_i32_0 : i32, i32, i32
  }
  func.func @transform_1(%arg0: i32) -> (i32, i32) {
    %c0_i32 = arith.constant 0 : i32
    %c0_i32_0 = arith.constant 0 : i32
    %c0_i32_1 = arith.constant 0 : i32
    return %c0_i32, %c0_i32_0 : i32, i32
  }
  func.func @transform_2(%arg0: i32) -> (i32, i32) {
    %c0_i32 = arith.constant 0 : i32
    %c0_i32_0 = arith.constant 0 : i32
    %c0_i32_1 = arith.constant 0 : i32
    return %c0_i32, %c0_i32_0 : i32, i32
  }
  func.func @transform_3(%arg0: i32) -> (i32, i32) {
    %c0_i32 = arith.constant 0 : i32
    %c0_i32_0 = arith.constant 0 : i32
    %c0_i32_1 = arith.constant 0 : i32
    return %c0_i32, %c0_i32_0 : i32, i32
  }
  func.func @transform_4(%arg0: i32) -> (i32, i32) {
    %c0_i32 = arith.constant 0 : i32
    %c0_i32_0 = arith.constant 0 : i32
    %c0_i32_1 = arith.constant 0 : i32
    return %c0_i32, %c0_i32_0 : i32, i32
  }
  func.func @transform_5(%arg0: i32) -> (i32, i32) {
    %c0_i32 = arith.constant 0 : i32
    %c0_i32_0 = arith.constant 0 : i32
    %c0_i32_1 = arith.constant 0 : i32
    return %c0_i32, %c0_i32_0 : i32, i32
  }
  func.func @transform_6(%arg0: i32) -> (i32, i32) {
    %c0_i32 = arith.constant 0 : i32
    %c0_i32_0 = arith.constant 0 : i32
    %c0_i32_1 = arith.constant 0 : i32
    return %c0_i32, %c0_i32_0 : i32, i32
  }
  func.func @transform_7(%arg0: i32) -> (i32, i32) {
    %c0_i32 = arith.constant 0 : i32
    %c0_i32_0 = arith.constant 0 : i32
    %c0_i32_1 = arith.constant 0 : i32
    return %c0_i32, %c0_i32_0 : i32, i32
  }
  func.func @transform_8(%arg0: i32) -> (i32, i32) {
    %c0_i32 = arith.constant 0 : i32
    %c0_i32_0 = arith.constant 0 : i32
    %c0_i32_1 = arith.constant 0 : i32
    return %c0_i32, %c0_i32_0 : i32, i32
  }
  func.func @transform_9(%arg0: i32) -> (i32, i32) {
    %c0_i32 = arith.constant 0 : i32
    %c0_i32_0 = arith.constant 0 : i32
    return %arg0, %c0_i32 : i32, i32
  }
}

</mosaic_0001>

<llo_original>
// kernel: lstm_model_forward.1
$region0: #{lstm_model_forward.1}
  #allocation0 [shape = 'u32[]', space=smem, size = 0x4, offset = 0x4, fixed_abs, tag = 'smem constant byte address 0x4 - core index']
  #allocation1 [shape = 'u32[72,128]{1,0:T(1,128)}', space=vmem, size = 0x9000, scoped, tag = 'internal scratch']
  #allocation2 [shape = 'f32[64,128]{1,0:T(8,128)}', space=vmem, size = 0x8000, scoped, tag = 'scratch operand']
  #allocation3 [shape = 'f32[64,512]{1,0:T(8,128)}', space=vmem, size = 0x20000, scoped, tag = 'scratch operand']
  %s0 = inlined_call_operand.vmem [shape: f32[1,64,16], index: 0, kind: input, shape index: {}]
  %s1 = inlined_call_operand.vmem [shape: f32[16,512], index: 1, kind: input, shape index: {}]
  %s2 = inlined_call_operand.hbm [shape: f32[128,512], index: 2, kind: input, shape index: {}]
  %s3 = inlined_call_operand.vmem [shape: f32[1,512], index: 3, kind: input, shape index: {}]
  %s4 = inlined_call_operand.hbm [shape: f32[128,512], index: 4, kind: input, shape index: {}]
  %s5 = inlined_call_operand.hbm [shape: f32[128,512], index: 5, kind: input, shape index: {}]
  %s6 = inlined_call_operand.vmem [shape: f32[1,512], index: 6, kind: input, shape index: {}]
  %s7 = inlined_call_operand.hbm [shape: f32[128,128], index: 7, kind: input, shape index: {}]
  %s8 = inlined_call_operand.vmem [shape: f32[1,128], index: 8, kind: input, shape index: {}]
  %s9 = inlined_call_operand.vmem [shape: f32[8,128], index: 9, kind: output, shape index: {}]
  %s10 = sld [smem:[#allocation0]]
  $region62: #{lstm_model_forward.1} parent=0
    _
  %s12 = ssub.s32 1, %s10
  %s13 = scalar_select 0, %s12, %s10
  $region1: #{lstm_model_forward.1} parent=0
    #allocation4 [shape = 'u8[262144]{0}', space=vmem, size = 0x40000, scoped, tag = 'input window, operand 2, single buffered']
    #allocation5 [shape = 's32[1]{0}', space=sflag, size = 0x4, scoped, tag = 'scoped memory for lstm_model_forward.1']
    #allocation6 [shape = 'u8[262144]{0}', space=vmem, size = 0x40000, scoped, tag = 'input window, operand 4, single buffered']
    #allocation7 [shape = 's32[1]{0}', space=sflag, size = 0x4, scoped, tag = 'scoped memory for lstm_model_forward.1']
    #allocation8 [shape = 'u8[262144]{0}', space=vmem, size = 0x40000, scoped, tag = 'input window, operand 5, single buffered']
    #allocation9 [shape = 'u8[65536]{0}', space=vmem, size = 0x10000, scoped, tag = 'input window, operand 7, single buffered']
    #allocation10 [shape = 's32[1]{0}', space=sflag, size = 0x4, scoped, tag = 'scoped memory for lstm_model_forward.1']
    %14 = vsyncpa [#allocation5], 0
    %15 = vsyncpa [#allocation7], 0
    %16 = vsyncpa [#allocation10], 0
    // Predicated region
    $region2: #{lstm_model_forward.1} parent=1 // pred_check
      _
    $region3: #{lstm_model_forward.1} parent=1 // pred_check_branch
      %18 = sbr.rel (0) target = $region5
    $region4: #{lstm_model_forward.1} parent=1 // pred_region
      _
    $region5: #{lstm_model_forward.1} parent=1 // pred_fallthru
      _
    // Predicated region
    $region6: #{lstm_model_forward.1} parent=1 // pred_check
      _
    $region7: #{lstm_model_forward.1} parent=1 // pred_check_branch
      %20 = sbr.rel (0) target = $region9
    $region8: #{lstm_model_forward.1} parent=1 // pred_region
      _
    $region9: #{lstm_model_forward.1} parent=1 // pred_fallthru
      _
    // Predicated region
    $region10: #{lstm_model_forward.1} parent=1 // pred_check
      _
    $region11: #{lstm_model_forward.1} parent=1 // pred_check_branch
      %22 = sbr.rel (0) target = $region13
    $region12: #{lstm_model_forward.1} parent=1 // pred_region
      %24 = vsyncadd [#allocation5], 0
      %s25 = sshll.u32 %s2, 4
      %s26 = int_to_ptr.hbm [resolvable:$true] %s25
      %s27 = sshll.u32 [#allocation4], 4
      %s28 = int_to_ptr.vmem [resolvable:$true] %s27
      %33 = dma.hbm_to_vmem [thread:$0]  %s26, 8192, %s28, [#allocation5], 512, 512, 32
    $region13: #{lstm_model_forward.1} parent=1 // pred_fallthru
      _
    // Predicated region
    $region14: #{lstm_model_forward.1} parent=1 // pred_check
      _
    $region15: #{lstm_model_forward.1} parent=1 // pred_check_branch
      %35 = sbr.rel (0) target = $region17
    $region16: #{lstm_model_forward.1} parent=1 // pred_region
      _
    $region17: #{lstm_model_forward.1} parent=1 // pred_fallthru
      _
    // Predicated region
    $region18: #{lstm_model_forward.1} parent=1 // pred_check
      _
    $region19: #{lstm_model_forward.1} parent=1 // pred_check_branch
      %37 = sbr.rel (0) target = $region21
    $region20: #{lstm_model_forward.1} parent=1 // pred_region
      %39 = vsyncadd [#allocation7], 0
      %s40 = sshll.u32 %s4, 4
      %s41 = int_to_ptr.hbm [resolvable:$true] %s40
      %s42 = sshll.u32 [#allocation6], 4
      %s43 = int_to_ptr.vmem [resolvable:$true] %s42
      %48 = dma.hbm_to_vmem [thread:$0]  %s41, 8192, %s43, [#allocation7], 512, 512, 32
    $region21: #{lstm_model_forward.1} parent=1 // pred_fallthru
      _
    // Predicated region
    $region22: #{lstm_model_forward.1} parent=1 // pred_check
      _
    $region23: #{lstm_model_forward.1} parent=1 // pred_check_branch
      %50 = sbr.rel (0) target = $region25
    $region24: #{lstm_model_forward.1} parent=1 // pred_region
      %52 = vsyncadd [#allocation7], 0
      %s53 = sshll.u32 %s5, 4
      %s54 = int_to_ptr.hbm [resolvable:$true] %s53
      %s55 = sshll.u32 [#allocation8], 4
      %s56 = int_to_ptr.vmem [resolvable:$true] %s55
      %61 = dma.hbm_to_vmem [thread:$0]  %s54, 8192, %s56, [#allocation7], 512, 512, 32
    $region25: #{lstm_model_forward.1} parent=1 // pred_fallthru
      _
    // Predicated region
    $region26: #{lstm_model_forward.1} parent=1 // pred_check
      _
    $region27: #{lstm_model_forward.1} parent=1 // pred_check_branch
      %63 = sbr.rel (0) target = $region29
    $region28: #{lstm_model_forward.1} parent=1 // pred_region
      _
    $region29: #{lstm_model_forward.1} parent=1 // pred_fallthru
      _
    // Predicated region
    $region30: #{lstm_model_forward.1} parent=1 // pred_check
      _
    $region31: #{lstm_model_forward.1} parent=1 // pred_check_branch
      %65 = sbr.rel (0) target = $region33
    $region32: #{lstm_model_forward.1} parent=1 // pred_region
      %67 = vsyncadd [#allocation10], 0
      %s68 = sshll.u32 %s7, 4
      %s69 = int_to_ptr.hbm [resolvable:$true] %s68
      %s70 = sshll.u32 [#allocation9], 4
      %s71 = int_to_ptr.vmem [resolvable:$true] %s70
      %76 = dma.hbm_to_vmem [thread:$0]  %s69, 2048, %s71, [#allocation10], 128, 128, 8
    $region33: #{lstm_model_forward.1} parent=1 // pred_fallthru
      _
    // Predicated region
    $region34: #{lstm_model_forward.1} parent=1 // pred_check
      _
    $region35: #{lstm_model_forward.1} parent=1 // pred_check_branch
      %78 = sbr.rel (0) target = $region37
    $region36: #{lstm_model_forward.1} parent=1 // pred_region
      _
    $region37: #{lstm_model_forward.1} parent=1 // pred_fallthru
      _
    // Predicated region
    $region38: #{lstm_model_forward.1} parent=1 // pred_check
      _
    $region39: #{lstm_model_forward.1} parent=1 // pred_check_branch
      %80 = sbr.rel (0) target = $region41
    $region40: #{lstm_model_forward.1} parent=1 // pred_region
      %82 = dma.done [#allocation5], 8192
    $region41: #{lstm_model_forward.1} parent=1 // pred_fallthru
      _
    // Predicated region
    $region42: #{lstm_model_forward.1} parent=1 // pred_check
      _
    $region43: #{lstm_model_forward.1} parent=1 // pred_check_branch
      %84 = sbr.rel (0) target = $region45
    $region44: #{lstm_model_forward.1} parent=1 // pred_region
      %86 = dma.done [#allocation7], 8192
    $region45: #{lstm_model_forward.1} parent=1 // pred_fallthru
      _
    // Predicated region
    $region46: #{lstm_model_forward.1} parent=1 // pred_check
      _
    $region47: #{lstm_model_forward.1} parent=1 // pred_check_branch
      %88 = sbr.rel (0) target = $region49
    $region48: #{lstm_model_forward.1} parent=1 // pred_region
      %90 = dma.done [#allocation7], 8192
    $region49: #{lstm_model_forward.1} parent=1 // pred_fallthru
      _
    // Predicated region
    $region50: #{lstm_model_forward.1} parent=1 // pred_check
      _
    $region51: #{lstm_model_forward.1} parent=1 // pred_check_branch
      %92 = sbr.rel (0) target = $region53
    $region52: #{lstm_model_forward.1} parent=1 // pred_region
      %94 = dma.done [#allocation10], 2048
    $region53: #{lstm_model_forward.1} parent=1 // pred_fallthru
      _
    %v95 = vld [vmem:[%s0] sm:$0xff]
    %v96 = vld [vmem:[%s0 + $0x8] sm:$0xff]
    %v97 = vld [vmem:[%s0 + $0x10] sm:$0xff]
    %v98 = vld [vmem:[%s0 + $0x18] sm:$0xff]
    %v99 = vld [vmem:[%s0 + $0x20] sm:$0xff]
    %v100 = vld [vmem:[%s0 + $0x28] sm:$0xff]
    %v101 = vld [vmem:[%s0 + $0x30] sm:$0xff]
    %v102 = vld [vmem:[%s0 + $0x38] sm:$0xff]
    %v103 = vld [vmem:[%s1] sm:$0xff]
    %v104 = vld [vmem:[%s1 + $0x8] sm:$0xff]
    %v105 = vld [vmem:[%s1 + $0x10] sm:$0xff]
    %v106 = vld [vmem:[%s1 + $0x18] sm:$0xff]
    %v107 = vld [vmem:[%s1 + $0x20] sm:$0xff]
    %v108 = vld [vmem:[%s1 + $0x28] sm:$0xff]
    %v109 = vld [vmem:[%s1 + $0x30] sm:$0xff]
    %v110 = vld [vmem:[%s1 + $0x38] sm:$0xff]
    %v111 = vld [vmem:[%s3] sm:$0xf]
    %v113 = vperm.slane %v111, 0
    %v114 = vperm.slane %v111, 1
    %v115 = vperm.slane %v111, 2
    %v116 = vperm.slane %v111, 3
    %vm121 = vcmask 130048
    %v123 = vsel %vm121, %v95, 0
    %v126 = vsel %vm121, %v96, 0
    %v129 = vsel %vm121, %v97, 0
    %v132 = vsel %vm121, %v98, 0
    %v135 = vsel %vm121, %v99, 0
    %v138 = vsel %vm121, %v100, 0
    %v141 = vsel %vm121, %v101, 0
    %v144 = vsel %vm121, %v102, 0
    %146 = vmatpush.msra.mxu0 0.0
    %147 = vmatpush.msra.mxu0 0.0
    %148 = vmatpush.msra.mxu0 0.0
    %149 = vmatpush.msra.mxu0 0.0
    %150 = vmatpush.msra.mxu0 0.0
    %151 = vmatpush.msra.mxu0 0.0
    %152 = vmatpush.msra.mxu0 0.0
    %153 = vmatpush.msra.mxu0 0.0
    %154 = vmatpush.msra.mxu0 0.0
    %155 = vmatpush.msra.mxu0 0.0
    %156 = vmatpush.msra.mxu0 0.0
    %157 = vmatpush.msra.mxu0 0.0
    %158 = vmatpush.msra.mxu0 0.0
    %159 = vmatpush.msra.mxu0 0.0
    %160 = vmatpush.msra.mxu0 %v107
    %161 = vmatpush.msra.mxu0 %v103
    %162 = vmatmul.f32.gmra.mxu0 %v123
    %v163 = vpop.f32.mrf.mxu0
    %v164 = vadd.f32 %v113, %v163
    %165 = vmatmul.f32.gmra.mxu0 %v126
    %v166 = vpop.f32.mrf.mxu0
    %v167 = vadd.f32 %v113, %v166
    %168 = vmatmul.f32.gmra.mxu0 %v129
    %v169 = vpop.f32.mrf.mxu0
    %v170 = vadd.f32 %v113, %v169
    %171 = vmatmul.f32.gmra.mxu0 %v132
    %v172 = vpop.f32.mrf.mxu0
    %v173 = vadd.f32 %v113, %v172
    %174 = vmatmul.f32.gmra.mxu0 %v135
    %v175 = vpop.f32.mrf.mxu0
    %v176 = vadd.f32 %v113, %v175
    %177 = vmatmul.f32.gmra.mxu0 %v138
    %v178 = vpop.f32.mrf.mxu0
    %v179 = vadd.f32 %v113, %v178
    %180 = vmatmul.f32.gmra.mxu0 %v141
    %v181 = vpop.f32.mrf.mxu0
    %v182 = vadd.f32 %v113, %v181
    %183 = vmatmul.f32.gmra.mxu0 %v144
    %v184 = vpop.f32.mrf.mxu0
    %v185 = vadd.f32 %v113, %v184
    %186 = vdwg.mxu0
    %187 = vmatpush.msra.mxu0 0.0
    %188 = vmatpush.msra.mxu0 0.0
    %189 = vmatpush.msra.mxu0 0.0
    %190 = vmatpush.msra.mxu0 0.0
    %191 = vmatpush.msra.mxu0 0.0
    %192 = vmatpush.msra.mxu0 0.0
    %193 = vmatpush.msra.mxu0 0.0
    %194 = vmatpush.msra.mxu0 0.0
    %195 = vmatpush.msra.mxu0 0.0
    %196 = vmatpush.msra.mxu0 0.0
    %197 = vmatpush.msra.mxu0 0.0
    %198 = vmatpush.msra.mxu0 0.0
    %199 = vmatpush.msra.mxu0 0.0
    %200 = vmatpush.msra.mxu0 0.0
    %201 = vmatpush.msra.mxu0 %v108
    %202 = vmatpush.msra.mxu0 %v104
    %203 = vmatmul.f32.gmra.mxu0 %v123
    %v204 = vpop.f32.mrf.mxu0
    %v205 = vadd.f32 %v114, %v204
    %206 = vmatmul.f32.gmra.mxu0 %v126
    %v207 = vpop.f32.mrf.mxu0
    %v208 = vadd.f32 %v114, %v207
    %209 = vmatmul.f32.gmra.mxu0 %v129
    %v210 = vpop.f32.mrf.mxu0
    %v211 = vadd.f32 %v114, %v210
    %212 = vmatmul.f32.gmra.mxu0 %v132
    %v213 = vpop.f32.mrf.mxu0
    %v214 = vadd.f32 %v114, %v213
    %215 = vmatmul.f32.gmra.mxu0 %v135
    %v216 = vpop.f32.mrf.mxu0
    %v217 = vadd.f32 %v114, %v216
    %218 = vmatmul.f32.gmra.mxu0 %v138
    %v219 = vpop.f32.mrf.mxu0
    %v220 = vadd.f32 %v114, %v219
    %221 = vmatmul.f32.gmra.mxu0 %v141
    %v222 = vpop.f32.mrf.mxu0
    %v223 = vadd.f32 %v114, %v222
    %224 = vmatmul.f32.gmra.mxu0 %v144
    %v225 = vpop.f32.mrf.mxu0
    %v226 = vadd.f32 %v114, %v225
    %227 = vdwg.mxu0
    %228 = vmatpush.msra.mxu0 0.0
    %229 = vmatpush.msra.mxu0 0.0
    %230 = vmatpush.msra.mxu0 0.0
    %231 = vmatpush.msra.mxu0 0.0
    %232 = vmatpush.msra.mxu0 0.0
    %233 = vmatpush.msra.mxu0 0.0
    %234 = vmatpush.msra.mxu0 0.0
    %235 = vmatpush.msra.mxu0 0.0
    %236 = vmatpush.msra.mxu0 0.0
    %237 = vmatpush.msra.mxu0 0.0
    %238 = vmatpush.msra.mxu0 0.0
    %239 = vmatpush.msra.mxu0 0.0
    %240 = vmatpush.msra.mxu0 0.0
    %241 = vmatpush.msra.mxu0 0.0
    %242 = vmatpush.msra.mxu0 %v109
    %243 = vmatpush.msra.mxu0 %v105
    %244 = vmatmul.f32.gmra.mxu0 %v123
    %v245 = vpop.f32.mrf.mxu0
    %v246 = vadd.f32 %v115, %v245
    %247 = vmatmul.f32.gmra.mxu0 %v126
    %v248 = vpop.f32.mrf.mxu0
    %v249 = vadd.f32 %v115, %v248
    %250 = vmatmul.f32.gmra.mxu0 %v129
    %v251 = vpop.f32.mrf.mxu0
    %v252 = vadd.f32 %v115, %v251
    %253 = vmatmul.f32.gmra.mxu0 %v132
    %v254 = vpop.f32.mrf.mxu0
    %v255 = vadd.f32 %v115, %v254
    %256 = vmatmul.f32.gmra.mxu0 %v135
    %v257 = vpop.f32.mrf.mxu0
    %v258 = vadd.f32 %v115, %v257
    %259 = vmatmul.f32.gmra.mxu0 %v138
    %v260 = vpop.f32.mrf.mxu0
    %v261 = vadd.f32 %v115, %v260
    %262 = vmatmul.f32.gmra.mxu0 %v141
    %v263 = vpop.f32.mrf.mxu0
    %v264 = vadd.f32 %v115, %v263
    %265 = vmatmul.f32.gmra.mxu0 %v144
    %v266 = vpop.f32.mrf.mxu0
    %v267 = vadd.f32 %v115, %v266
    %268 = vdwg.mxu0
    %269 = vmatpush.msra.mxu0 0.0
    %270 = vmatpush.msra.mxu0 0.0
    %271 = vmatpush.msra.mxu0 0.0
    %272 = vmatpush.msra.mxu0 0.0
    %273 = vmatpush.msra.mxu0 0.0
    %274 = vmatpush.msra.mxu0 0.0
    %275 = vmatpush.msra.mxu0 0.0
    %276 = vmatpush.msra.mxu0 0.0
    %277 = vmatpush.msra.mxu0 0.0
    %278 = vmatpush.msra.mxu0 0.0
    %279 = vmatpush.msra.mxu0 0.0
    %280 = vmatpush.msra.mxu0 0.0
    %281 = vmatpush.msra.mxu0 0.0
    %282 = vmatpush.msra.mxu0 0.0
    %283 = vmatpush.msra.mxu0 %v110
    %284 = vmatpush.msra.mxu0 %v106
    %285 = vmatmul.f32.gmra.mxu0 %v123
    %v286 = vpop.f32.mrf.mxu0
    %v287 = vadd.f32 %v116, %v286
    %288 = vmatmul.f32.gmra.mxu0 %v126
    %v289 = vpop.f32.mrf.mxu0
    %v290 = vadd.f32 %v116, %v289
    %291 = vmatmul.f32.gmra.mxu0 %v129
    %v292 = vpop.f32.mrf.mxu0
    %v293 = vadd.f32 %v116, %v292
    %294 = vmatmul.f32.gmra.mxu0 %v132
    %v295 = vpop.f32.mrf.mxu0
    %v296 = vadd.f32 %v116, %v295
    %297 = vmatmul.f32.gmra.mxu0 %v135
    %v298 = vpop.f32.mrf.mxu0
    %v299 = vadd.f32 %v116, %v298
    %300 = vmatmul.f32.gmra.mxu0 %v138
    %v301 = vpop.f32.mrf.mxu0
    %v302 = vadd.f32 %v116, %v301
    %303 = vmatmul.f32.gmra.mxu0 %v141
    %v304 = vpop.f32.mrf.mxu0
    %v305 = vadd.f32 %v116, %v304
    %306 = vmatmul.f32.gmra.mxu0 %v144
    %v307 = vpop.f32.mrf.mxu0
    %v308 = vadd.f32 %v116, %v307
    %309 = vdwg.mxu0
    %310 = vst [vmem:[#allocation3] sm:$0xff] %v164
    %311 = vst [vmem:[#allocation3 + $0x8] sm:$0xff] %v205
    %312 = vst [vmem:[#allocation3 + $0x10] sm:$0xff] %v246
    %313 = vst [vmem:[#allocation3 + $0x18] sm:$0xff] %v287
    %314 = vst [vmem:[#allocation3 + $0x20] sm:$0xff] %v167
    %315 = vst [vmem:[#allocation3 + $0x28] sm:$0xff] %v208
    %316 = vst [vmem:[#allocation3 + $0x30] sm:$0xff] %v249
    %317 = vst [vmem:[#allocation3 + $0x38] sm:$0xff] %v290
    %318 = vst [vmem:[#allocation3 + $0x40] sm:$0xff] %v170
    %319 = vst [vmem:[#allocation3 + $0x48] sm:$0xff] %v211
    %320 = vst [vmem:[#allocation3 + $0x50] sm:$0xff] %v252
    %321 = vst [vmem:[#allocation3 + $0x58] sm:$0xff] %v293
    %322 = vst [vmem:[#allocation3 + $0x60] sm:$0xff] %v173
    %323 = vst [vmem:[#allocation3 + $0x68] sm:$0xff] %v214
    %324 = vst [vmem:[#allocation3 + $0x70] sm:$0xff] %v255
    %325 = vst [vmem:[#allocation3 + $0x78] sm:$0xff] %v296
    %326 = vst [vmem:[#allocation3 + $0x80] sm:$0xff] %v176
    %327 = vst [vmem:[#allocation3 + $0x88] sm:$0xff] %v217
    %328 = vst [vmem:[#allocation3 + $0x90] sm:$0xff] %v258
    %329 = vst [vmem:[#allocation3 + $0x98] sm:$0xff] %v299
    %330 = vst [vmem:[#allocation3 + $0xa0] sm:$0xff] %v179
    %331 = vst [vmem:[#allocation3 + $0xa8] sm:$0xff] %v220
    %332 = vst [vmem:[#allocation3 + $0xb0] sm:$0xff] %v261
    %333 = vst [vmem:[#allocation3 + $0xb8] sm:$0xff] %v302
    %334 = vst [vmem:[#allocation3 + $0xc0] sm:$0xff] %v182
    %335 = vst [vmem:[#allocation3 + $0xc8] sm:$0xff] %v223
    %336 = vst [vmem:[#allocation3 + $0xd0] sm:$0xff] %v264
    %337 = vst [vmem:[#allocation3 + $0xd8] sm:$0xff] %v305
    %338 = vst [vmem:[#allocation3 + $0xe0] sm:$0xff] %v185
    %339 = vst [vmem:[#allocation3 + $0xe8] sm:$0xff] %v226
    %340 = vst [vmem:[#allocation3 + $0xf0] sm:$0xff] %v267
    %341 = vst [vmem:[#allocation3 + $0xf8] sm:$0xff] %v308
    %s342 = smul.u32 0, 4
    %s343 = smul.addr %s342, 8
    %s344 = scalar_lea.vmem [#allocation3], %s343
    %v345 = vld [vmem:[%s344] sm:$0xff]
    %v346 = vld [vmem:[%s344 + $0x8] sm:$0xff]
    %v347 = vld [vmem:[%s344 + $0x10] sm:$0xff]
    %v348 = vld [vmem:[%s344 + $0x18] sm:$0xff]
    %v349 = vld [vmem:[#allocation4] sm:$0xff]
    %v350 = vld [vmem:[#allocation4 + $0x8] sm:$0xff]
    %v351 = vld [vmem:[#allocation4 + $0x10] sm:$0xff]
    %v352 = vld [vmem:[#allocation4 + $0x18] sm:$0xff]
    %v353 = vld [vmem:[#allocation4 + $0x20] sm:$0xff]
    %v354 = vld [vmem:[#allocation4 + $0x28] sm:$0xff]
    %v355 = vld [vmem:[#allocation4 + $0x30] sm:$0xff]
    %v356 = vld [vmem:[#allocation4 + $0x38] sm:$0xff]
    %v357 = vld [vmem:[#allocation4 + $0x40] sm:$0xff]
    %v358 = vld [vmem:[#allocation4 + $0x48] sm:$0xff]
    %v359 = vld [vmem:[#allocation4 + $0x50] sm:$0xff]
    %v360 = vld [vmem:[#allocation4 + $0x58] sm:$0xff]
    %v361 = vld [vmem:[#allocation4 + $0x60] sm:$0xff]
    %v362 = vld [vmem:[#allocation4 + $0x68] sm:$0xff]
    %v363 = vld [vmem:[#allocation4 + $0x70] sm:$0xff]
    %v364 = vld [vmem:[#allocation4 + $0x78] sm:$0xff]
    %v365 = vld [vmem:[#allocation4 + $0x80] sm:$0xff]
    %v366 = vld [vmem:[#allocation4 + $0x88] sm:$0xff]
    %v367 = vld [vmem:[#allocation4 + $0x90] sm:$0xff]
    %v368 = vld [vmem:[#allocation4 + $0x98] sm:$0xff]
    %v369 = vld [vmem:[#allocation4 + $0xa0] sm:$0xff]
    %v370 = vld [vmem:[#allocation4 + $0xa8] sm:$0xff]
    %v371 = vld [vmem:[#allocation4 + $0xb0] sm:$0xff]
    %v372 = vld [vmem:[#allocation4 + $0xb8] sm:$0xff]
    %v373 = vld [vmem:[#allocation4 + $0xc0] sm:$0xff]
    %v374 = vld [vmem:[#allocation4 + $0xc8] sm:$0xff]
    %v375 = vld [vmem:[#allocation4 + $0xd0] sm:$0xff]
    %v376 = vld [vmem:[#allocation4 + $0xd8] sm:$0xff]
    %v377 = vld [vmem:[#allocation4 + $0xe0] sm:$0xff]
    %v378 = vld [vmem:[#allocation4 + $0xe8] sm:$0xff]
    %v379 = vld [vmem:[#allocation4 + $0xf0] sm:$0xff]
    %v380 = vld [vmem:[#allocation4 + $0xf8] sm:$0xff]
    %v381 = vld [vmem:[#allocation4 + $0x100] sm:$0xff]
    %v382 = vld [vmem:[#allocation4 + $0x108] sm:$0xff]
    %v383 = vld [vmem:[#allocation4 + $0x110] sm:$0xff]
    %v384 = vld [vmem:[#allocation4 + $0x118] sm:$0xff]
    %v385 = vld [vmem:[#allocation4 + $0x120] sm:$0xff]
    %v386 = vld [vmem:[#allocation4 + $0x128] sm:$0xff]
    %v387 = vld [vmem:[#allocation4 + $0x130] sm:$0xff]
    %v388 = vld [vmem:[#allocation4 + $0x138] sm:$0xff]
    %v389 = vld [vmem:[#allocation4 + $0x140] sm:$0xff]
    %v390 = vld [vmem:[#allocation4 + $0x148] sm:$0xff]
    %v391 = vld [vmem:[#allocation4 + $0x150] sm:$0xff]
    %v392 = vld [vmem:[#allocation4 + $0x158] sm:$0xff]
    %v393 = vld [vmem:[#allocation4 + $0x160] sm:$0xff]
    %v394 = vld [vmem:[#allocation4 + $0x168] sm:$0xff]
    %v395 = vld [vmem:[#allocation4 + $0x170] sm:$0xff]
    %v396 = vld [vmem:[#allocation4 + $0x178] sm:$0xff]
    %v397 = vld [vmem:[#allocation4 + $0x180] sm:$0xff]
    %v398 = vld [vmem:[#allocation4 + $0x188] sm:$0xff]
    %v399 = vld [vmem:[#allocation4 + $0x190] sm:$0xff]
    %v400 = vld [vmem:[#allocation4 + $0x198] sm:$0xff]
    %v401 = vld [vmem:[#allocation4 + $0x1a0] sm:$0xff]
    %v402 = vld [vmem:[#allocation4 + $0x1a8] sm:$0xff]
    %v403 = vld [vmem:[#allocation4 + $0x1b0] sm:$0xff]
    %v404 = vld [vmem:[#allocation4 + $0x1b8] sm:$0xff]
    %v405 = vld [vmem:[#allocation4 + $0x1c0] sm:$0xff]
    %v406 = vld [vmem:[#allocation4 + $0x1c8] sm:$0xff]
    %v407 = vld [vmem:[#allocation4 + $0x1d0] sm:$0xff]
    %v408 = vld [vmem:[#allocation4 + $0x1d8] sm:$0xff]
    %v409 = vld [vmem:[#allocation4 + $0x1e0] sm:$0xff]
    %v410 = vld [vmem:[#allocation4 + $0x1e8] sm:$0xff]
    %v411 = vld [vmem:[#allocation4 + $0x1f0] sm:$0xff]
    %v412 = vld [vmem:[#allocation4 + $0x1f8] sm:$0xff]
    %413 = vmatpush.msra.mxu0 %v409
    %414 = vmatpush.msra.mxu0 %v405
    %415 = vmatpush.msra.mxu0 %v401
    %416 = vmatpush.msra.mxu0 %v397
    %417 = vmatpush.msra.mxu0 %v393
    %418 = vmatpush.msra.mxu0 %v389
    %419 = vmatpush.msra.mxu0 %v385
    %420 = vmatpush.msra.mxu0 %v381
    %421 = vmatpush.msra.mxu0 %v377
    %422 = vmatpush.msra.mxu0 %v373
    %423 = vmatpush.msra.mxu0 %v369
    %424 = vmatpush.msra.mxu0 %v365
    %425 = vmatpush.msra.mxu0 %v361
    %426 = vmatpush.msra.mxu0 %v357
    %427 = vmatpush.msra.mxu0 %v353
    %428 = vmatpush.msra.mxu0 %v349
    %429 = vmatmul.f32.gmra.mxu0 0.0
    %v430 = vpop.f32.mrf.mxu0
    %v431 = vadd.f32 0.0, %v430
    %432 = vdwg.mxu0
    %433 = vmatpush.msra.mxu0 %v410
    %434 = vmatpush.msra.mxu0 %v406
    %435 = vmatpush.msra.mxu0 %v402
    %436 = vmatpush.msra.mxu0 %v398
    %437 = vmatpush.msra.mxu0 %v394
    %438 = vmatpush.msra.mxu0 %v390
    %439 = vmatpush.msra.mxu0 %v386
    %440 = vmatpush.msra.mxu0 %v382
    %441 = vmatpush.msra.mxu0 %v378
    %442 = vmatpush.msra.mxu0 %v374
    %443 = vmatpush.msra.mxu0 %v370
    %444 = vmatpush.msra.mxu0 %v366
    %445 = vmatpush.msra.mxu0 %v362
    %446 = vmatpush.msra.mxu0 %v358
    %447 = vmatpush.msra.mxu0 %v354
    %448 = vmatpush.msra.mxu0 %v350
    %449 = vmatmul.f32.gmra.mxu0 0.0
    %v450 = vpop.f32.mrf.mxu0
    %v451 = vadd.f32 0.0, %v450
    %452 = vdwg.mxu0
    %453 = vmatpush.msra.mxu0 %v411
    %454 = vmatpush.msra.mxu0 %v407
    %455 = vmatpush.msra.mxu0 %v403
    %456 = vmatpush.msra.mxu0 %v399
    %457 = vmatpush.msra.mxu0 %v395
    %458 = vmatpush.msra.mxu0 %v391
    %459 = vmatpush.msra.mxu0 %v387
    %460 = vmatpush.msra.mxu0 %v383
    %461 = vmatpush.msra.mxu0 %v379
    %462 = vmatpush.msra.mxu0 %v375
    %463 = vmatpush.msra.mxu0 %v371
    %464 = vmatpush.msra.mxu0 %v367
    %465 = vmatpush.msra.mxu0 %v363
    %466 = vmatpush.msra.mxu0 %v359
    %467 = vmatpush.msra.mxu0 %v355
    %468 = vmatpush.msra.mxu0 %v351
    %469 = vmatmul.f32.gmra.mxu0 0.0
    %v470 = vpop.f32.mrf.mxu0
    %v471 = vadd.f32 0.0, %v470
    %472 = vdwg.mxu0
    %473 = vmatpush.msra.mxu0 %v412
    %474 = vmatpush.msra.mxu0 %v408
    %475 = vmatpush.msra.mxu0 %v404
    %476 = vmatpush.msra.mxu0 %v400
    %477 = vmatpush.msra.mxu0 %v396
    %478 = vmatpush.msra.mxu0 %v392
    %479 = vmatpush.msra.mxu0 %v388
    %480 = vmatpush.msra.mxu0 %v384
    %481 = vmatpush.msra.mxu0 %v380
    %482 = vmatpush.msra.mxu0 %v376
    %483 = vmatpush.msra.mxu0 %v372
    %484 = vmatpush.msra.mxu0 %v368
    %485 = vmatpush.msra.mxu0 %v364
    %486 = vmatpush.msra.mxu0 %v360
    %487 = vmatpush.msra.mxu0 %v356
    %488 = vmatpush.msra.mxu0 %v352
    %489 = vmatmul.f32.gmra.mxu0 0.0
    %v490 = vpop.f32.mrf.mxu0
    %v491 = vadd.f32 0.0, %v490
    %492 = vdwg.mxu0
    %v493 = vadd.f32 %v345, %v431
    %v494 = vadd.f32 %v346, %v451
    %v495 = vadd.f32 %v347, %v471
    %v496 = vadd.f32 %v348, %v491
    %v497 = vxor.u32 %v493, 2147483648
    %v498 = vxor.u32 %v494, 2147483648
    %v499 = vxor.u32 %v495, 2147483648
    %v500 = vmul.f32 %v497, 1.442695
    %v501 = vpow.pop %v500
    %v502 = vmul.f32 %v498, 1.442695
    %v503 = vpow.pop %v502
    %v504 = vmul.f32 %v499, 1.442695
    %v505 = vpow.pop %v504
    %v506 = vadd.f32 %v501, 1.0
    %v507 = vadd.f32 %v503, 1.0
    %v508 = vadd.f32 %v505, 1.0
    %v509 = vrcp.pop %v506
    %v510 = vmul.f32 %v506, %v509
    %v511 = vsub.f32 1.0, %v510
    %v512 = vmul.f32 %v509, %v511
    %v513 = vadd.f32 %v509, %v512
    %vm514 = vweird.f32 %v506
    %vm515 = vweird.f32 %v509
    %vm516 = vmor %vm514, %vm515
    %v517 = vsel %vm516, %v509, %v513
    %v518 = vand.u32 2147483647, %v506
    %vm519 = vcmp.eq.f32.partialorder %v518, 8.507059e+37
    %v520 = vand.u32 %v506, 2147483648
    %v521 = vor.u32 1.1754944e-38, %v520
    %v522 = vsel %vm519, %v521, %v517
    %v523 = vmul.f32 1.0, %v522
    %v524 = vrcp.pop %v507
    %v525 = vmul.f32 %v507, %v524
    %v526 = vsub.f32 1.0, %v525
    %v527 = vmul.f32 %v524, %v526
    %v528 = vadd.f32 %v524, %v527
    %vm529 = vweird.f32 %v507
    %vm530 = vweird.f32 %v524
    %vm531 = vmor %vm529, %vm530
    %v532 = vsel %vm531, %v524, %v528
    %v533 = vand.u32 2147483647, %v507
    %vm534 = vcmp.eq.f32.partialorder %v533, 8.507059e+37
    %v535 = vand.u32 %v507, 2147483648
    %v536 = vor.u32 1.1754944e-38, %v535
    %v537 = vsel %vm534, %v536, %v532
    %v538 = vmul.f32 1.0, %v537
    %v539 = vrcp.pop %v508
    %v540 = vmul.f32 %v508, %v539
    %v541 = vsub.f32 1.0, %v540
    %v542 = vmul.f32 %v539, %v541
    %v543 = vadd.f32 %v539, %v542
    %vm544 = vweird.f32 %v508
    %vm545 = vweird.f32 %v539
    %vm546 = vmor %vm544, %vm545
    %v547 = vsel %vm546, %v539, %v543
    %v548 = vand.u32 2147483647, %v508
    %vm549 = vcmp.eq.f32.partialorder %v548, 8.507059e+37
    %v550 = vand.u32 %v508, 2147483648
    %v551 = vor.u32 1.1754944e-38, %v550
    %v552 = vsel %vm549, %v551, %v547
    %v553 = vmul.f32 1.0, %v552
    %v554 = vtanh.pop %v496
    %v555 = vmul.f32 %v538, 0.0
    %v556 = vmul.f32 %v523, %v554
    %v557 = vadd.f32 %v555, %v556
    %v558 = vtanh.pop %v557
    %v559 = vmul.f32 %v553, %v558
    %560 = vst [vmem:[#allocation2] sm:$0xff] %v559
    %s561 = smul.u32 1, 4
    %s562 = smul.addr %s561, 8
    %s563 = scalar_lea.vmem [#allocation3], %s562
    %v564 = vld [vmem:[%s563] sm:$0xff]
    %v565 = vld [vmem:[%s563 + $0x8] sm:$0xff]
    %v566 = vld [vmem:[%s563 + $0x10] sm:$0xff]
    %v567 = vld [vmem:[%s563 + $0x18] sm:$0xff]
    %v568 = vld [vmem:[#allocation4] sm:$0xff]
    %v569 = vld [vmem:[#allocation4 + $0x8] sm:$0xff]
    %v570 = vld [vmem:[#allocation4 + $0x10] sm:$0xff]
    %v571 = vld [vmem:[#allocation4 + $0x18] sm:$0xff]
    %v572 = vld [vmem:[#allocation4 + $0x20] sm:$0xff]
    %v573 = vld [vmem:[#allocation4 + $0x28] sm:$0xff]
    %v574 = vld [vmem:[#allocation4 + $0x30] sm:$0xff]
    %v575 = vld [vmem:[#allocation4 + $0x38] sm:$0xff]
    %v576 = vld [vmem:[#allocation4 + $0x40] sm:$0xff]
    %v577 = vld [vmem:[#allocation4 + $0x48] sm:$0xff]
    %v578 = vld [vmem:[#allocation4 + $0x50] sm:$0xff]
    %v579 = vld [vmem:[#allocation4 + $0x58] sm:$0xff]
    %v580 = vld [vmem:[#allocation4 + $0x60] sm:$0xff]
    %v581 = vld [vmem:[#allocation4 + $0x68] sm:$0xff]
    %v582 = vld [vmem:[#allocation4 + $0x70] sm:$0xff]
    %v583 = vld [vmem:[#allocation4 + $0x78] sm:$0xff]
    %v584 = vld [vmem:[#allocation4 + $0x80] sm:$0xff]
    %v585 = vld [vmem:[#allocation4 + $0x88] sm:$0xff]
    %v586 = vld [vmem:[#allocation4 + $0x90] sm:$0xff]
    %v587 = vld [vmem:[#allocation4 + $0x98] sm:$0xff]
    %v588 = vld [vmem:[#allocation4 + $0xa0] sm:$0xff]
    %v589 = vld [vmem:[#allocation4 + $0xa8] sm:$0xff]
    %v590 = vld [vmem:[#allocation4 + $0xb0] sm:$0xff]
    %v591 = vld [vmem:[#allocation4 + $0xb8] sm:$0xff]
    %v592 = vld [vmem:[#allocation4 + $0xc0] sm:$0xff]
    %v593 = vld [vmem:[#allocation4 + $0xc8] sm:$0xff]
    %v594 = vld [vmem:[#allocation4 + $0xd0] sm:$0xff]
    %v595 = vld [vmem:[#allocation4 + $0xd8] sm:$0xff]
    %v596 = vld [vmem:[#allocation4 + $0xe0] sm:$0xff]
    %v597 = vld [vmem:[#allocation4 + $0xe8] sm:$0xff]
    %v598 = vld [vmem:[#allocation4 + $0xf0] sm:$0xff]
    %v599 = vld [vmem:[#allocation4 + $0xf8] sm:$0xff]
    %v600 = vld [vmem:[#allocation4 + $0x100] sm:$0xff]
    %v601 = vld [vmem:[#allocation4 + $0x108] sm:$0xff]
    %v602 = vld [vmem:[#allocation4 + $0x110] sm:$0xff]
    %v603 = vld [vmem:[#allocation4 + $0x118] sm:$0xff]
    %v604 = vld [vmem:[#allocation4 + $0x120] sm:$0xff]
    %v605 = vld [vmem:[#allocation4 + $0x128] sm:$0xff]
    %v606 = vld [vmem:[#allocation4 + $0x130] sm:$0xff]
    %v607 = vld [vmem:[#allocation4 + $0x138] sm:$0xff]
    %v608 = vld [vmem:[#allocation4 + $0x140] sm:$0xff]
    %v609 = vld [vmem:[#allocation4 + $0x148] sm:$0xff]
    %v610 = vld [vmem:[#allocation4 + $0x150] sm:$0xff]
    %v611 = vld [vmem:[#allocation4 + $0x158] sm:$0xff]
    %v612 = vld [vmem:[#allocation4 + $0x160] sm:$0xff]
    %v613 = vld [vmem:[#allocation4 + $0x168] sm:$0xff]
    %v614 = vld [vmem:[#allocation4 + $0x170] sm:$0xff]
    %v615 = vld [vmem:[#allocation4 + $0x178] sm:$0xff]
    %v616 = vld [vmem:[#allocation4 + $0x180] sm:$0xff]
    %v617 = vld [vmem:[#allocation4 + $0x188] sm:$0xff]
    %v618 = vld [vmem:[#allocation4 + $0x190] sm:$0xff]
    %v619 = vld [vmem:[#allocation4 + $0x198] sm:$0xff]
    %v620 = vld [vmem:[#allocation4 + $0x1a0] sm:$0xff]
    %v621 = vld [vmem:[#allocation4 + $0x1a8] sm:$0xff]
    %v622 = vld [vmem:[#allocation4 + $0x1b0] sm:$0xff]
    %v623 = vld [vmem:[#allocation4 + $0x1b8] sm:$0xff]
    %v624 = vld [vmem:[#allocation4 + $0x1c0] sm:$0xff]
    %v625 = vld [vmem:[#allocation4 + $0x1c8] sm:$0xff]
    %v626 = vld [vmem:[#allocation4 + $0x1d0] sm:$0xff]
    %v627 = vld [vmem:[#allocation4 + $0x1d8] sm:$0xff]
    %v628 = vld [vmem:[#allocation4 + $0x1e0] sm:$0xff]
    %v629 = vld [vmem:[#allocation4 + $0x1e8] sm:$0xff]
    %v630 = vld [vmem:[#allocation4 + $0x1f0] sm:$0xff]
    %v631 = vld [vmem:[#allocation4 + $0x1f8] sm:$0xff]
    %632 = vmatpush.msra.mxu0 %v628
    %633 = vmatpush.msra.mxu0 %v624
    %634 = vmatpush.msra.mxu0 %v620
    %635 = vmatpush.msra.mxu0 %v616
    %636 = vmatpush.msra.mxu0 %v612
    %637 = vmatpush.msra.mxu0 %v608
    %638 = vmatpush.msra.mxu0 %v604
    %639 = vmatpush.msra.mxu0 %v600
    %640 = vmatpush.msra.mxu0 %v596
    %641 = vmatpush.msra.mxu0 %v592
    %642 = vmatpush.msra.mxu0 %v588
    %643 = vmatpush.msra.mxu0 %v584
    %644 = vmatpush.msra.mxu0 %v580
    %645 = vmatpush.msra.mxu0 %v576
    %646 = vmatpush.msra.mxu0 %v572
    %647 = vmatpush.msra.mxu0 %v568
    %648 = vmatmul.f32.gmra.mxu0 %v559
    %v649 = vpop.f32.mrf.mxu0
    %v650 = vadd.f32 0.0, %v649
    %651 = vdwg.mxu0
    %652 = vmatpush.msra.mxu0 %v629
    %653 = vmatpush.msra.mxu0 %v625
    %654 = vmatpush.msra.mxu0 %v621
    %655 = vmatpush.msra.mxu0 %v617
    %656 = vmatpush.msra.mxu0 %v613
    %657 = vmatpush.msra.mxu0 %v609
    %658 = vmatpush.msra.mxu0 %v605
    %659 = vmatpush.msra.mxu0 %v601
    %660 = vmatpush.msra.mxu0 %v597
    %661 = vmatpush.msra.mxu0 %v593
    %662 = vmatpush.msra.mxu0 %v589
    %663 = vmatpush.msra.mxu0 %v585
    %664 = vmatpush.msra.mxu0 %v581
    %665 = vmatpush.msra.mxu0 %v577
    %666 = vmatpush.msra.mxu0 %v573
    %667 = vmatpush.msra.mxu0 %v569
    %668 = vmatmul.f32.gmra.mxu0 %v559
    %v669 = vpop.f32.mrf.mxu0
    %v670 = vadd.f32 0.0, %v669
    %671 = vdwg.mxu0
    %672 = vmatpush.msra.mxu0 %v630
    %673 = vmatpush.msra.mxu0 %v626
    %674 = vmatpush.msra.mxu0 %v622
    %675 = vmatpush.msra.mxu0 %v618
    %676 = vmatpush.msra.mxu0 %v614
    %677 = vmatpush.msra.mxu0 %v610
    %678 = vmatpush.msra.mxu0 %v606
    %679 = vmatpush.msra.mxu0 %v602
    %680 = vmatpush.msra.mxu0 %v598
    %681 = vmatpush.msra.mxu0 %v594
    %682 = vmatpush.msra.mxu0 %v590
    %683 = vmatpush.msra.mxu0 %v586
    %684 = vmatpush.msra.mxu0 %v582
    %685 = vmatpush.msra.mxu0 %v578
    %686 = vmatpush.msra.mxu0 %v574
    %687 = vmatpush.msra.mxu0 %v570
    %688 = vmatmul.f32.gmra.mxu0 %v559
    %v689 = vpop.f32.mrf.mxu0
    %v690 = vadd.f32 0.0, %v689
    %691 = vdwg.mxu0
    %692 = vmatpush.msra.mxu0 %v631
    %693 = vmatpush.msra.mxu0 %v627
    %694 = vmatpush.msra.mxu0 %v623
    %695 = vmatpush.msra.mxu0 %v619
    %696 = vmatpush.msra.mxu0 %v615
    %697 = vmatpush.msra.mxu0 %v611
    %698 = vmatpush.msra.mxu0 %v607
    %699 = vmatpush.msra.mxu0 %v603
    %700 = vmatpush.msra.mxu0 %v599
    %701 = vmatpush.msra.mxu0 %v595
    %702 = vmatpush.msra.mxu0 %v591
    %703 = vmatpush.msra.mxu0 %v587
    %704 = vmatpush.msra.mxu0 %v583
    %705 = vmatpush.msra.mxu0 %v579
    %706 = vmatpush.msra.mxu0 %v575
    %707 = vmatpush.msra.mxu0 %v571
    %708 = vmatmul.f32.gmra.mxu0 %v559
    %v709 = vpop.f32.mrf.mxu0
    %v710 = vadd.f32 0.0, %v709
    %711 = vdwg.mxu0
    %v712 = vadd.f32 %v564, %v650
    %v713 = vadd.f32 %v565, %v670
    %v714 = vadd.f32 %v566, %v690
    %v715 = vadd.f32 %v567, %v710
    %v716 = vxor.u32 %v712, 2147483648
    %v717 = vxor.u32 %v713, 2147483648
    %v718 = vxor.u32 %v714, 2147483648
    %v719 = vmul.f32 %v716, 1.442695
    %v720 = vpow.pop %v719
    %v721 = vmul.f32 %v717, 1.442695
    %v722 = vpow.pop %v721
    %v723 = vmul.f32 %v718, 1.442695
    %v724 = vpow.pop %v723
    %v725 = vadd.f32 %v720, 1.0
    %v726 = vadd.f32 %v722, 1.0
    %v727 = vadd.f32 %v724, 1.0
    %v728 = vrcp.pop %v725
    %v729 = vmul.f32 %v725, %v728
    %v730 = vsub.f32 1.0, %v729
    %v731 = vmul.f32 %v728, %v730
    %v732 = vadd.f32 %v728, %v731
    %vm733 = vweird.f32 %v725
    %vm734 = vweird.f32 %v728
    %vm735 = vmor %vm733, %vm734
    %v736 = vsel %vm735, %v728, %v732
    %v737 = vand.u32 2147483647, %v725
    %vm738 = vcmp.eq.f32.partialorder %v737, 8.507059e+37
    %v739 = vand.u32 %v725, 2147483648
    %v740 = vor.u32 1.1754944e-38, %v739
    %v741 = vsel %vm738, %v740, %v736
    %v742 = vmul.f32 1.0, %v741
    %v743 = vrcp.pop %v726
    %v744 = vmul.f32 %v726, %v743
    %v745 = vsub.f32 1.0, %v744
    %v746 = vmul.f32 %v743, %v745
    %v747 = vadd.f32 %v743, %v746
    %vm748 = vweird.f32 %v726
    %vm749 = vweird.f32 %v743
    %vm750 = vmor %vm748, %vm749
    %v751 = vsel %vm750, %v743, %v747
    %v752 = vand.u32 2147483647, %v726
    %vm753 = vcmp.eq.f32.partialorder %v752, 8.507059e+37
    %v754 = vand.u32 %v726, 2147483648
    %v755 = vor.u32 1.1754944e-38, %v754
    %v756 = vsel %vm753, %v755, %v751
    %v757 = vmul.f32 1.0, %v756
    %v758 = vrcp.pop %v727
    %v759 = vmul.f32 %v727, %v758
    %v760 = vsub.f32 1.0, %v759
    %v761 = vmul.f32 %v758, %v760
    %v762 = vadd.f32 %v758, %v761
    %vm763 = vweird.f32 %v727
    %vm764 = vweird.f32 %v758
    %vm765 = vmor %vm763, %vm764
    %v766 = vsel %vm765, %v758, %v762
    %v767 = vand.u32 2147483647, %v727
    %vm768 = vcmp.eq.f32.partialorder %v767, 8.507059e+37
    %v769 = vand.u32 %v727, 2147483648
    %v770 = vor.u32 1.1754944e-38, %v769
    %v771 = vsel %vm768, %v770, %v766
    %v772 = vmul.f32 1.0, %v771
    %v773 = vtanh.pop %v715
    %v774 = vmul.f32 %v757, %v557
    %v775 = vmul.f32 %v742, %v773
    %v776 = vadd.f32 %v774, %v775
    %v777 = vtanh.pop %v776
    %v778 = vmul.f32 %v772, %v777
    %s779 = scalar_lea.vmem [#allocation2], 8
    %780 = vst [vmem:[%s779] sm:$0xff] %v778
    %s781 = smul.u32 2, 4
    %s782 = smul.addr %s781, 8
    %s783 = scalar_lea.vmem [#allocation3], %s782
    %v784 = vld [vmem:[%s783] sm:$0xff]
    %v785 = vld [vmem:[%s783 + $0x8] sm:$0xff]
    %v786 = vld [vmem:[%s783 + $0x10] sm:$0xff]
    %v787 = vld [vmem:[%s783 + $0x18] sm:$0xff]
    %v788 = vld [vmem:[#allocation4] sm:$0xff]
    %v789 = vld [vmem:[#allocation4 + $0x8] sm:$0xff]
    %v790 = vld [vmem:[#allocation4 + $0x10] sm:$0xff]
    %v791 = vld [vmem:[#allocation4 + $0x18] sm:$0xff]
    %v792 = vld [vmem:[#allocation4 + $0x20] sm:$0xff]
    %v793 = vld [vmem:[#allocation4 + $0x28] sm:$0xff]
    %v794 = vld [vmem:[#allocation4 + $0x30] sm:$0xff]
    %v795 = vld [vmem:[#allocation4 + $0x38] sm:$0xff]
    %v796 = vld [vmem:[#allocation4 + $0x40] sm:$0xff]
    %v797 = vld [vmem:[#allocation4 + $0x48] sm:$0xff]
    %v798 = vld [vmem:[#allocation4 + $0x50] sm:$0xff]
    %v799 = vld [vmem:[#allocation4 + $0x58] sm:$0xff]
    %v800 = vld [vmem:[#allocation4 + $0x60] sm:$0xff]
    %v801 = vld [vmem:[#allocation4 + $0x68] sm:$0xff]
    %v802 = vld [vmem:[#allocation4 + $0x70] sm:$0xff]
    %v803 = vld [vmem:[#allocation4 + $0x78] sm:$0xff]
    %v804 = vld [vmem:[#allocation4 + $0x80] sm:$0xff]
    %v805 = vld [vmem:[#allocation4 + $0x88] sm:$0xff]
    %v806 = vld [vmem:[#allocation4 + $0x90] sm:$0xff]
    %v807 = vld [vmem:[#allocation4 + $0x98] sm:$0xff]
    %v808 = vld [vmem:[#allocation4 + $0xa0] sm:$0xff]
    %v809 = vld [vmem:[#allocation4 + $0xa8] sm:$0xff]
    %v810 = vld [vmem:[#allocation4 + $0xb0] sm:$0xff]
    %v811 = vld [vmem:[#allocation4 + $0xb8] sm:$0xff]
    %v812 = vld [vmem:[#allocation4 + $0xc0] sm:$0xff]
    %v813 = vld [vmem:[#allocation4 + $0xc8] sm:$0xff]
    %v814 = vld [vmem:[#allocation4 + $0xd0] sm:$0xff]
    %v815 = vld [vmem:[#allocation4 + $0xd8] sm:$0xff]
    %v816 = vld [vmem:[#allocation4 + $0xe0] sm:$0xff]
    %v817 = vld [vmem:[#allocation4 + $0xe8] sm:$0xff]
    %v818 = vld [vmem:[#allocation4 + $0xf0] sm:$0xff]
    %v819 = vld [vmem:[#allocation4 + $0xf8] sm:$0xff]
    %v820 = vld [vmem:[#allocation4 + $0x100] sm:$0xff]
    %v821 = vld [vmem:[#allocation4 + $0x108] sm:$0xff]
    %v822 = vld [vmem:[#allocation4 + $0x110] sm:$0xff]
    %v823 = vld [vmem:[#allocation4 + $0x118] sm:$0xff]
    %v824 = vld [vmem:[#allocation4 + $0x120] sm:$0xff]
    %v825 = vld [vmem:[#allocation4 + $0x128] sm:$0xff]
    %v826 = vld [vmem:[#allocation4 + $0x130] sm:$0xff]
    %v827 = vld [vmem:[#allocation4 + $0x138] sm:$0xff]
    %v828 = vld [vmem:[#allocation4 + $0x140] sm:$0xff]
    %v829 = vld [vmem:[#allocation4 + $0x148] sm:$0xff]
    %v830 = vld [vmem:[#allocation4 + $0x150] sm:$0xff]
    %v831 = vld [vmem:[#allocation4 + $0x158] sm:$0xff]
    %v832 = vld [vmem:[#allocation4 + $0x160] sm:$0xff]
    %v833 = vld [vmem:[#allocation4 + $0x168] sm:$0xff]
    %v834 = vld [vmem:[#allocation4 + $0x170] sm:$0xff]
    %v835 = vld [vmem:[#allocation4 + $0x178] sm:$0xff]
    %v836 = vld [vmem:[#allocation4 + $0x180] sm:$0xff]
    %v837 = vld [vmem:[#allocation4 + $0x188] sm:$0xff]
    %v838 = vld [vmem:[#allocation4 + $0x190] sm:$0xff]
    %v839 = vld [vmem:[#allocation4 + $0x198] sm:$0xff]
    %v840 = vld [vmem:[#allocation4 + $0x1a0] sm:$0xff]
    %v841 = vld [vmem:[#allocation4 + $0x1a8] sm:$0xff]
    %v842 = vld [vmem:[#allocation4 + $0x1b0] sm:$0xff]
    %v843 = vld [vmem:[#allocation4 + $0x1b8] sm:$0xff]
    %v844 = vld [vmem:[#allocation4 + $0x1c0] sm:$0xff]
    %v845 = vld [vmem:[#allocation4 + $0x1c8] sm:$0xff]
    %v846 = vld [vmem:[#allocation4 + $0x1d0] sm:$0xff]
    %v847 = vld [vmem:[#allocation4 + $0x1d8] sm:$0xff]
    %v848 = vld [vmem:[#allocation4 + $0x1e0] sm:$0xff]
    %v849 = vld [vmem:[#allocation4 + $0x1e8] sm:$0xff]
    %v850 = vld [vmem:[#allocation4 + $0x1f0] sm:$0xff]
    %v851 = vld [vmem:[#allocation4 + $0x1f8] sm:$0xff]
    %852 = vmatpush.msra.mxu0 %v848
    %853 = vmatpush.msra.mxu0 %v844
    %854 = vmatpush.msra.mxu0 %v840
    %855 = vmatpush.msra.mxu0 %v836
    %856 = vmatpush.msra.mxu0 %v832
    %857 = vmatpush.msra.mxu0 %v828
    %858 = vmatpush.msra.mxu0 %v824
    %859 = vmatpush.msra.mxu0 %v820
    %860 = vmatpush.msra.mxu0 %v816
    %861 = vmatpush.msra.mxu0 %v812
    %862 = vmatpush.msra.mxu0 %v808
    %863 = vmatpush.msra.mxu0 %v804
    %864 = vmatpush.msra.mxu0 %v800
    %865 = vmatpush.msra.mxu0 %v796
    %866 = vmatpush.msra.mxu0 %v792
    %867 = vmatpush.msra.mxu0 %v788
    %868 = vmatmul.f32.gmra.mxu0 %v778
    %v869 = vpop.f32.mrf.mxu0
    %v870 = vadd.f32 0.0, %v869
    %871 = vdwg.mxu0
    %872 = vmatpush.msra.mxu0 %v849
    %873 = vmatpush.msra.mxu0 %v845
    %874 = vmatpush.msra.mxu0 %v841
    %875 = vmatpush.msra.mxu0 %v837
    %876 = vmatpush.msra.mxu0 %v833
    %877 = vmatpush.msra.mxu0 %v829
    %878 = vmatpush.msra.mxu0 %v825
    %879 = vmatpush.msra.mxu0 %v821
    %880 = vmatpush.msra.mxu0 %v817
    %881 = vmatpush.msra.mxu0 %v813
    %882 = vmatpush.msra.mxu0 %v809
    %883 = vmatpush.msra.mxu0 %v805
    %884 = vmatpush.msra.mxu0 %v801
    %885 = vmatpush.msra.mxu0 %v797
    %886 = vmatpush.msra.mxu0 %v793
    %887 = vmatpush.msra.mxu0 %v789
    %888 = vmatmul.f32.gmra.mxu0 %v778
    %v889 = vpop.f32.mrf.mxu0
    %v890 = vadd.f32 0.0, %v889
    %891 = vdwg.mxu0
    %892 = vmatpush.msra.mxu0 %v850
    %893 = vmatpush.msra.mxu0 %v846
    %894 = vmatpush.msra.mxu0 %v842
    %895 = vmatpush.msra.mxu0 %v838
    %896 = vmatpush.msra.mxu0 %v834
    %897 = vmatpush.msra.mxu0 %v830
    %898 = vmatpush.msra.mxu0 %v826
    %899 = vmatpush.msra.mxu0 %v822
    %900 = vmatpush.msra.mxu0 %v818
    %901 = vmatpush.msra.mxu0 %v814
    %902 = vmatpush.msra.mxu0 %v810
    %903 = vmatpush.msra.mxu0 %v806
    %904 = vmatpush.msra.mxu0 %v802
    %905 = vmatpush.msra.mxu0 %v798
    %906 = vmatpush.msra.mxu0 %v794
    %907 = vmatpush.msra.mxu0 %v790
    %908 = vmatmul.f32.gmra.mxu0 %v778
    %v909 = vpop.f32.mrf.mxu0
    %v910 = vadd.f32 0.0, %v909
    %911 = vdwg.mxu0
    %912 = vmatpush.msra.mxu0 %v851
    %913 = vmatpush.msra.mxu0 %v847
    %914 = vmatpush.msra.mxu0 %v843
    %915 = vmatpush.msra.mxu0 %v839
    %916 = vmatpush.msra.mxu0 %v835
    %917 = vmatpush.msra.mxu0 %v831
    %918 = vmatpush.msra.mxu0 %v827
    %919 = vmatpush.msra.mxu0 %v823
    %920 = vmatpush.msra.mxu0 %v819
    %921 = vmatpush.msra.mxu0 %v815
    %922 = vmatpush.msra.mxu0 %v811
    %923 = vmatpush.msra.mxu0 %v807
    %924 = vmatpush.msra.mxu0 %v803
    %925 = vmatpush.msra.mxu0 %v799
    %926 = vmatpush.msra.mxu0 %v795
    %927 = vmatpush.msra.mxu0 %v791
    %928 = vmatmul.f32.gmra.mxu0 %v778
    %v929 = vpop.f32.mrf.mxu0
    %v930 = vadd.f32 0.0, %v929
    %931 = vdwg.mxu0
    %v932 = vadd.f32 %v784, %v870
    %v933 = vadd.f32 %v785, %v890
    %v934 = vadd.f32 %v786, %v910
    %v935 = vadd.f32 %v787, %v930
    %v936 = vxor.u32 %v932, 2147483648
    %v937 = vxor.u32 %v933, 2147483648
    %v938 = vxor.u32 %v934, 2147483648
    %v939 = vmul.f32 %v936, 1.442695
    %v940 = vpow.pop %v939
    %v941 = vmul.f32 %v937, 1.442695
    %v942 = vpow.pop %v941
    %v943 = vmul.f32 %v938, 1.442695
    %v944 = vpow.pop %v943
    %v945 = vadd.f32 %v940, 1.0
    %v946 = vadd.f32 %v942, 1.0
    %v947 = vadd.f32 %v944, 1.0
    %v948 = vrcp.pop %v945
    %v949 = vmul.f32 %v945, %v948
    %v950 = vsub.f32 1.0, %v949
    %v951 = vmul.f32 %v948, %v950
    %v952 = vadd.f32 %v948, %v951
    %vm953 = vweird.f32 %v945
    %vm954 = vweird.f32 %v948
    %vm955 = vmor %vm953, %vm954
    %v956 = vsel %vm955, %v948, %v952
    %v957 = vand.u32 2147483647, %v945
    %vm958 = vcmp.eq.f32.partialorder %v957, 8.507059e+37
    %v959 = vand.u32 %v945, 2147483648
    %v960 = vor.u32 1.1754944e-38, %v959
    %v961 = vsel %vm958, %v960, %v956
    %v962 = vmul.f32 1.0, %v961
    %v963 = vrcp.pop %v946
    %v964 = vmul.f32 %v946, %v963
    %v965 = vsub.f32 1.0, %v964
    %v966 = vmul.f32 %v963, %v965
    %v967 = vadd.f32 %v963, %v966
    %vm968 = vweird.f32 %v946
    %vm969 = vweird.f32 %v963
    %vm970 = vmor %vm968, %vm969
    %v971 = vsel %vm970, %v963, %v967
    %v972 = vand.u32 2147483647, %v946
    %vm973 = vcmp.eq.f32.partialorder %v972, 8.507059e+37
    %v974 = vand.u32 %v946, 2147483648
    %v975 = vor.u32 1.1754944e-38, %v974
    %v976 = vsel %vm973, %v975, %v971
    %v977 = vmul.f32 1.0, %v976
    %v978 = vrcp.pop %v947
    %v979 = vmul.f32 %v947, %v978
    %v980 = vsub.f32 1.0, %v979
    %v981 = vmul.f32 %v978, %v980
    %v982 = vadd.f32 %v978, %v981
    %vm983 = vweird.f32 %v947
    %vm984 = vweird.f32 %v978
    %vm985 = vmor %vm983, %vm984
    %v986 = vsel %vm985, %v978, %v982
    %v987 = vand.u32 2147483647, %v947
    %vm988 = vcmp.eq.f32.partialorder %v987, 8.507059e+37
    %v989 = vand.u32 %v947, 2147483648
    %v990 = vor.u32 1.1754944e-38, %v989
    %v991 = vsel %vm988, %v990, %v986
    %v992 = vmul.f32 1.0, %v991
    %v993 = vtanh.pop %v935
    %v994 = vmul.f32 %v977, %v776
    %v995 = vmul.f32 %v962, %v993
    %v996 = vadd.f32 %v994, %v995
    %v997 = vtanh.pop %v996
    %v998 = vmul.f32 %v992, %v997
    %s999 = scalar_lea.vmem [#allocation2], 16
    %1000 = vst [vmem:[%s999] sm:$0xff] %v998
    %s1001 = smul.u32 3, 4
    %s1002 = smul.addr %s1001, 8
    %s1003 = scalar_lea.vmem [#allocation3], %s1002
    %v1004 = vld [vmem:[%s1003] sm:$0xff]
    %v1005 = vld [vmem:[%s1003 + $0x8] sm:$0xff]
    %v1006 = vld [vmem:[%s1003 + $0x10] sm:$0xff]
    %v1007 = vld [vmem:[%s1003 + $0x18] sm:$0xff]
    %v1008 = vld [vmem:[#allocation4] sm:$0xff]
    %v1009 = vld [vmem:[#allocation4 + $0x8] sm:$0xff]
    %v1010 = vld [vmem:[#allocation4 + $0x10] sm:$0xff]
    %v1011 = vld [vmem:[#allocation4 + $0x18] sm:$0xff]
    %v1012 = vld [vmem:[#allocation4 + $0x20] sm:$0xff]
    %v1013 = vld [vmem:[#allocation4 + $0x28] sm:$0xff]
    %v1014 = vld [vmem:[#allocation4 + $0x30] sm:$0xff]
    %v1015 = vld [vmem:[#allocation4 + $0x38] sm:$0xff]
    %v1016 = vld [vmem:[#allocation4 + $0x40] sm:$0xff]
    %v1017 = vld [vmem:[#allocation4 + $0x48] sm:$0xff]
    %v1018 = vld [vmem:[#allocation4 + $0x50] sm:$0xff]
    %v1019 = vld [vmem:[#allocation4 + $0x58] sm:$0xff]
    %v1020 = vld [vmem:[#allocation4 + $0x60] sm:$0xff]
    %v1021 = vld [vmem:[#allocation4 + $0x68] sm:$0xff]
    %v1022 = vld [vmem:[#allocation4 + $0x70] sm:$0xff]
    %v1023 = vld [vmem:[#allocation4 + $0x78] sm:$0xff]
    %v1024 = vld [vmem:[#allocation4 + $0x80] sm:$0xff]
    %v1025 = vld [vmem:[#allocation4 + $0x88] sm:$0xff]
    %v1026 = vld [vmem:[#allocation4 + $0x90] sm:$0xff]
    %v1027 = vld [vmem:[#allocation4 + $0x98] sm:$0xff]
    %v1028 = vld [vmem:[#allocation4 + $0xa0] sm:$0xff]
    %v1029 = vld [vmem:[#allocation4 + $0xa8] sm:$0xff]
    %v1030 = vld [vmem:[#allocation4 + $0xb0] sm:$0xff]
    %v1031 = vld [vmem:[#allocation4 + $0xb8] sm:$0xff]
    %v1032 = vld [vmem:[#allocation4 + $0xc0] sm:$0xff]
    %v1033 = vld [vmem:[#allocation4 + $0xc8] sm:$0xff]
    %v1034 = vld [vmem:[#allocation4 + $0xd0] sm:$0xff]
    %v1035 = vld [vmem:[#allocation4 + $0xd8] sm:$0xff]
    %v1036 = vld [vmem:[#allocation4 + $0xe0] sm:$0xff]
    %v1037 = vld [vmem:[#allocation4 + $0xe8] sm:$0xff]
    %v1038 = vld [vmem:[#allocation4 + $0xf0] sm:$0xff]
    %v1039 = vld [vmem:[#allocation4 + $0xf8] sm:$0xff]
    %v1040 = vld [vmem:[#allocation4 + $0x100] sm:$0xff]
    %v1041 = vld [vmem:[#allocation4 + $0x108] sm:$0xff]
    %v1042 = vld [vmem:[#allocation4 + $0x110] sm:$0xff]
    %v1043 = vld [vmem:[#allocation4 + $0x118] sm:$0xff]
    %v1044 = vld [vmem:[#allocation4 + $0x120] sm:$0xff]
    %v1045 = vld [vmem:[#allocation4 + $0x128] sm:$0xff]
    %v1046 = vld [vmem:[#allocation4 + $0x130] sm:$0xff]
    %v1047 = vld [vmem:[#allocation4 + $0x138] sm:$0xff]
    %v1048 = vld [vmem:[#allocation4 + $0x140] sm:$0xff]
    %v1049 = vld [vmem:[#allocation4 + $0x148] sm:$0xff]
    %v1050 = vld [vmem:[#allocation4 + $0x150] sm:$0xff]
    %v1051 = vld [vmem:[#allocation4 + $0x158] sm:$0xff]
    %v1052 = vld [vmem:[#allocation4 + $0x160] sm:$0xff]
    %v1053 = vld [vmem:[#allocation4 + $0x168] sm:$0xff]
    %v1054 = vld [vmem:[#allocation4 + $0x170] sm:$0xff]
    %v1055 = vld [vmem:[#allocation4 + $0x178] sm:$0xff]
    %v1056 = vld [vmem:[#allocation4 + $0x180] sm:$0xff]
    %v1057 = vld [vmem:[#allocation4 + $0x188] sm:$0xff]
    %v1058 = vld [vmem:[#allocation4 + $0x190] sm:$0xff]
    %v1059 = vld [vmem:[#allocation4 + $0x198] sm:$0xff]
    %v1060 = vld [vmem:[#allocation4 + $0x1a0] sm:$0xff]
    %v1061 = vld [vmem:[#allocation4 + $0x1a8] sm:$0xff]
    %v1062 = vld [vmem:[#allocation4 + $0x1b0] sm:$0xff]
    %v1063 = vld [vmem:[#allocation4 + $0x1b8] sm:$0xff]
    %v1064 = vld [vmem:[#allocation4 + $0x1c0] sm:$0xff]
    %v1065 = vld [vmem:[#allocation4 + $0x1c8] sm:$0xff]
    %v1066 = vld [vmem:[#allocation4 + $0x1d0] sm:$0xff]
    %v1067 = vld [vmem:[#allocation4 + $0x1d8] sm:$0xff]
    %v1068 = vld [vmem:[#allocation4 + $0x1e0] sm:$0xff]
    %v1069 = vld [vmem:[#allocation4 + $0x1e8] sm:$0xff]
    %v1070 = vld [vmem:[#allocation4 + $0x1f0] sm:$0xff]
    %v1071 = vld [vmem:[#allocation4 + $0x1f8] sm:$0xff]
    %1072 = vmatpush.msra.mxu0 %v1068
    %1073 = vmatpush.msra.mxu0 %v1064
    %1074 = vmatpush.msra.mxu0 %v1060
    %1075 = vmatpush.msra.mxu0 %v1056
    %1076 = vmatpush.msra.mxu0 %v1052
    %1077 = vmatpush.msra.mxu0 %v1048
    %1078 = vmatpush.msra.mxu0 %v1044
    %1079 = vmatpush.msra.mxu0 %v1040
    %1080 = vmatpush.msra.mxu0 %v1036
    %1081 = vmatpush.msra.mxu0 %v1032
    %1082 = vmatpush.msra.mxu0 %v1028
    %1083 = vmatpush.msra.mxu0 %v1024
    %1084 = vmatpush.msra.mxu0 %v1020
    %1085 = vmatpush.msra.mxu0 %v1016
    %1086 = vmatpush.msra.mxu0 %v1012
    %1087 = vmatpush.msra.mxu0 %v1008
    %1088 = vmatmul.f32.gmra.mxu0 %v998
    %v1089 = vpop.f32.mrf.mxu0
    %v1090 = vadd.f32 0.0, %v1089
    %1091 = vdwg.mxu0
    %1092 = vmatpush.msra.mxu0 %v1069
    %1093 = vmatpush.msra.mxu0 %v1065
    %1094 = vmatpush.msra.mxu0 %v1061
    %1095 = vmatpush.msra.mxu0 %v1057
    %1096 = vmatpush.msra.mxu0 %v1053
    %1097 = vmatpush.msra.mxu0 %v1049
    %1098 = vmatpush.msra.mxu0 %v1045
    %1099 = vmatpush.msra.mxu0 %v1041
    %1100 = vmatpush.msra.mxu0 %v1037
    %1101 = vmatpush.msra.mxu0 %v1033
    %1102 = vmatpush.msra.mxu0 %v1029
    %1103 = vmatpush.msra.mxu0 %v1025
    %1104 = vmatpush.msra.mxu0 %v1021
    %1105 = vmatpush.msra.mxu0 %v1017
    %1106 = vmatpush.msra.mxu0 %v1013
    %1107 = vmatpush.msra.mxu0 %v1009
    %1108 = vmatmul.f32.gmra.mxu0 %v998
    %v1109 = vpop.f32.mrf.mxu0
    %v1110 = vadd.f32 0.0, %v1109
    %1111 = vdwg.mxu0
    %1112 = vmatpush.msra.mxu0 %v1070
    %1113 = vmatpush.msra.mxu0 %v1066
    %1114 = vmatpush.msra.mxu0 %v1062
    %1115 = vmatpush.msra.mxu0 %v1058
    %1116 = vmatpush.msra.mxu0 %v1054
    %1117 = vmatpush.msra.mxu0 %v1050
    %1118 = vmatpush.msra.mxu0 %v1046
    %1119 = vmatpush.msra.mxu0 %v1042
    %1120 = vmatpush.msra.mxu0 %v1038
    %1121 = vmatpush.msra.mxu0 %v1034
    %1122 = vmatpush.msra.mxu0 %v1030
    %1123 = vmatpush.msra.mxu0 %v1026
    %1124 = vmatpush.msra.mxu0 %v1022
    %1125 = vmatpush.msra.mxu0 %v1018
    %1126 = vmatpush.msra.mxu0 %v1014
    %1127 = vmatpush.msra.mxu0 %v1010
    %1128 = vmatmul.f32.gmra.mxu0 %v998
    %v1129 = vpop.f32.mrf.mxu0
    %v1130 = vadd.f32 0.0, %v1129
    %1131 = vdwg.mxu0
    %1132 = vmatpush.msra.mxu0 %v1071
    %1133 = vmatpush.msra.mxu0 %v1067
    %1134 = vmatpush.msra.mxu0 %v1063
    %1135 = vmatpush.msra.mxu0 %v1059
    %1136 = vmatpush.msra.mxu0 %v1055
    %1137 = vmatpush.msra.mxu0 %v1051
    %1138 = vmatpush.msra.mxu0 %v1047
    %1139 = vmatpush.msra.mxu0 %v1043
    %1140 = vmatpush.msra.mxu0 %v1039
    %1141 = vmatpush.msra.mxu0 %v1035
    %1142 = vmatpush.msra.mxu0 %v1031
    %1143 = vmatpush.msra.mxu0 %v1027
    %1144 = vmatpush.msra.mxu0 %v1023
    %1145 = vmatpush.msra.mxu0 %v1019
    %1146 = vmatpush.msra.mxu0 %v1015
    %1147 = vmatpush.msra.mxu0 %v1011
    %1148 = vmatmul.f32.gmra.mxu0 %v998
    %v1149 = vpop.f32.mrf.mxu0
    %v1150 = vadd.f32 0.0, %v1149
    %1151 = vdwg.mxu0
    %v1152 = vadd.f32 %v1004, %v1090
    %v1153 = vadd.f32 %v1005, %v1110
    %v1154 = vadd.f32 %v1006, %v1130
    %v1155 = vadd.f32 %v1007, %v1150
    %v1156 = vxor.u32 %v1152, 2147483648
    %v1157 = vxor.u32 %v1153, 2147483648
    %v1158 = vxor.u32 %v1154, 2147483648
    %v1159 = vmul.f32 %v1156, 1.442695
    %v1160 = vpow.pop %v1159
    %v1161 = vmul.f32 %v1157, 1.442695
    %v1162 = vpow.pop %v1161
    %v1163 = vmul.f32 %v1158, 1.442695
    %v1164 = vpow.pop %v1163
    %v1165 = vadd.f32 %v1160, 1.0
    %v1166 = vadd.f32 %v1162, 1.0
    %v1167 = vadd.f32 %v1164, 1.0
    %v1168 = vrcp.pop %v1165
    %v1169 = vmul.f32 %v1165, %v1168
    %v1170 = vsub.f32 1.0, %v1169
    %v1171 = vmul.f32 %v1168, %v1170
    %v1172 = vadd.f32 %v1168, %v1171
    %vm1173 = vweird.f32 %v1165
    %vm1174 = vweird.f32 %v1168
    %vm1175 = vmor %vm1173, %vm1174
    %v1176 = vsel %vm1175, %v1168, %v1172
    %v1177 = vand.u32 2147483647, %v1165
    %vm1178 = vcmp.eq.f32.partialorder %v1177, 8.507059e+37
    %v1179 = vand.u32 %v1165, 2147483648
    %v1180 = vor.u32 1.1754944e-38, %v1179
    %v1181 = vsel %vm1178, %v1180, %v1176
    %v1182 = vmul.f32 1.0, %v1181
    %v1183 = vrcp.pop %v1166
    %v1184 = vmul.f32 %v1166, %v1183
    %v1185 = vsub.f32 1.0, %v1184
    %v1186 = vmul.f32 %v1183, %v1185
    %v1187 = vadd.f32 %v1183, %v1186
    %vm1188 = vweird.f32 %v1166
    %vm1189 = vweird.f32 %v1183
    %vm1190 = vmor %vm1188, %vm1189
    %v1191 = vsel %vm1190, %v1183, %v1187
    %v1192 = vand.u32 2147483647, %v1166
    %vm1193 = vcmp.eq.f32.partialorder %v1192, 8.507059e+37
    %v1194 = vand.u32 %v1166, 2147483648
    %v1195 = vor.u32 1.1754944e-38, %v1194
    %v1196 = vsel %vm1193, %v1195, %v1191
    %v1197 = vmul.f32 1.0, %v1196
    %v1198 = vrcp.pop %v1167
    %v1199 = vmul.f32 %v1167, %v1198
    %v1200 = vsub.f32 1.0, %v1199
    %v1201 = vmul.f32 %v1198, %v1200
    %v1202 = vadd.f32 %v1198, %v1201
    %vm1203 = vweird.f32 %v1167
    %vm1204 = vweird.f32 %v1198
    %vm1205 = vmor %vm1203, %vm1204
    %v1206 = vsel %vm1205, %v1198, %v1202
    %v1207 = vand.u32 2147483647, %v1167
    %vm1208 = vcmp.eq.f32.partialorder %v1207, 8.507059e+37
    %v1209 = vand.u32 %v1167, 2147483648
    %v1210 = vor.u32 1.1754944e-38, %v1209
    %v1211 = vsel %vm1208, %v1210, %v1206
    %v1212 = vmul.f32 1.0, %v1211
    %v1213 = vtanh.pop %v1155
    %v1214 = vmul.f32 %v1197, %v996
    %v1215 = vmul.f32 %v1182, %v1213
    %v1216 = vadd.f32 %v1214, %v1215
    %v1217 = vtanh.pop %v1216
    %v1218 = vmul.f32 %v1212, %v1217
    %s1219 = scalar_lea.vmem [#allocation2], 24
    %1220 = vst [vmem:[%s1219] sm:$0xff] %v1218
    %s1221 = smul.u32 4, 4
    %s1222 = smul.addr %s1221, 8
    %s1223 = scalar_lea.vmem [#allocation3], %s1222
    %v1224 = vld [vmem:[%s1223] sm:$0xff]
    %v1225 = vld [vmem:[%s1223 + $0x8] sm:$0xff]
    %v1226 = vld [vmem:[%s1223 + $0x10] sm:$0xff]
    %v1227 = vld [vmem:[%s1223 + $0x18] sm:$0xff]
    %v1228 = vld [vmem:[#allocation4] sm:$0xff]
    %v1229 = vld [vmem:[#allocation4 + $0x8] sm:$0xff]
    %v1230 = vld [vmem:[#allocation4 + $0x10] sm:$0xff]
    %v1231 = vld [vmem:[#allocation4 + $0x18] sm:$0xff]
    %v1232 = vld [vmem:[#allocation4 + $0x20] sm:$0xff]
    %v1233 = vld [vmem:[#allocation4 + $0x28] sm:$0xff]
    %v1234 = vld [vmem:[#allocation4 + $0x30] sm:$0xff]
    %v1235 = vld [vmem:[#allocation4 + $0x38] sm:$0xff]
    %v1236 = vld [vmem:[#allocation4 + $0x40] sm:$0xff]
    %v1237 = vld [vmem:[#allocation4 + $0x48] sm:$0xff]
    %v1238 = vld [vmem:[#allocation4 + $0x50] sm:$0xff]
    %v1239 = vld [vmem:[#allocation4 + $0x58] sm:$0xff]
    %v1240 = vld [vmem:[#allocation4 + $0x60] sm:$0xff]
    %v1241 = vld [vmem:[#allocation4 + $0x68] sm:$0xff]
    %v1242 = vld [vmem:[#allocation4 + $0x70] sm:$0xff]
    %v1243 = vld [vmem:[#allocation4 + $0x78] sm:$0xff]
    %v1244 = vld [vmem:[#allocation4 + $0x80] sm:$0xff]
    %v1245 = vld [vmem:[#allocation4 + $0x88] sm:$0xff]
    %v1246 = vld [vmem:[#allocation4 + $0x90] sm:$0xff]
    %v1247 = vld [vmem:[#allocation4 + $0x98] sm:$0xff]
    %v1248 = vld [vmem:[#allocation4 + $0xa0] sm:$0xff]
    %v1249 = vld [vmem:[#allocation4 + $0xa8] sm:$0xff]
    %v1250 = vld [vmem:[#allocation4 + $0xb0] sm:$0xff]
    %v1251 = vld [vmem:[#allocation4 + $0xb8] sm:$0xff]
    %v1252 = vld [vmem:[#allocation4 + $0xc0] sm:$0xff]
    %v1253 = vld [vmem:[#allocation4 + $0xc8] sm:$0xff]
    %v1254 = vld [vmem:[#allocation4 + $0xd0] sm:$0xff]
    %v1255 = vld [vmem:[#allocation4 + $0xd8] sm:$0xff]
    %v1256 = vld [vmem:[#allocation4 + $0xe0] sm:$0xff]
    %v1257 = vld [vmem:[#allocation4 + $0xe8] sm:$0xff]
    %v1258 = vld [vmem:[#allocation4 + $0xf0] sm:$0xff]
    %v1259 = vld [vmem:[#allocation4 + $0xf8] sm:$0xff]
    %v1260 = vld [vmem:[#allocation4 + $0x100] sm:$0xff]
    %v1261 = vld [vmem:[#allocation4 + $0x108] sm:$0xff]
    %v1262 = vld [vmem:[#allocation4 + $0x110] sm:$0xff]
    %v1263 = vld [vmem:[#allocation4 + $0x118] sm:$0xff]
    %v1264 = vld [vmem:[#allocation4 + $0x120] sm:$0xff]
    %v1265 = vld [vmem:[#allocation4 + $0x128] sm:$0xff]
    %v1266 = vld [vmem:[#allocation4 + $0x130] sm:$0xff]
    %v1267 = vld [vmem:[#allocation4 + $0x138] sm:$0xff]
    %v1268 = vld [vmem:[#allocation4 + $0x140] sm:$0xff]
    %v1269 = vld [vmem:[#allocation4 + $0x148] sm:$0xff]
    %v1270 = vld [vmem:[#allocation4 + $0x150] sm:$0xff]
    %v1271 = vld [vmem:[#allocation4 + $0x158] sm:$0xff]
    %v1272 = vld [vmem:[#allocation4 + $0x160] sm:$0xff]
    %v1273 = vld [vmem:[#allocation4 + $0x168] sm:$0xff]
    %v1274 = vld [vmem:[#allocation4 + $0x170] sm:$0xff]
    %v1275 = vld [vmem:[#allocation4 + $0x178] sm:$0xff]
    %v1276 = vld [vmem:[#allocation4 + $0x180] sm:$0xff]
    %v1277 = vld [vmem:[#allocation4 + $0x188] sm:$0xff]
    %v1278 = vld [vmem:[#allocation4 + $0x190] sm:$0xff]
    %v1279 = vld [vmem:[#allocation4 + $0x198] sm:$0xff]
    %v1280 = vld [vmem:[#allocation4 + $0x1a0] sm:$0xff]
    %v1281 = vld [vmem:[#allocation4 + $0x1a8] sm:$0xff]
    %v1282 = vld [vmem:[#allocation4 + $0x1b0] sm:$0xff]
    %v1283 = vld [vmem:[#allocation4 + $0x1b8] sm:$0xff]
    %v1284 = vld [vmem:[#allocation4 + $0x1c0] sm:$0xff]
    %v1285 = vld [vmem:[#allocation4 + $0x1c8] sm:$0xff]
    %v1286 = vld [vmem:[#allocation4 + $0x1d0] sm:$0xff]
    %v1287 = vld [vmem:[#allocation4 + $0x1d8] sm:$0xff]
    %v1288 = vld [vmem:[#allocation4 + $0x1e0] sm:$0xff]
    %v1289 = vld [vmem:[#allocation4 + $0x1e8] sm:$0xff]
    %v1290 = vld [vmem:[#allocation4 + $0x1f0] sm:$0xff]
    %v1291 = vld [vmem:[#allocation4 + $0x1f8] sm:$0xff]
    %1292 = vmatpush.msra.mxu0 %v1288
    %1293 = vmatpush.msra.mxu0 %v1284
    %1294 = vmatpush.msra.mxu0 %v1280
    %1295 = vmatpush.msra.mxu0 %v1276
    %1296 = vmatpush.msra.mxu0 %v1272
    %1297 = vmatpush.msra.mxu0 %v1268
    %1298 = vmatpush.msra.mxu0 %v1264
    %1299 = vmatpush.msra.mxu0 %v1260
    %1300 = vmatpush.msra.mxu0 %v1256
    %1301 = vmatpush.msra.mxu0 %v1252
    %1302 = vmatpush.msra.mxu0 %v1248
    %1303 = vmatpush.msra.mxu0 %v1244
    %1304 = vmatpush.msra.mxu0 %v1240
    %1305 = vmatpush.msra.mxu0 %v1236
    %1306 = vmatpush.msra.mxu0 %v1232
    %1307 = vmatpush.msra.mxu0 %v1228
    %1308 = vmatmul.f32.gmra.mxu0 %v1218
    %v1309 = vpop.f32.mrf.mxu0
    %v1310 = vadd.f32 0.0, %v1309
    %1311 = vdwg.mxu0
    %1312 = vmatpush.msra.mxu0 %v1289
    %1313 = vmatpush.msra.mxu0 %v1285
    %1314 = vmatpush.msra.mxu0 %v1281
    %1315 = vmatpush.msra.mxu0 %v1277
    %1316 = vmatpush.msra.mxu0 %v1273
    %1317 = vmatpush.msra.mxu0 %v1269
    %1318 = vmatpush.msra.mxu0 %v1265
    %1319 = vmatpush.msra.mxu0 %v1261
    %1320 = vmatpush.msra.mxu0 %v1257
    %1321 = vmatpush.msra.mxu0 %v1253
    %1322 = vmatpush.msra.mxu0 %v1249
    %1323 = vmatpush.msra.mxu0 %v1245
    %1324 = vmatpush.msra.mxu0 %v1241
    %1325 = vmatpush.msra.mxu0 %v1237
    %1326 = vmatpush.msra.mxu0 %v1233
    %1327 = vmatpush.msra.mxu0 %v1229
    %1328 = vmatmul.f32.gmra.mxu0 %v1218
    %v1329 = vpop.f32.mrf.mxu0
    %v1330 = vadd.f32 0.0, %v1329
    %1331 = vdwg.mxu0
    %1332 = vmatpush.msra.mxu0 %v1290
    %1333 = vmatpush.msra.mxu0 %v1286
    %1334 = vmatpush.msra.mxu0 %v1282
    %1335 = vmatpush.msra.mxu0 %v1278
    %1336 = vmatpush.msra.mxu0 %v1274
    %1337 = vmatpush.msra.mxu0 %v1270
    %1338 = vmatpush.msra.mxu0 %v1266
    %1339 = vmatpush.msra.mxu0 %v1262
    %1340 = vmatpush.msra.mxu0 %v1258
    %1341 = vmatpush.msra.mxu0 %v1254
    %1342 = vmatpush.msra.mxu0 %v1250
    %1343 = vmatpush.msra.mxu0 %v1246
    %1344 = vmatpush.msra.mxu0 %v1242
    %1345 = vmatpush.msra.mxu0 %v1238
    %1346 = vmatpush.msra.mxu0 %v1234
    %1347 = vmatpush.msra.mxu0 %v1230
    %1348 = vmatmul.f32.gmra.mxu0 %v1218
    %v1349 = vpop.f32.mrf.mxu0
    %v1350 = vadd.f32 0.0, %v1349
    %1351 = vdwg.mxu0
    %1352 = vmatpush.msra.mxu0 %v1291
    %1353 = vmatpush.msra.mxu0 %v1287
    %1354 = vmatpush.msra.mxu0 %v1283
    %1355 = vmatpush.msra.mxu0 %v1279
    %1356 = vmatpush.msra.mxu0 %v1275
    %1357 = vmatpush.msra.mxu0 %v1271
    %1358 = vmatpush.msra.mxu0 %v1267
    %1359 = vmatpush.msra.mxu0 %v1263
    %1360 = vmatpush.msra.mxu0 %v1259
    %1361 = vmatpush.msra.mxu0 %v1255
    %1362 = vmatpush.msra.mxu0 %v1251
    %1363 = vmatpush.msra.mxu0 %v1247
    %1364 = vmatpush.msra.mxu0 %v1243
    %1365 = vmatpush.msra.mxu0 %v1239
    %1366 = vmatpush.msra.mxu0 %v1235
    %1367 = vmatpush.msra.mxu0 %v1231
    %1368 = vmatmul.f32.gmra.mxu0 %v1218
    %v1369 = vpop.f32.mrf.mxu0
    %v1370 = vadd.f32 0.0, %v1369
    %1371 = vdwg.mxu0
    %v1372 = vadd.f32 %v1224, %v1310
    %v1373 = vadd.f32 %v1225, %v1330
    %v1374 = vadd.f32 %v1226, %v1350
    %v1375 = vadd.f32 %v1227, %v1370
    %v1376 = vxor.u32 %v1372, 2147483648
    %v1377 = vxor.u32 %v1373, 2147483648
    %v1378 = vxor.u32 %v1374, 2147483648
    %v1379 = vmul.f32 %v1376, 1.442695
    %v1380 = vpow.pop %v1379
    %v1381 = vmul.f32 %v1377, 1.442695
    %v1382 = vpow.pop %v1381
    %v1383 = vmul.f32 %v1378, 1.442695
    %v1384 = vpow.pop %v1383
    %v1385 = vadd.f32 %v1380, 1.0
    %v1386 = vadd.f32 %v1382, 1.0
    %v1387 = vadd.f32 %v1384, 1.0
    %v1388 = vrcp.pop %v1385
    %v1389 = vmul.f32 %v1385, %v1388
    %v1390 = vsub.f32 1.0, %v1389
    %v1391 = vmul.f32 %v1388, %v1390
    %v1392 = vadd.f32 %v1388, %v1391
    %vm1393 = vweird.f32 %v1385
    %vm1394 = vweird.f32 %v1388
    %vm1395 = vmor %vm1393, %vm1394
    %v1396 = vsel %vm1395, %v1388, %v1392
    %v1397 = vand.u32 2147483647, %v1385
    %vm1398 = vcmp.eq.f32.partialorder %v1397, 8.507059e+37
    %v1399 = vand.u32 %v1385, 2147483648
    %v1400 = vor.u32 1.1754944e-38, %v1399
    %v1401 = vsel %vm1398, %v1400, %v1396
    %v1402 = vmul.f32 1.0, %v1401
    %v1403 = vrcp.pop %v1386
    %v1404 = vmul.f32 %v1386, %v1403
    %v1405 = vsub.f32 1.0, %v1404
    %v1406 = vmul.f32 %v1403, %v1405
    %v1407 = vadd.f32 %v1403, %v1406
    %vm1408 = vweird.f32 %v1386
    %vm1409 = vweird.f32 %v1403
    %vm1410 = vmor %vm1408, %vm1409
    %v1411 = vsel %vm1410, %v1403, %v1407
    %v1412 = vand.u32 2147483647, %v1386
    %vm1413 = vcmp.eq.f32.partialorder %v1412, 8.507059e+37
    %v1414 = vand.u32 %v1386, 2147483648
    %v1415 = vor.u32 1.1754944e-38, %v1414
    %v1416 = vsel %vm1413, %v1415, %v1411
    %v1417 = vmul.f32 1.0, %v1416
    %v1418 = vrcp.pop %v1387
    %v1419 = vmul.f32 %v1387, %v1418
    %v1420 = vsub.f32 1.0, %v1419
    %v1421 = vmul.f32 %v1418, %v1420
    %v1422 = vadd.f32 %v1418, %v1421
    %vm1423 = vweird.f32 %v1387
    %vm1424 = vweird.f32 %v1418
    %vm1425 = vmor %vm1423, %vm1424
    %v1426 = vsel %vm1425, %v1418, %v1422
    %v1427 = vand.u32 2147483647, %v1387
    %vm1428 = vcmp.eq.f32.partialorder %v1427, 8.507059e+37
    %v1429 = vand.u32 %v1387, 2147483648
    %v1430 = vor.u32 1.1754944e-38, %v1429
    %v1431 = vsel %vm1428, %v1430, %v1426
    %v1432 = vmul.f32 1.0, %v1431
    %v1433 = vtanh.pop %v1375
    %v1434 = vmul.f32 %v1417, %v1216
    %v1435 = vmul.f32 %v1402, %v1433
    %v1436 = vadd.f32 %v1434, %v1435
    %v1437 = vtanh.pop %v1436
    %v1438 = vmul.f32 %v1432, %v1437
    %s1439 = scalar_lea.vmem [#allocation2], 32
    %1440 = vst [vmem:[%s1439] sm:$0xff] %v1438
    %s1441 = smul.u32 5, 4
    %s1442 = smul.addr %s1441, 8
    %s1443 = scalar_lea.vmem [#allocation3], %s1442
    %v1444 = vld [vmem:[%s1443] sm:$0xff]
    %v1445 = vld [vmem:[%s1443 + $0x8] sm:$0xff]
    %v1446 = vld [vmem:[%s1443 + $0x10] sm:$0xff]
    %v1447 = vld [vmem:[%s1443 + $0x18] sm:$0xff]
    %v1448 = vld [vmem:[#allocation4] sm:$0xff]
    %v1449 = vld [vmem:[#allocation4 + $0x8] sm:$0xff]
    %v1450 = vld [vmem:[#allocation4 + $0x10] sm:$0xff]
    %v1451 = vld [vmem:[#allocation4 + $0x18] sm:$0xff]
    %v1452 = vld [vmem:[#allocation4 + $0x20] sm:$0xff]
    %v1453 = vld [vmem:[#allocation4 + $0x28] sm:$0xff]
    %v1454 = vld [vmem:[#allocation4 + $0x30] sm:$0xff]
    %v1455 = vld [vmem:[#allocation4 + $0x38] sm:$0xff]
    %v1456 = vld [vmem:[#allocation4 + $0x40] sm:$0xff]
    %v1457 = vld [vmem:[#allocation4 + $0x48] sm:$0xff]
    %v1458 = vld [vmem:[#allocation4 + $0x50] sm:$0xff]
    %v1459 = vld [vmem:[#allocation4 + $0x58] sm:$0xff]
    %v1460 = vld [vmem:[#allocation4 + $0x60] sm:$0xff]
    %v1461 = vld [vmem:[#allocation4 + $0x68] sm:$0xff]
    %v1462 = vld [vmem:[#allocation4 + $0x70] sm:$0xff]
    %v1463 = vld [vmem:[#allocation4 + $0x78] sm:$0xff]
    %v1464 = vld [vmem:[#allocation4 + $0x80] sm:$0xff]
    %v1465 = vld [vmem:[#allocation4 + $0x88] sm:$0xff]
    %v1466 = vld [vmem:[#allocation4 + $0x90] sm:$0xff]
    %v1467 = vld [vmem:[#allocation4 + $0x98] sm:$0xff]
    %v1468 = vld [vmem:[#allocation4 + $0xa0] sm:$0xff]
    %v1469 = vld [vmem:[#allocation4 + $0xa8] sm:$0xff]
    %v1470 = vld [vmem:[#allocation4 + $0xb0] sm:$0xff]
    %v1471 = vld [vmem:[#allocation4 + $0xb8] sm:$0xff]
    %v1472 = vld [vmem:[#allocation4 + $0xc0] sm:$0xff]
    %v1473 = vld [vmem:[#allocation4 + $0xc8] sm:$0xff]
    %v1474 = vld [vmem:[#allocation4 + $0xd0] sm:$0xff]
    %v1475 = vld [vmem:[#allocation4 + $0xd8] sm:$0xff]
    %v1476 = vld [vmem:[#allocation4 + $0xe0] sm:$0xff]
    %v1477 = vld [vmem:[#allocation4 + $0xe8] sm:$0xff]
    %v1478 = vld [vmem:[#allocation4 + $0xf0] sm:$0xff]
    %v1479 = vld [vmem:[#allocation4 + $0xf8] sm:$0xff]
    %v1480 = vld [vmem:[#allocation4 + $0x100] sm:$0xff]
    %v1481 = vld [vmem:[#allocation4 + $0x108] sm:$0xff]
    %v1482 = vld [vmem:[#allocation4 + $0x110] sm:$0xff]
    %v1483 = vld [vmem:[#allocation4 + $0x118] sm:$0xff]
    %v1484 = vld [vmem:[#allocation4 + $0x120] sm:$0xff]
    %v1485 = vld [vmem:[#allocation4 + $0x128] sm:$0xff]
    %v1486 = vld [vmem:[#allocation4 + $0x130] sm:$0xff]
    %v1487 = vld [vmem:[#allocation4 + $0x138] sm:$0xff]
    %v1488 = vld [vmem:[#allocation4 + $0x140] sm:$0xff]
    %v1489 = vld [vmem:[#allocation4 + $0x148] sm:$0xff]
    %v1490 = vld [vmem:[#allocation4 + $0x150] sm:$0xff]
    %v1491 = vld [vmem:[#allocation4 + $0x158] sm:$0xff]
    %v1492 = vld [vmem:[#allocation4 + $0x160] sm:$0xff]
    %v1493 = vld [vmem:[#allocation4 + $0x168] sm:$0xff]
    %v1494 = vld [vmem:[#allocation4 + $0x170] sm:$0xff]
    %v1495 = vld [vmem:[#allocation4 + $0x178] sm:$0xff]
    %v1496 = vld [vmem:[#allocation4 + $0x180] sm:$0xff]
    %v1497 = vld [vmem:[#allocation4 + $0x188] sm:$0xff]
    %v1498 = vld [vmem:[#allocation4 + $0x190] sm:$0xff]
    %v1499 = vld [vmem:[#allocation4 + $0x198] sm:$0xff]
    %v1500 = vld [vmem:[#allocation4 + $0x1a0] sm:$0xff]
    %v1501 = vld [vmem:[#allocation4 + $0x1a8] sm:$0xff]
    %v1502 = vld [vmem:[#allocation4 + $0x1b0] sm:$0xff]
    %v1503 = vld [vmem:[#allocation4 + $0x1b8] sm:$0xff]
    %v1504 = vld [vmem:[#allocation4 + $0x1c0] sm:$0xff]
    %v1505 = vld [vmem:[#allocation4 + $0x1c8] sm:$0xff]
    %v1506 = vld [vmem:[#allocation4 + $0x1d0] sm:$0xff]
    %v1507 = vld [vmem:[#allocation4 + $0x1d8] sm:$0xff]
    %v1508 = vld [vmem:[#allocation4 + $0x1e0] sm:$0xff]
    %v1509 = vld [vmem:[#allocation4 + $0x1e8] sm:$0xff]
    %v1510 = vld [vmem:[#allocation4 + $0x1f0] sm:$0xff]
    %v1511 = vld [vmem:[#allocation4 + $0x1f8] sm:$0xff]
    %1512 = vmatpush.msra.mxu0 %v1508
    %1513 = vmatpush.msra.mxu0 %v1504
    %1514 = vmatpush.msra.mxu0 %v1500
    %1515 = vmatpush.msra.mxu0 %v1496
    %1516 = vmatpush.msra.mxu0 %v1492
    %1517 = vmatpush.msra.mxu0 %v1488
    %1518 = vmatpush.msra.mxu0 %v1484
    %1519 = vmatpush.msra.mxu0 %v1480
    %1520 = vmatpush.msra.mxu0 %v1476
    %1521 = vmatpush.msra.mxu0 %v1472
    %1522 = vmatpush.msra.mxu0 %v1468
    %1523 = vmatpush.msra.mxu0 %v1464
    %1524 = vmatpush.msra.mxu0 %v1460
    %1525 = vmatpush.msra.mxu0 %v1456
    %1526 = vmatpush.msra.mxu0 %v1452
    %1527 = vmatpush.msra.mxu0 %v1448
    %1528 = vmatmul.f32.gmra.mxu0 %v1438
    %v1529 = vpop.f32.mrf.mxu0
    %v1530 = vadd.f32 0.0, %v1529
    %1531 = vdwg.mxu0
    %1532 = vmatpush.msra.mxu0 %v1509
    %1533 = vmatpush.msra.mxu0 %v1505
    %1534 = vmatpush.msra.mxu0 %v1501
    %1535 = vmatpush.msra.mxu0 %v1497
    %1536 = vmatpush.msra.mxu0 %v1493
    %1537 = vmatpush.msra.mxu0 %v1489
    %1538 = vmatpush.msra.mxu0 %v1485
    %1539 = vmatpush.msra.mxu0 %v1481
    %1540 = vmatpush.msra.mxu0 %v1477
    %1541 = vmatpush.msra.mxu0 %v1473
    %1542 = vmatpush.msra.mxu0 %v1469
    %1543 = vmatpush.msra.mxu0 %v1465
    %1544 = vmatpush.msra.mxu0 %v1461
    %1545 = vmatpush.msra.mxu0 %v1457
    %1546 = vmatpush.msra.mxu0 %v1453
    %1547 = vmatpush.msra.mxu0 %v1449
    %1548 = vmatmul.f32.gmra.mxu0 %v1438
    %v1549 = vpop.f32.mrf.mxu0
    %v1550 = vadd.f32 0.0, %v1549
    %1551 = vdwg.mxu0
    %1552 = vmatpush.msra.mxu0 %v1510
    %1553 = vmatpush.msra.mxu0 %v1506
    %1554 = vmatpush.msra.mxu0 %v1502
    %1555 = vmatpush.msra.mxu0 %v1498
    %1556 = vmatpush.msra.mxu0 %v1494
    %1557 = vmatpush.msra.mxu0 %v1490
    %1558 = vmatpush.msra.mxu0 %v1486
    %1559 = vmatpush.msra.mxu0 %v1482
    %1560 = vmatpush.msra.mxu0 %v1478
    %1561 = vmatpush.msra.mxu0 %v1474
    %1562 = vmatpush.msra.mxu0 %v1470
    %1563 = vmatpush.msra.mxu0 %v1466
    %1564 = vmatpush.msra.mxu0 %v1462
    %1565 = vmatpush.msra.mxu0 %v1458
    %1566 = vmatpush.msra.mxu0 %v1454
    %1567 = vmatpush.msra.mxu0 %v1450
    %1568 = vmatmul.f32.gmra.mxu0 %v1438
    %v1569 = vpop.f32.mrf.mxu0
    %v1570 = vadd.f32 0.0, %v1569
    %1571 = vdwg.mxu0
    %1572 = vmatpush.msra.mxu0 %v1511
    %1573 = vmatpush.msra.mxu0 %v1507
    %1574 = vmatpush.msra.mxu0 %v1503
    %1575 = vmatpush.msra.mxu0 %v1499
    %1576 = vmatpush.msra.mxu0 %v1495
    %1577 = vmatpush.msra.mxu0 %v1491
    %1578 = vmatpush.msra.mxu0 %v1487
    %1579 = vmatpush.msra.mxu0 %v1483
    %1580 = vmatpush.msra.mxu0 %v1479
    %1581 = vmatpush.msra.mxu0 %v1475
    %1582 = vmatpush.msra.mxu0 %v1471
    %1583 = vmatpush.msra.mxu0 %v1467
    %1584 = vmatpush.msra.mxu0 %v1463
    %1585 = vmatpush.msra.mxu0 %v1459
    %1586 = vmatpush.msra.mxu0 %v1455
    %1587 = vmatpush.msra.mxu0 %v1451
    %1588 = vmatmul.f32.gmra.mxu0 %v1438
    %v1589 = vpop.f32.mrf.mxu0
    %v1590 = vadd.f32 0.0, %v1589
    %1591 = vdwg.mxu0
    %v1592 = vadd.f32 %v1444, %v1530
    %v1593 = vadd.f32 %v1445, %v1550
    %v1594 = vadd.f32 %v1446, %v1570
    %v1595 = vadd.f32 %v1447, %v1590
    %v1596 = vxor.u32 %v1592, 2147483648
    %v1597 = vxor.u32 %v1593, 2147483648
    %v1598 = vxor.u32 %v1594, 2147483648
    %v1599 = vmul.f32 %v1596, 1.442695
    %v1600 = vpow.pop %v1599
    %v1601 = vmul.f32 %v1597, 1.442695
    %v1602 = vpow.pop %v1601
    %v1603 = vmul.f32 %v1598, 1.442695
    %v1604 = vpow.pop %v1603
    %v1605 = vadd.f32 %v1600, 1.0
    %v1606 = vadd.f32 %v1602, 1.0
    %v1607 = vadd.f32 %v1604, 1.0
    %v1608 = vrcp.pop %v1605
    %v1609 = vmul.f32 %v1605, %v1608
    %v1610 = vsub.f32 1.0, %v1609
    %v1611 = vmul.f32 %v1608, %v1610
    %v1612 = vadd.f32 %v1608, %v1611
    %vm1613 = vweird.f32 %v1605
    %vm1614 = vweird.f32 %v1608
    %vm1615 = vmor %vm1613, %vm1614
    %v1616 = vsel %vm1615, %v1608, %v1612
    %v1617 = vand.u32 2147483647, %v1605
    %vm1618 = vcmp.eq.f32.partialorder %v1617, 8.507059e+37
    %v1619 = vand.u32 %v1605, 2147483648
    %v1620 = vor.u32 1.1754944e-38, %v1619
    %v1621 = vsel %vm1618, %v1620, %v1616
    %v1622 = vmul.f32 1.0, %v1621
    %v1623 = vrcp.pop %v1606
    %v1624 = vmul.f32 %v1606, %v1623
    %v1625 = vsub.f32 1.0, %v1624
    %v1626 = vmul.f32 %v1623, %v1625
    %v1627 = vadd.f32 %v1623, %v1626
    %vm1628 = vweird.f32 %v1606
    %vm1629 = vweird.f32 %v1623
    %vm1630 = vmor %vm1628, %vm1629
    %v1631 = vsel %vm1630, %v1623, %v1627
    %v1632 = vand.u32 2147483647, %v1606
    %vm1633 = vcmp.eq.f32.partialorder %v1632, 8.507059e+37
    %v1634 = vand.u32 %v1606, 2147483648
    %v1635 = vor.u32 1.1754944e-38, %v1634
    %v1636 = vsel %vm1633, %v1635, %v1631
    %v1637 = vmul.f32 1.0, %v1636
    %v1638 = vrcp.pop %v1607
    %v1639 = vmul.f32 %v1607, %v1638
    %v1640 = vsub.f32 1.0, %v1639
    %v1641 = vmul.f32 %v1638, %v1640
    %v1642 = vadd.f32 %v1638, %v1641
    %vm1643 = vweird.f32 %v1607
    %vm1644 = vweird.f32 %v1638
    %vm1645 = vmor %vm1643, %vm1644
    %v1646 = vsel %vm1645, %v1638, %v1642
    %v1647 = vand.u32 2147483647, %v1607
    %vm1648 = vcmp.eq.f32.partialorder %v1647, 8.507059e+37
    %v1649 = vand.u32 %v1607, 2147483648
    %v1650 = vor.u32 1.1754944e-38, %v1649
    %v1651 = vsel %vm1648, %v1650, %v1646
    %v1652 = vmul.f32 1.0, %v1651
    %v1653 = vtanh.pop %v1595
    %v1654 = vmul.f32 %v1637, %v1436
    %v1655 = vmul.f32 %v1622, %v1653
    %v1656 = vadd.f32 %v1654, %v1655
    %v1657 = vtanh.pop %v1656
    %v1658 = vmul.f32 %v1652, %v1657
    %s1659 = scalar_lea.vmem [#allocation2], 40
    %1660 = vst [vmem:[%s1659] sm:$0xff] %v1658
    %s1661 = smul.u32 6, 4
    %s1662 = smul.addr %s1661, 8
    %s1663 = scalar_lea.vmem [#allocation3], %s1662
    %v1664 = vld [vmem:[%s1663] sm:$0xff]
    %v1665 = vld [vmem:[%s1663 + $0x8] sm:$0xff]
    %v1666 = vld [vmem:[%s1663 + $0x10] sm:$0xff]
    %v1667 = vld [vmem:[%s1663 + $0x18] sm:$0xff]
    %v1668 = vld [vmem:[#allocation4] sm:$0xff]
    %v1669 = vld [vmem:[#allocation4 + $0x8] sm:$0xff]
    %v1670 = vld [vmem:[#allocation4 + $0x10] sm:$0xff]
    %v1671 = vld [vmem:[#allocation4 + $0x18] sm:$0xff]
    %v1672 = vld [vmem:[#allocation4 + $0x20] sm:$0xff]
    %v1673 = vld [vmem:[#allocation4 + $0x28] sm:$0xff]
    %v1674 = vld [vmem:[#allocation4 + $0x30] sm:$0xff]
    %v1675 = vld [vmem:[#allocation4 + $0x38] sm:$0xff]
    %v1676 = vld [vmem:[#allocation4 + $0x40] sm:$0xff]
    %v1677 = vld [vmem:[#allocation4 + $0x48] sm:$0xff]
    %v1678 = vld [vmem:[#allocation4 + $0x50] sm:$0xff]
    %v1679 = vld [vmem:[#allocation4 + $0x58] sm:$0xff]
    %v1680 = vld [vmem:[#allocation4 + $0x60] sm:$0xff]
    %v1681 = vld [vmem:[#allocation4 + $0x68] sm:$0xff]
    %v1682 = vld [vmem:[#allocation4 + $0x70] sm:$0xff]
    %v1683 = vld [vmem:[#allocation4 + $0x78] sm:$0xff]
    %v1684 = vld [vmem:[#allocation4 + $0x80] sm:$0xff]
    %v1685 = vld [vmem:[#allocation4 + $0x88] sm:$0xff]
    %v1686 = vld [vmem:[#allocation4 + $0x90] sm:$0xff]
    %v1687 = vld [vmem:[#allocation4 + $0x98] sm:$0xff]
    %v1688 = vld [vmem:[#allocation4 + $0xa0] sm:$0xff]
    %v1689 = vld [vmem:[#allocation4 + $0xa8] sm:$0xff]
    %v1690 = vld [vmem:[#allocation4 + $0xb0] sm:$0xff]
    %v1691 = vld [vmem:[#allocation4 + $0xb8] sm:$0xff]
    %v1692 = vld [vmem:[#allocation4 + $0xc0] sm:$0xff]
    %v1693 = vld [vmem:[#allocation4 + $0xc8] sm:$0xff]
    %v1694 = vld [vmem:[#allocation4 + $0xd0] sm:$0xff]
    %v1695 = vld [vmem:[#allocation4 + $0xd8] sm:$0xff]
    %v1696 = vld [vmem:[#allocation4 + $0xe0] sm:$0xff]
    %v1697 = vld [vmem:[#allocation4 + $0xe8] sm:$0xff]
    %v1698 = vld [vmem:[#allocation4 + $0xf0] sm:$0xff]
    %v1699 = vld [vmem:[#allocation4 + $0xf8] sm:$0xff]
    %v1700 = vld [vmem:[#allocation4 + $0x100] sm:$0xff]
    %v1701 = vld [vmem:[#allocation4 + $0x108] sm:$0xff]
    %v1702 = vld [vmem:[#allocation4 + $0x110] sm:$0xff]
    %v1703 = vld [vmem:[#allocation4 + $0x118] sm:$0xff]
    %v1704 = vld [vmem:[#allocation4 + $0x120] sm:$0xff]
    %v1705 = vld [vmem:[#allocation4 + $0x128] sm:$0xff]
    %v1706 = vld [vmem:[#allocation4 + $0x130] sm:$0xff]
    %v1707 = vld [vmem:[#allocation4 + $0x138] sm:$0xff]
    %v1708 = vld [vmem:[#allocation4 + $0x140] sm:$0xff]
    %v1709 = vld [vmem:[#allocation4 + $0x148] sm:$0xff]
    %v1710 = vld [vmem:[#allocation4 + $0x150] sm:$0xff]
    %v1711 = vld [vmem:[#allocation4 + $0x158] sm:$0xff]
    %v1712 = vld [vmem:[#allocation4 + $0x160] sm:$0xff]
    %v1713 = vld [vmem:[#allocation4 + $0x168] sm:$0xff]
    %v1714 = vld [vmem:[#allocation4 + $0x170] sm:$0xff]
    %v1715 = vld [vmem:[#allocation4 + $0x178] sm:$0xff]
    %v1716 = vld [vmem:[#allocation4 + $0x180] sm:$0xff]
    %v1717 = vld [vmem:[#allocation4 + $0x188] sm:$0xff]
    %v1718 = vld [vmem:[#allocation4 + $0x190] sm:$0xff]
    %v1719 = vld [vmem:[#allocation4 + $0x198] sm:$0xff]
    %v1720 = vld [vmem:[#allocation4 + $0x1a0] sm:$0xff]
    %v1721 = vld [vmem:[#allocation4 + $0x1a8] sm:$0xff]
    %v1722 = vld [vmem:[#allocation4 + $0x1b0] sm:$0xff]
    %v1723 = vld [vmem:[#allocation4 + $0x1b8] sm:$0xff]
    %v1724 = vld [vmem:[#allocation4 + $0x1c0] sm:$0xff]
    %v1725 = vld [vmem:[#allocation4 + $0x1c8] sm:$0xff]
    %v1726 = vld [vmem:[#allocation4 + $0x1d0] sm:$0xff]
    %v1727 = vld [vmem:[#allocation4 + $0x1d8] sm:$0xff]
    %v1728 = vld [vmem:[#allocation4 + $0x1e0] sm:$0xff]
    %v1729 = vld [vmem:[#allocation4 + $0x1e8] sm:$0xff]
    %v1730 = vld [vmem:[#allocation4 + $0x1f0] sm:$0xff]
    %v1731 = vld [vmem:[#allocation4 + $0x1f8] sm:$0xff]
    %1732 = vmatpush.msra.mxu0 %v1728
    %1733 = vmatpush.msra.mxu0 %v1724
    %1734 = vmatpush.msra.mxu0 %v1720
    %1735 = vmatpush.msra.mxu0 %v1716
    %1736 = vmatpush.msra.mxu0 %v1712
    %1737 = vmatpush.msra.mxu0 %v1708
    %1738 = vmatpush.msra.mxu0 %v1704
    %1739 = vmatpush.msra.mxu0 %v1700
    %1740 = vmatpush.msra.mxu0 %v1696
    %1741 = vmatpush.msra.mxu0 %v1692
    %1742 = vmatpush.msra.mxu0 %v1688
    %1743 = vmatpush.msra.mxu0 %v1684
    %1744 = vmatpush.msra.mxu0 %v1680
    %1745 = vmatpush.msra.mxu0 %v1676
    %1746 = vmatpush.msra.mxu0 %v1672
    %1747 = vmatpush.msra.mxu0 %v1668
    %1748 = vmatmul.f32.gmra.mxu0 %v1658
    %v1749 = vpop.f32.mrf.mxu0
    %v1750 = vadd.f32 0.0, %v1749
    %1751 = vdwg.mxu0
    %1752 = vmatpush.msra.mxu0 %v1729
    %1753 = vmatpush.msra.mxu0 %v1725
    %1754 = vmatpush.msra.mxu0 %v1721
    %1755 = vmatpush.msra.mxu0 %v1717
    %1756 = vmatpush.msra.mxu0 %v1713
    %1757 = vmatpush.msra.mxu0 %v1709
    %1758 = vmatpush.msra.mxu0 %v1705
    %1759 = vmatpush.msra.mxu0 %v1701
    %1760 = vmatpush.msra.mxu0 %v1697
    %1761 = vmatpush.msra.mxu0 %v1693
    %1762 = vmatpush.msra.mxu0 %v1689
    %1763 = vmatpush.msra.mxu0 %v1685
    %1764 = vmatpush.msra.mxu0 %v1681
    %1765 = vmatpush.msra.mxu0 %v1677
    %1766 = vmatpush.msra.mxu0 %v1673
    %1767 = vmatpush.msra.mxu0 %v1669
    %1768 = vmatmul.f32.gmra.mxu0 %v1658
    %v1769 = vpop.f32.mrf.mxu0
    %v1770 = vadd.f32 0.0, %v1769
    %1771 = vdwg.mxu0
    %1772 = vmatpush.msra.mxu0 %v1730
    %1773 = vmatpush.msra.mxu0 %v1726
    %1774 = vmatpush.msra.mxu0 %v1722
    %1775 = vmatpush.msra.mxu0 %v1718
    %1776 = vmatpush.msra.mxu0 %v1714
    %1777 = vmatpush.msra.mxu0 %v1710
    %1778 = vmatpush.msra.mxu0 %v1706
    %1779 = vmatpush.msra.mxu0 %v1702
    %1780 = vmatpush.msra.mxu0 %v1698
    %1781 = vmatpush.msra.mxu0 %v1694
    %1782 = vmatpush.msra.mxu0 %v1690
    %1783 = vmatpush.msra.mxu0 %v1686
    %1784 = vmatpush.msra.mxu0 %v1682
    %1785 = vmatpush.msra.mxu0 %v1678
    %1786 = vmatpush.msra.mxu0 %v1674
    %1787 = vmatpush.msra.mxu0 %v1670
    %1788 = vmatmul.f32.gmra.mxu0 %v1658
    %v1789 = vpop.f32.mrf.mxu0
    %v1790 = vadd.f32 0.0, %v1789
    %1791 = vdwg.mxu0
    %1792 = vmatpush.msra.mxu0 %v1731
    %1793 = vmatpush.msra.mxu0 %v1727
    %1794 = vmatpush.msra.mxu0 %v1723
    %1795 = vmatpush.msra.mxu0 %v1719
    %1796 = vmatpush.msra.mxu0 %v1715
    %1797 = vmatpush.msra.mxu0 %v1711
    %1798 = vmatpush.msra.mxu0 %v1707
    %1799 = vmatpush.msra.mxu0 %v1703
    %1800 = vmatpush.msra.mxu0 %v1699
    %1801 = vmatpush.msra.mxu0 %v1695
    %1802 = vmatpush.msra.mxu0 %v1691
    %1803 = vmatpush.msra.mxu0 %v1687
    %1804 = vmatpush.msra.mxu0 %v1683
    %1805 = vmatpush.msra.mxu0 %v1679
    %1806 = vmatpush.msra.mxu0 %v1675
    %1807 = vmatpush.msra.mxu0 %v1671
    %1808 = vmatmul.f32.gmra.mxu0 %v1658
    %v1809 = vpop.f32.mrf.mxu0
    %v1810 = vadd.f32 0.0, %v1809
    %1811 = vdwg.mxu0
    %v1812 = vadd.f32 %v1664, %v1750
    %v1813 = vadd.f32 %v1665, %v1770
    %v1814 = vadd.f32 %v1666, %v1790
    %v1815 = vadd.f32 %v1667, %v1810
    %v1816 = vxor.u32 %v1812, 2147483648
    %v1817 = vxor.u32 %v1813, 2147483648
    %v1818 = vxor.u32 %v1814, 2147483648
    %v1819 = vmul.f32 %v1816, 1.442695
    %v1820 = vpow.pop %v1819
    %v1821 = vmul.f32 %v1817, 1.442695
    %v1822 = vpow.pop %v1821
    %v1823 = vmul.f32 %v1818, 1.442695
    %v1824 = vpow.pop %v1823
    %v1825 = vadd.f32 %v1820, 1.0
    %v1826 = vadd.f32 %v1822, 1.0
    %v1827 = vadd.f32 %v1824, 1.0
    %v1828 = vrcp.pop %v1825
    %v1829 = vmul.f32 %v1825, %v1828
    %v1830 = vsub.f32 1.0, %v1829
    %v1831 = vmul.f32 %v1828, %v1830
    %v1832 = vadd.f32 %v1828, %v1831
    %vm1833 = vweird.f32 %v1825
    %vm1834 = vweird.f32 %v1828
    %vm1835 = vmor %vm1833, %vm1834
    %v1836 = vsel %vm1835, %v1828, %v1832
    %v1837 = vand.u32 2147483647, %v1825
    %vm1838 = vcmp.eq.f32.partialorder %v1837, 8.507059e+37
    %v1839 = vand.u32 %v1825, 2147483648
    %v1840 = vor.u32 1.1754944e-38, %v1839
    %v1841 = vsel %vm1838, %v1840, %v1836
    %v1842 = vmul.f32 1.0, %v1841
    %v1843 = vrcp.pop %v1826
    %v1844 = vmul.f32 %v1826, %v1843
    %v1845 = vsub.f32 1.0, %v1844
    %v1846 = vmul.f32 %v1843, %v1845
    %v1847 = vadd.f32 %v1843, %v1846
    %vm1848 = vweird.f32 %v1826
    %vm1849 = vweird.f32 %v1843
    %vm1850 = vmor %vm1848, %vm1849
    %v1851 = vsel %vm1850, %v1843, %v1847
    %v1852 = vand.u32 2147483647, %v1826
    %vm1853 = vcmp.eq.f32.partialorder %v1852, 8.507059e+37
    %v1854 = vand.u32 %v1826, 2147483648
    %v1855 = vor.u32 1.1754944e-38, %v1854
    %v1856 = vsel %vm1853, %v1855, %v1851
    %v1857 = vmul.f32 1.0, %v1856
    %v1858 = vrcp.pop %v1827
    %v1859 = vmul.f32 %v1827, %v1858
    %v1860 = vsub.f32 1.0, %v1859
    %v1861 = vmul.f32 %v1858, %v1860
    %v1862 = vadd.f32 %v1858, %v1861
    %vm1863 = vweird.f32 %v1827
    %vm1864 = vweird.f32 %v1858
    %vm1865 = vmor %vm1863, %vm1864
    %v1866 = vsel %vm1865, %v1858, %v1862
    %v1867 = vand.u32 2147483647, %v1827
    %vm1868 = vcmp.eq.f32.partialorder %v1867, 8.507059e+37
    %v1869 = vand.u32 %v1827, 2147483648
    %v1870 = vor.u32 1.1754944e-38, %v1869
    %v1871 = vsel %vm1868, %v1870, %v1866
    %v1872 = vmul.f32 1.0, %v1871
    %v1873 = vtanh.pop %v1815
    %v1874 = vmul.f32 %v1857, %v1656
    %v1875 = vmul.f32 %v1842, %v1873
    %v1876 = vadd.f32 %v1874, %v1875
    %v1877 = vtanh.pop %v1876
    %v1878 = vmul.f32 %v1872, %v1877
    %s1879 = scalar_lea.vmem [#allocation2], 48
    %1880 = vst [vmem:[%s1879] sm:$0xff] %v1878
    %s1881 = smul.u32 7, 4
    %s1882 = smul.addr %s1881, 8
    %s1883 = scalar_lea.vmem [#allocation3], %s1882
    %v1884 = vld [vmem:[%s1883] sm:$0xff]
    %v1885 = vld [vmem:[%s1883 + $0x8] sm:$0xff]
    %v1886 = vld [vmem:[%s1883 + $0x10] sm:$0xff]
    %v1887 = vld [vmem:[%s1883 + $0x18] sm:$0xff]
    %v1888 = vld [vmem:[#allocation4] sm:$0xff]
    %v1889 = vld [vmem:[#allocation4 + $0x8] sm:$0xff]
    %v1890 = vld [vmem:[#allocation4 + $0x10] sm:$0xff]
    %v1891 = vld [vmem:[#allocation4 + $0x18] sm:$0xff]
    %v1892 = vld [vmem:[#allocation4 + $0x20] sm:$0xff]
    %v1893 = vld [vmem:[#allocation4 + $0x28] sm:$0xff]
    %v1894 = vld [vmem:[#allocation4 + $0x30] sm:$0xff]
    %v1895 = vld [vmem:[#allocation4 + $0x38] sm:$0xff]
    %v1896 = vld [vmem:[#allocation4 + $0x40] sm:$0xff]
    %v1897 = vld [vmem:[#allocation4 + $0x48] sm:$0xff]
    %v1898 = vld [vmem:[#allocation4 + $0x50] sm:$0xff]
    %v1899 = vld [vmem:[#allocation4 + $0x58] sm:$0xff]
    %v1900 = vld [vmem:[#allocation4 + $0x60] sm:$0xff]
    %v1901 = vld [vmem:[#allocation4 + $0x68] sm:$0xff]
    %v1902 = vld [vmem:[#allocation4 + $0x70] sm:$0xff]
    %v1903 = vld [vmem:[#allocation4 + $0x78] sm:$0xff]
    %v1904 = vld [vmem:[#allocation4 + $0x80] sm:$0xff]
    %v1905 = vld [vmem:[#allocation4 + $0x88] sm:$0xff]
    %v1906 = vld [vmem:[#allocation4 + $0x90] sm:$0xff]
    %v1907 = vld [vmem:[#allocation4 + $0x98] sm:$0xff]
    %v1908 = vld [vmem:[#allocation4 + $0xa0] sm:$0xff]
    %v1909 = vld [vmem:[#allocation4 + $0xa8] sm:$0xff]
    %v1910 = vld [vmem:[#allocation4 + $0xb0] sm:$0xff]
    %v1911 = vld [vmem:[#allocation4 + $0xb8] sm:$0xff]
    %v1912 = vld [vmem:[#allocation4 + $0xc0] sm:$0xff]
    %v1913 = vld [vmem:[#allocation4 + $0xc8] sm:$0xff]
    %v1914 = vld [vmem:[#allocation4 + $0xd0] sm:$0xff]
    %v1915 = vld [vmem:[#allocation4 + $0xd8] sm:$0xff]
    %v1916 = vld [vmem:[#allocation4 + $0xe0] sm:$0xff]
    %v1917 = vld [vmem:[#allocation4 + $0xe8] sm:$0xff]
    %v1918 = vld [vmem:[#allocation4 + $0xf0] sm:$0xff]
    %v1919 = vld [vmem:[#allocation4 + $0xf8] sm:$0xff]
    %v1920 = vld [vmem:[#allocation4 + $0x100] sm:$0xff]
    %v1921 = vld [vmem:[#allocation4 + $0x108] sm:$0xff]
    %v1922 = vld [vmem:[#allocation4 + $0x110] sm:$0xff]
    %v1923 = vld [vmem:[#allocation4 + $0x118] sm:$0xff]
    %v1924 = vld [vmem:[#allocation4 + $0x120] sm:$0xff]
    %v1925 = vld [vmem:[#allocation4 + $0x128] sm:$0xff]
    %v1926 = vld [vmem:[#allocation4 + $0x130] sm:$0xff]
    %v1927 = vld [vmem:[#allocation4 + $0x138] sm:$0xff]
    %v1928 = vld [vmem:[#allocation4 + $0x140] sm:$0xff]
    %v1929 = vld [vmem:[#allocation4 + $0x148] sm:$0xff]
    %v1930 = vld [vmem:[#allocation4 + $0x150] sm:$0xff]
    %v1931 = vld [vmem:[#allocation4 + $0x158] sm:$0xff]
    %v1932 = vld [vmem:[#allocation4 + $0x160] sm:$0xff]
    %v1933 = vld [vmem:[#allocation4 + $0x168] sm:$0xff]
    %v1934 = vld [vmem:[#allocation4 + $0x170] sm:$0xff]
    %v1935 = vld [vmem:[#allocation4 + $0x178] sm:$0xff]
    %v1936 = vld [vmem:[#allocation4 + $0x180] sm:$0xff]
    %v1937 = vld [vmem:[#allocation4 + $0x188] sm:$0xff]
    %v1938 = vld [vmem:[#allocation4 + $0x190] sm:$0xff]
    %v1939 = vld [vmem:[#allocation4 + $0x198] sm:$0xff]
    %v1940 = vld [vmem:[#allocation4 + $0x1a0] sm:$0xff]
    %v1941 = vld [vmem:[#allocation4 + $0x1a8] sm:$0xff]
    %v1942 = vld [vmem:[#allocation4 + $0x1b0] sm:$0xff]
    %v1943 = vld [vmem:[#allocation4 + $0x1b8] sm:$0xff]
    %v1944 = vld [vmem:[#allocation4 + $0x1c0] sm:$0xff]
    %v1945 = vld [vmem:[#allocation4 + $0x1c8] sm:$0xff]
    %v1946 = vld [vmem:[#allocation4 + $0x1d0] sm:$0xff]
    %v1947 = vld [vmem:[#allocation4 + $0x1d8] sm:$0xff]
    %v1948 = vld [vmem:[#allocation4 + $0x1e0] sm:$0xff]
    %v1949 = vld [vmem:[#allocation4 + $0x1e8] sm:$0xff]
    %v1950 = vld [vmem:[#allocation4 + $0x1f0] sm:$0xff]
    %v1951 = vld [vmem:[#allocation4 + $0x1f8] sm:$0xff]
    %1952 = vmatpush.msra.mxu0 %v1948
    %1953 = vmatpush.msra.mxu0 %v1944
    %1954 = vmatpush.msra.mxu0 %v1940
    %1955 = vmatpush.msra.mxu0 %v1936
    %1956 = vmatpush.msra.mxu0 %v1932
    %1957 = vmatpush.msra.mxu0 %v1928
    %1958 = vmatpush.msra.mxu0 %v1924
    %1959 = vmatpush.msra.mxu0 %v1920
    %1960 = vmatpush.msra.mxu0 %v1916
    %1961 = vmatpush.msra.mxu0 %v1912
    %1962 = vmatpush.msra.mxu0 %v1908
    %1963 = vmatpush.msra.mxu0 %v1904
    %1964 = vmatpush.msra.mxu0 %v1900
    %1965 = vmatpush.msra.mxu0 %v1896
    %1966 = vmatpush.msra.mxu0 %v1892
    %1967 = vmatpush.msra.mxu0 %v1888
    %1968 = vmatmul.f32.gmra.mxu0 %v1878
    %v1969 = vpop.f32.mrf.mxu0
    %v1970 = vadd.f32 0.0, %v1969
    %1971 = vdwg.mxu0
    %1972 = vmatpush.msra.mxu0 %v1949
    %1973 = vmatpush.msra.mxu0 %v1945
    %1974 = vmatpush.msra.mxu0 %v1941
    %1975 = vmatpush.msra.mxu0 %v1937
    %1976 = vmatpush.msra.mxu0 %v1933
    %1977 = vmatpush.msra.mxu0 %v1929
    %1978 = vmatpush.msra.mxu0 %v1925
    %1979 = vmatpush.msra.mxu0 %v1921
    %1980 = vmatpush.msra.mxu0 %v1917
    %1981 = vmatpush.msra.mxu0 %v1913
    %1982 = vmatpush.msra.mxu0 %v1909
    %1983 = vmatpush.msra.mxu0 %v1905
    %1984 = vmatpush.msra.mxu0 %v1901
    %1985 = vmatpush.msra.mxu0 %v1897
    %1986 = vmatpush.msra.mxu0 %v1893
    %1987 = vmatpush.msra.mxu0 %v1889
    %1988 = vmatmul.f32.gmra.mxu0 %v1878
    %v1989 = vpop.f32.mrf.mxu0
    %v1990 = vadd.f32 0.0, %v1989
    %1991 = vdwg.mxu0
    %1992 = vmatpush.msra.mxu0 %v1950
    %1993 = vmatpush.msra.mxu0 %v1946
    %1994 = vmatpush.msra.mxu0 %v1942
    %1995 = vmatpush.msra.mxu0 %v1938
    %1996 = vmatpush.msra.mxu0 %v1934
    %1997 = vmatpush.msra.mxu0 %v1930
    %1998 = vmatpush.msra.mxu0 %v1926
    %1999 = vmatpush.msra.mxu0 %v1922
    %2000 = vmatpush.msra.mxu0 %v1918
    %2001 = vmatpush.msra.mxu0 %v1914
    %2002 = vmatpush.msra.mxu0 %v1910
    %2003 = vmatpush.msra.mxu0 %v1906
    %2004 = vmatpush.msra.mxu0 %v1902
    %2005 = vmatpush.msra.mxu0 %v1898
    %2006 = vmatpush.msra.mxu0 %v1894
    %2007 = vmatpush.msra.mxu0 %v1890
    %2008 = vmatmul.f32.gmra.mxu0 %v1878
    %v2009 = vpop.f32.mrf.mxu0
    %v2010 = vadd.f32 0.0, %v2009
    %2011 = vdwg.mxu0
    %2012 = vmatpush.msra.mxu0 %v1951
    %2013 = vmatpush.msra.mxu0 %v1947
    %2014 = vmatpush.msra.mxu0 %v1943
    %2015 = vmatpush.msra.mxu0 %v1939
    %2016 = vmatpush.msra.mxu0 %v1935
    %2017 = vmatpush.msra.mxu0 %v1931
    %2018 = vmatpush.msra.mxu0 %v1927
    %2019 = vmatpush.msra.mxu0 %v1923
    %2020 = vmatpush.msra.mxu0 %v1919
    %2021 = vmatpush.msra.mxu0 %v1915
    %2022 = vmatpush.msra.mxu0 %v1911
    %2023 = vmatpush.msra.mxu0 %v1907
    %2024 = vmatpush.msra.mxu0 %v1903
    %2025 = vmatpush.msra.mxu0 %v1899
    %2026 = vmatpush.msra.mxu0 %v1895
    %2027 = vmatpush.msra.mxu0 %v1891
    %2028 = vmatmul.f32.gmra.mxu0 %v1878
    %v2029 = vpop.f32.mrf.mxu0
    %v2030 = vadd.f32 0.0, %v2029
    %2031 = vdwg.mxu0
    %v2032 = vadd.f32 %v1884, %v1970
    %v2033 = vadd.f32 %v1885, %v1990
    %v2034 = vadd.f32 %v1886, %v2010
    %v2035 = vadd.f32 %v1887, %v2030
    %v2036 = vxor.u32 %v2032, 2147483648
    %v2037 = vxor.u32 %v2033, 2147483648
    %v2038 = vxor.u32 %v2034, 2147483648
    %v2039 = vmul.f32 %v2036, 1.442695
    %v2040 = vpow.pop %v2039
    %v2041 = vmul.f32 %v2037, 1.442695
    %v2042 = vpow.pop %v2041
    %v2043 = vmul.f32 %v2038, 1.442695
    %v2044 = vpow.pop %v2043
    %v2045 = vadd.f32 %v2040, 1.0
    %v2046 = vadd.f32 %v2042, 1.0
    %v2047 = vadd.f32 %v2044, 1.0
    %v2048 = vrcp.pop %v2045
    %v2049 = vmul.f32 %v2045, %v2048
    %v2050 = vsub.f32 1.0, %v2049
    %v2051 = vmul.f32 %v2048, %v2050
    %v2052 = vadd.f32 %v2048, %v2051
    %vm2053 = vweird.f32 %v2045
    %vm2054 = vweird.f32 %v2048
    %vm2055 = vmor %vm2053, %vm2054
    %v2056 = vsel %vm2055, %v2048, %v2052
    %v2057 = vand.u32 2147483647, %v2045
    %vm2058 = vcmp.eq.f32.partialorder %v2057, 8.507059e+37
    %v2059 = vand.u32 %v2045, 2147483648
    %v2060 = vor.u32 1.1754944e-38, %v2059
    %v2061 = vsel %vm2058, %v2060, %v2056
    %v2062 = vmul.f32 1.0, %v2061
    %v2063 = vrcp.pop %v2046
    %v2064 = vmul.f32 %v2046, %v2063
    %v2065 = vsub.f32 1.0, %v2064
    %v2066 = vmul.f32 %v2063, %v2065
    %v2067 = vadd.f32 %v2063, %v2066
    %vm2068 = vweird.f32 %v2046
    %vm2069 = vweird.f32 %v2063
    %vm2070 = vmor %vm2068, %vm2069
    %v2071 = vsel %vm2070, %v2063, %v2067
    %v2072 = vand.u32 2147483647, %v2046
    %vm2073 = vcmp.eq.f32.partialorder %v2072, 8.507059e+37
    %v2074 = vand.u32 %v2046, 2147483648
    %v2075 = vor.u32 1.1754944e-38, %v2074
    %v2076 = vsel %vm2073, %v2075, %v2071
    %v2077 = vmul.f32 1.0, %v2076
    %v2078 = vrcp.pop %v2047
    %v2079 = vmul.f32 %v2047, %v2078
    %v2080 = vsub.f32 1.0, %v2079
    %v2081 = vmul.f32 %v2078, %v2080
    %v2082 = vadd.f32 %v2078, %v2081
    %vm2083 = vweird.f32 %v2047
    %vm2084 = vweird.f32 %v2078
    %vm2085 = vmor %vm2083, %vm2084
    %v2086 = vsel %vm2085, %v2078, %v2082
    %v2087 = vand.u32 2147483647, %v2047
    %vm2088 = vcmp.eq.f32.partialorder %v2087, 8.507059e+37
    %v2089 = vand.u32 %v2047, 2147483648
    %v2090 = vor.u32 1.1754944e-38, %v2089
    %v2091 = vsel %vm2088, %v2090, %v2086
    %v2092 = vmul.f32 1.0, %v2091
    %v2093 = vtanh.pop %v2035
    %v2094 = vmul.f32 %v2077, %v1876
    %v2095 = vmul.f32 %v2062, %v2093
    %v2096 = vadd.f32 %v2094, %v2095
    %v2097 = vtanh.pop %v2096
    %v2098 = vmul.f32 %v2092, %v2097
    %s2099 = scalar_lea.vmem [#allocation2], 56
    %2100 = vst [vmem:[%s2099] sm:$0xff] %v2098
    %v2101 = vld [vmem:[#allocation2] sm:$0xff]
    %v2102 = vld [vmem:[#allocation2 + $0x8] sm:$0xff]
    %v2103 = vld [vmem:[#allocation2 + $0x10] sm:$0xff]
    %v2104 = vld [vmem:[#allocation2 + $0x18] sm:$0xff]
    %v2105 = vld [vmem:[#allocation2 + $0x20] sm:$0xff]
    %v2106 = vld [vmem:[#allocation2 + $0x28] sm:$0xff]
    %v2107 = vld [vmem:[#allocation2 + $0x30] sm:$0xff]
    %v2108 = vld [vmem:[#allocation2 + $0x38] sm:$0xff]
    %v2109 = vld [vmem:[#allocation6] sm:$0xff]
    %v2110 = vld [vmem:[#allocation6 + $0x8] sm:$0xff]
    %v2111 = vld [vmem:[#allocation6 + $0x10] sm:$0xff]
    %v2112 = vld [vmem:[#allocation6 + $0x18] sm:$0xff]
    %v2113 = vld [vmem:[#allocation6 + $0x20] sm:$0xff]
    %v2114 = vld [vmem:[#allocation6 + $0x28] sm:$0xff]
    %v2115 = vld [vmem:[#allocation6 + $0x30] sm:$0xff]
    %v2116 = vld [vmem:[#allocation6 + $0x38] sm:$0xff]
    %v2117 = vld [vmem:[#allocation6 + $0x40] sm:$0xff]
    %v2118 = vld [vmem:[#allocation6 + $0x48] sm:$0xff]
    %v2119 = vld [vmem:[#allocation6 + $0x50] sm:$0xff]
    %v2120 = vld [vmem:[#allocation6 + $0x58] sm:$0xff]
    %v2121 = vld [vmem:[#allocation6 + $0x60] sm:$0xff]
    %v2122 = vld [vmem:[#allocation6 + $0x68] sm:$0xff]
    %v2123 = vld [vmem:[#allocation6 + $0x70] sm:$0xff]
    %v2124 = vld [vmem:[#allocation6 + $0x78] sm:$0xff]
    %v2125 = vld [vmem:[#allocation6 + $0x80] sm:$0xff]
    %v2126 = vld [vmem:[#allocation6 + $0x88] sm:$0xff]
    %v2127 = vld [vmem:[#allocation6 + $0x90] sm:$0xff]
    %v2128 = vld [vmem:[#allocation6 + $0x98] sm:$0xff]
    %v2129 = vld [vmem:[#allocation6 + $0xa0] sm:$0xff]
    %v2130 = vld [vmem:[#allocation6 + $0xa8] sm:$0xff]
    %v2131 = vld [vmem:[#allocation6 + $0xb0] sm:$0xff]
    %v2132 = vld [vmem:[#allocation6 + $0xb8] sm:$0xff]
    %v2133 = vld [vmem:[#allocation6 + $0xc0] sm:$0xff]
    %v2134 = vld [vmem:[#allocation6 + $0xc8] sm:$0xff]
    %v2135 = vld [vmem:[#allocation6 + $0xd0] sm:$0xff]
    %v2136 = vld [vmem:[#allocation6 + $0xd8] sm:$0xff]
    %v2137 = vld [vmem:[#allocation6 + $0xe0] sm:$0xff]
    %v2138 = vld [vmem:[#allocation6 + $0xe8] sm:$0xff]
    %v2139 = vld [vmem:[#allocation6 + $0xf0] sm:$0xff]
    %v2140 = vld [vmem:[#allocation6 + $0xf8] sm:$0xff]
    %v2141 = vld [vmem:[#allocation6 + $0x100] sm:$0xff]
    %v2142 = vld [vmem:[#allocation6 + $0x108] sm:$0xff]
    %v2143 = vld [vmem:[#allocation6 + $0x110] sm:$0xff]
    %v2144 = vld [vmem:[#allocation6 + $0x118] sm:$0xff]
    %v2145 = vld [vmem:[#allocation6 + $0x120] sm:$0xff]
    %v2146 = vld [vmem:[#allocation6 + $0x128] sm:$0xff]
    %v2147 = vld [vmem:[#allocation6 + $0x130] sm:$0xff]
    %v2148 = vld [vmem:[#allocation6 + $0x138] sm:$0xff]
    %v2149 = vld [vmem:[#allocation6 + $0x140] sm:$0xff]
    %v2150 = vld [vmem:[#allocation6 + $0x148] sm:$0xff]
    %v2151 = vld [vmem:[#allocation6 + $0x150] sm:$0xff]
    %v2152 = vld [vmem:[#allocation6 + $0x158] sm:$0xff]
    %v2153 = vld [vmem:[#allocation6 + $0x160] sm:$0xff]
    %v2154 = vld [vmem:[#allocation6 + $0x168] sm:$0xff]
    %v2155 = vld [vmem:[#allocation6 + $0x170] sm:$0xff]
    %v2156 = vld [vmem:[#allocation6 + $0x178] sm:$0xff]
    %v2157 = vld [vmem:[#allocation6 + $0x180] sm:$0xff]
    %v2158 = vld [vmem:[#allocation6 + $0x188] sm:$0xff]
    %v2159 = vld [vmem:[#allocation6 + $0x190] sm:$0xff]
    %v2160 = vld [vmem:[#allocation6 + $0x198] sm:$0xff]
    %v2161 = vld [vmem:[#allocation6 + $0x1a0] sm:$0xff]
    %v2162 = vld [vmem:[#allocation6 + $0x1a8] sm:$0xff]
    %v2163 = vld [vmem:[#allocation6 + $0x1b0] sm:$0xff]
    %v2164 = vld [vmem:[#allocation6 + $0x1b8] sm:$0xff]
    %v2165 = vld [vmem:[#allocation6 + $0x1c0] sm:$0xff]
    %v2166 = vld [vmem:[#allocation6 + $0x1c8] sm:$0xff]
    %v2167 = vld [vmem:[#allocation6 + $0x1d0] sm:$0xff]
    %v2168 = vld [vmem:[#allocation6 + $0x1d8] sm:$0xff]
    %v2169 = vld [vmem:[#allocation6 + $0x1e0] sm:$0xff]
    %v2170 = vld [vmem:[#allocation6 + $0x1e8] sm:$0xff]
    %v2171 = vld [vmem:[#allocation6 + $0x1f0] sm:$0xff]
    %v2172 = vld [vmem:[#allocation6 + $0x1f8] sm:$0xff]
    %v2173 = vld [vmem:[%s6] sm:$0xf]
    %v2175 = vperm.slane %v2173, 0
    %v2176 = vperm.slane %v2173, 1
    %v2177 = vperm.slane %v2173, 2
    %v2178 = vperm.slane %v2173, 3
    %2183 = vmatpush.msra.mxu0 %v2169
    %2184 = vmatpush.msra.mxu0 %v2165
    %2185 = vmatpush.msra.mxu0 %v2161
    %2186 = vmatpush.msra.mxu0 %v2157
    %2187 = vmatpush.msra.mxu0 %v2153
    %2188 = vmatpush.msra.mxu0 %v2149
    %2189 = vmatpush.msra.mxu0 %v2145
    %2190 = vmatpush.msra.mxu0 %v2141
    %2191 = vmatpush.msra.mxu0 %v2137
    %2192 = vmatpush.msra.mxu0 %v2133
    %2193 = vmatpush.msra.mxu0 %v2129
    %2194 = vmatpush.msra.mxu0 %v2125
    %2195 = vmatpush.msra.mxu0 %v2121
    %2196 = vmatpush.msra.mxu0 %v2117
    %2197 = vmatpush.msra.mxu0 %v2113
    %2198 = vmatpush.msra.mxu0 %v2109
    %2199 = vmatmul.f32.gmra.mxu0 %v2101
    %v2200 = vpop.f32.mrf.mxu0
    %v2201 = vadd.f32 %v2175, %v2200
    %2202 = vmatmul.f32.gmra.mxu0 %v2102
    %v2203 = vpop.f32.mrf.mxu0
    %v2204 = vadd.f32 %v2175, %v2203
    %2205 = vmatmul.f32.gmra.mxu0 %v2103
    %v2206 = vpop.f32.mrf.mxu0
    %v2207 = vadd.f32 %v2175, %v2206
    %2208 = vmatmul.f32.gmra.mxu0 %v2104
    %v2209 = vpop.f32.mrf.mxu0
    %v2210 = vadd.f32 %v2175, %v2209
    %2211 = vmatmul.f32.gmra.mxu0 %v2105
    %v2212 = vpop.f32.mrf.mxu0
    %v2213 = vadd.f32 %v2175, %v2212
    %2214 = vmatmul.f32.gmra.mxu0 %v2106
    %v2215 = vpop.f32.mrf.mxu0
    %v2216 = vadd.f32 %v2175, %v2215
    %2217 = vmatmul.f32.gmra.mxu0 %v2107
    %v2218 = vpop.f32.mrf.mxu0
    %v2219 = vadd.f32 %v2175, %v2218
    %2220 = vmatmul.f32.gmra.mxu0 %v2108
    %v2221 = vpop.f32.mrf.mxu0
    %v2222 = vadd.f32 %v2175, %v2221
    %2223 = vdwg.mxu0
    %2224 = vmatpush.msra.mxu0 %v2170
    %2225 = vmatpush.msra.mxu0 %v2166
    %2226 = vmatpush.msra.mxu0 %v2162
    %2227 = vmatpush.msra.mxu0 %v2158
    %2228 = vmatpush.msra.mxu0 %v2154
    %2229 = vmatpush.msra.mxu0 %v2150
    %2230 = vmatpush.msra.mxu0 %v2146
    %2231 = vmatpush.msra.mxu0 %v2142
    %2232 = vmatpush.msra.mxu0 %v2138
    %2233 = vmatpush.msra.mxu0 %v2134
    %2234 = vmatpush.msra.mxu0 %v2130
    %2235 = vmatpush.msra.mxu0 %v2126
    %2236 = vmatpush.msra.mxu0 %v2122
    %2237 = vmatpush.msra.mxu0 %v2118
    %2238 = vmatpush.msra.mxu0 %v2114
    %2239 = vmatpush.msra.mxu0 %v2110
    %2240 = vmatmul.f32.gmra.mxu0 %v2101
    %v2241 = vpop.f32.mrf.mxu0
    %v2242 = vadd.f32 %v2176, %v2241
    %2243 = vmatmul.f32.gmra.mxu0 %v2102
    %v2244 = vpop.f32.mrf.mxu0
    %v2245 = vadd.f32 %v2176, %v2244
    %2246 = vmatmul.f32.gmra.mxu0 %v2103
    %v2247 = vpop.f32.mrf.mxu0
    %v2248 = vadd.f32 %v2176, %v2247
    %2249 = vmatmul.f32.gmra.mxu0 %v2104
    %v2250 = vpop.f32.mrf.mxu0
    %v2251 = vadd.f32 %v2176, %v2250
    %2252 = vmatmul.f32.gmra.mxu0 %v2105
    %v2253 = vpop.f32.mrf.mxu0
    %v2254 = vadd.f32 %v2176, %v2253
    %2255 = vmatmul.f32.gmra.mxu0 %v2106
    %v2256 = vpop.f32.mrf.mxu0
    %v2257 = vadd.f32 %v2176, %v2256
    %2258 = vmatmul.f32.gmra.mxu0 %v2107
    %v2259 = vpop.f32.mrf.mxu0
    %v2260 = vadd.f32 %v2176, %v2259
    %2261 = vmatmul.f32.gmra.mxu0 %v2108
    %v2262 = vpop.f32.mrf.mxu0
    %v2263 = vadd.f32 %v2176, %v2262
    %2264 = vdwg.mxu0
    %2265 = vmatpush.msra.mxu0 %v2171
    %2266 = vmatpush.msra.mxu0 %v2167
    %2267 = vmatpush.msra.mxu0 %v2163
    %2268 = vmatpush.msra.mxu0 %v2159
    %2269 = vmatpush.msra.mxu0 %v2155
    %2270 = vmatpush.msra.mxu0 %v2151
    %2271 = vmatpush.msra.mxu0 %v2147
    %2272 = vmatpush.msra.mxu0 %v2143
    %2273 = vmatpush.msra.mxu0 %v2139
    %2274 = vmatpush.msra.mxu0 %v2135
    %2275 = vmatpush.msra.mxu0 %v2131
    %2276 = vmatpush.msra.mxu0 %v2127
    %2277 = vmatpush.msra.mxu0 %v2123
    %2278 = vmatpush.msra.mxu0 %v2119
    %2279 = vmatpush.msra.mxu0 %v2115
    %2280 = vmatpush.msra.mxu0 %v2111
    %2281 = vmatmul.f32.gmra.mxu0 %v2101
    %v2282 = vpop.f32.mrf.mxu0
    %v2283 = vadd.f32 %v2177, %v2282
    %2284 = vmatmul.f32.gmra.mxu0 %v2102
    %v2285 = vpop.f32.mrf.mxu0
    %v2286 = vadd.f32 %v2177, %v2285
    %2287 = vmatmul.f32.gmra.mxu0 %v2103
    %v2288 = vpop.f32.mrf.mxu0
    %v2289 = vadd.f32 %v2177, %v2288
    %2290 = vmatmul.f32.gmra.mxu0 %v2104
    %v2291 = vpop.f32.mrf.mxu0
    %v2292 = vadd.f32 %v2177, %v2291
    %2293 = vmatmul.f32.gmra.mxu0 %v2105
    %v2294 = vpop.f32.mrf.mxu0
    %v2295 = vadd.f32 %v2177, %v2294
    %2296 = vmatmul.f32.gmra.mxu0 %v2106
    %v2297 = vpop.f32.mrf.mxu0
    %v2298 = vadd.f32 %v2177, %v2297
    %2299 = vmatmul.f32.gmra.mxu0 %v2107
    %v2300 = vpop.f32.mrf.mxu0
    %v2301 = vadd.f32 %v2177, %v2300
    %2302 = vmatmul.f32.gmra.mxu0 %v2108
    %v2303 = vpop.f32.mrf.mxu0
    %v2304 = vadd.f32 %v2177, %v2303
    %2305 = vdwg.mxu0
    %2306 = vmatpush.msra.mxu0 %v2172
    %2307 = vmatpush.msra.mxu0 %v2168
    %2308 = vmatpush.msra.mxu0 %v2164
    %2309 = vmatpush.msra.mxu0 %v2160
    %2310 = vmatpush.msra.mxu0 %v2156
    %2311 = vmatpush.msra.mxu0 %v2152
    %2312 = vmatpush.msra.mxu0 %v2148
    %2313 = vmatpush.msra.mxu0 %v2144
    %2314 = vmatpush.msra.mxu0 %v2140
    %2315 = vmatpush.msra.mxu0 %v2136
    %2316 = vmatpush.msra.mxu0 %v2132
    %2317 = vmatpush.msra.mxu0 %v2128
    %2318 = vmatpush.msra.mxu0 %v2124
    %2319 = vmatpush.msra.mxu0 %v2120
    %2320 = vmatpush.msra.mxu0 %v2116
    %2321 = vmatpush.msra.mxu0 %v2112
    %2322 = vmatmul.f32.gmra.mxu0 %v2101
    %v2323 = vpop.f32.mrf.mxu0
    %v2324 = vadd.f32 %v2178, %v2323
    %2325 = vmatmul.f32.gmra.mxu0 %v2102
    %v2326 = vpop.f32.mrf.mxu0
    %v2327 = vadd.f32 %v2178, %v2326
    %2328 = vmatmul.f32.gmra.mxu0 %v2103
    %v2329 = vpop.f32.mrf.mxu0
    %v2330 = vadd.f32 %v2178, %v2329
    %2331 = vmatmul.f32.gmra.mxu0 %v2104
    %v2332 = vpop.f32.mrf.mxu0
    %v2333 = vadd.f32 %v2178, %v2332
    %2334 = vmatmul.f32.gmra.mxu0 %v2105
    %v2335 = vpop.f32.mrf.mxu0
    %v2336 = vadd.f32 %v2178, %v2335
    %2337 = vmatmul.f32.gmra.mxu0 %v2106
    %v2338 = vpop.f32.mrf.mxu0
    %v2339 = vadd.f32 %v2178, %v2338
    %2340 = vmatmul.f32.gmra.mxu0 %v2107
    %v2341 = vpop.f32.mrf.mxu0
    %v2342 = vadd.f32 %v2178, %v2341
    %2343 = vmatmul.f32.gmra.mxu0 %v2108
    %v2344 = vpop.f32.mrf.mxu0
    %v2345 = vadd.f32 %v2178, %v2344
    %2346 = vdwg.mxu0
    %2347 = vst [vmem:[#allocation3] sm:$0xff] %v2201
    %2348 = vst [vmem:[#allocation3 + $0x8] sm:$0xff] %v2242
    %2349 = vst [vmem:[#allocation3 + $0x10] sm:$0xff] %v2283
    %2350 = vst [vmem:[#allocation3 + $0x18] sm:$0xff] %v2324
    %2351 = vst [vmem:[#allocation3 + $0x20] sm:$0xff] %v2204
    %2352 = vst [vmem:[#allocation3 + $0x28] sm:$0xff] %v2245
    %2353 = vst [vmem:[#allocation3 + $0x30] sm:$0xff] %v2286
    %2354 = vst [vmem:[#allocation3 + $0x38] sm:$0xff] %v2327
    %2355 = vst [vmem:[#allocation3 + $0x40] sm:$0xff] %v2207
    %2356 = vst [vmem:[#allocation3 + $0x48] sm:$0xff] %v2248
    %2357 = vst [vmem:[#allocation3 + $0x50] sm:$0xff] %v2289
    %2358 = vst [vmem:[#allocation3 + $0x58] sm:$0xff] %v2330
    %2359 = vst [vmem:[#allocation3 + $0x60] sm:$0xff] %v2210
    %2360 = vst [vmem:[#allocation3 + $0x68] sm:$0xff] %v2251
    %2361 = vst [vmem:[#allocation3 + $0x70] sm:$0xff] %v2292
    %2362 = vst [vmem:[#allocation3 + $0x78] sm:$0xff] %v2333
    %2363 = vst [vmem:[#allocation3 + $0x80] sm:$0xff] %v2213
    %2364 = vst [vmem:[#allocation3 + $0x88] sm:$0xff] %v2254
    %2365 = vst [vmem:[#allocation3 + $0x90] sm:$0xff] %v2295
    %2366 = vst [vmem:[#allocation3 + $0x98] sm:$0xff] %v2336
    %2367 = vst [vmem:[#allocation3 + $0xa0] sm:$0xff] %v2216
    %2368 = vst [vmem:[#allocation3 + $0xa8] sm:$0xff] %v2257
    %2369 = vst [vmem:[#allocation3 + $0xb0] sm:$0xff] %v2298
    %2370 = vst [vmem:[#allocation3 + $0xb8] sm:$0xff] %v2339
    %2371 = vst [vmem:[#allocation3 + $0xc0] sm:$0xff] %v2219
    %2372 = vst [vmem:[#allocation3 + $0xc8] sm:$0xff] %v2260
    %2373 = vst [vmem:[#allocation3 + $0xd0] sm:$0xff] %v2301
    %2374 = vst [vmem:[#allocation3 + $0xd8] sm:$0xff] %v2342
    %2375 = vst [vmem:[#allocation3 + $0xe0] sm:$0xff] %v2222
    %2376 = vst [vmem:[#allocation3 + $0xe8] sm:$0xff] %v2263
    %2377 = vst [vmem:[#allocation3 + $0xf0] sm:$0xff] %v2304
    %2378 = vst [vmem:[#allocation3 + $0xf8] sm:$0xff] %v2345
    %v2379 = vld [vmem:[%s344] sm:$0xff]
    %v2380 = vld [vmem:[%s344 + $0x8] sm:$0xff]
    %v2381 = vld [vmem:[%s344 + $0x10] sm:$0xff]
    %v2382 = vld [vmem:[%s344 + $0x18] sm:$0xff]
    %v2383 = vld [vmem:[#allocation8] sm:$0xff]
    %v2384 = vld [vmem:[#allocation8 + $0x8] sm:$0xff]
    %v2385 = vld [vmem:[#allocation8 + $0x10] sm:$0xff]
    %v2386 = vld [vmem:[#allocation8 + $0x18] sm:$0xff]
    %v2387 = vld [vmem:[#allocation8 + $0x20] sm:$0xff]
    %v2388 = vld [vmem:[#allocation8 + $0x28] sm:$0xff]
    %v2389 = vld [vmem:[#allocation8 + $0x30] sm:$0xff]
    %v2390 = vld [vmem:[#allocation8 + $0x38] sm:$0xff]
    %v2391 = vld [vmem:[#allocation8 + $0x40] sm:$0xff]
    %v2392 = vld [vmem:[#allocation8 + $0x48] sm:$0xff]
    %v2393 = vld [vmem:[#allocation8 + $0x50] sm:$0xff]
    %v2394 = vld [vmem:[#allocation8 + $0x58] sm:$0xff]
    %v2395 = vld [vmem:[#allocation8 + $0x60] sm:$0xff]
    %v2396 = vld [vmem:[#allocation8 + $0x68] sm:$0xff]
    %v2397 = vld [vmem:[#allocation8 + $0x70] sm:$0xff]
    %v2398 = vld [vmem:[#allocation8 + $0x78] sm:$0xff]
    %v2399 = vld [vmem:[#allocation8 + $0x80] sm:$0xff]
    %v2400 = vld [vmem:[#allocation8 + $0x88] sm:$0xff]
    %v2401 = vld [vmem:[#allocation8 + $0x90] sm:$0xff]
    %v2402 = vld [vmem:[#allocation8 + $0x98] sm:$0xff]
    %v2403 = vld [vmem:[#allocation8 + $0xa0] sm:$0xff]
    %v2404 = vld [vmem:[#allocation8 + $0xa8] sm:$0xff]
    %v2405 = vld [vmem:[#allocation8 + $0xb0] sm:$0xff]
    %v2406 = vld [vmem:[#allocation8 + $0xb8] sm:$0xff]
    %v2407 = vld [vmem:[#allocation8 + $0xc0] sm:$0xff]
    %v2408 = vld [vmem:[#allocation8 + $0xc8] sm:$0xff]
    %v2409 = vld [vmem:[#allocation8 + $0xd0] sm:$0xff]
    %v2410 = vld [vmem:[#allocation8 + $0xd8] sm:$0xff]
    %v2411 = vld [vmem:[#allocation8 + $0xe0] sm:$0xff]
    %v2412 = vld [vmem:[#allocation8 + $0xe8] sm:$0xff]
    %v2413 = vld [vmem:[#allocation8 + $0xf0] sm:$0xff]
    %v2414 = vld [vmem:[#allocation8 + $0xf8] sm:$0xff]
    %v2415 = vld [vmem:[#allocation8 + $0x100] sm:$0xff]
    %v2416 = vld [vmem:[#allocation8 + $0x108] sm:$0xff]
    %v2417 = vld [vmem:[#allocation8 + $0x110] sm:$0xff]
    %v2418 = vld [vmem:[#allocation8 + $0x118] sm:$0xff]
    %v2419 = vld [vmem:[#allocation8 + $0x120] sm:$0xff]
    %v2420 = vld [vmem:[#allocation8 + $0x128] sm:$0xff]
    %v2421 = vld [vmem:[#allocation8 + $0x130] sm:$0xff]
    %v2422 = vld [vmem:[#allocation8 + $0x138] sm:$0xff]
    %v2423 = vld [vmem:[#allocation8 + $0x140] sm:$0xff]
    %v2424 = vld [vmem:[#allocation8 + $0x148] sm:$0xff]
    %v2425 = vld [vmem:[#allocation8 + $0x150] sm:$0xff]
    %v2426 = vld [vmem:[#allocation8 + $0x158] sm:$0xff]
    %v2427 = vld [vmem:[#allocation8 + $0x160] sm:$0xff]
    %v2428 = vld [vmem:[#allocation8 + $0x168] sm:$0xff]
    %v2429 = vld [vmem:[#allocation8 + $0x170] sm:$0xff]
    %v2430 = vld [vmem:[#allocation8 + $0x178] sm:$0xff]
    %v2431 = vld [vmem:[#allocation8 + $0x180] sm:$0xff]
    %v2432 = vld [vmem:[#allocation8 + $0x188] sm:$0xff]
    %v2433 = vld [vmem:[#allocation8 + $0x190] sm:$0xff]
    %v2434 = vld [vmem:[#allocation8 + $0x198] sm:$0xff]
    %v2435 = vld [vmem:[#allocation8 + $0x1a0] sm:$0xff]
    %v2436 = vld [vmem:[#allocation8 + $0x1a8] sm:$0xff]
    %v2437 = vld [vmem:[#allocation8 + $0x1b0] sm:$0xff]
    %v2438 = vld [vmem:[#allocation8 + $0x1b8] sm:$0xff]
    %v2439 = vld [vmem:[#allocation8 + $0x1c0] sm:$0xff]
    %v2440 = vld [vmem:[#allocation8 + $0x1c8] sm:$0xff]
    %v2441 = vld [vmem:[#allocation8 + $0x1d0] sm:$0xff]
    %v2442 = vld [vmem:[#allocation8 + $0x1d8] sm:$0xff]
    %v2443 = vld [vmem:[#allocation8 + $0x1e0] sm:$0xff]
    %v2444 = vld [vmem:[#allocation8 + $0x1e8] sm:$0xff]
    %v2445 = vld [vmem:[#allocation8 + $0x1f0] sm:$0xff]
    %v2446 = vld [vmem:[#allocation8 + $0x1f8] sm:$0xff]
    %2447 = vmatpush.msra.mxu0 %v2443
    %2448 = vmatpush.msra.mxu0 %v2439
    %2449 = vmatpush.msra.mxu0 %v2435
    %2450 = vmatpush.msra.mxu0 %v2431
    %2451 = vmatpush.msra.mxu0 %v2427
    %2452 = vmatpush.msra.mxu0 %v2423
    %2453 = vmatpush.msra.mxu0 %v2419
    %2454 = vmatpush.msra.mxu0 %v2415
    %2455 = vmatpush.msra.mxu0 %v2411
    %2456 = vmatpush.msra.mxu0 %v2407
    %2457 = vmatpush.msra.mxu0 %v2403
    %2458 = vmatpush.msra.mxu0 %v2399
    %2459 = vmatpush.msra.mxu0 %v2395
    %2460 = vmatpush.msra.mxu0 %v2391
    %2461 = vmatpush.msra.mxu0 %v2387
    %2462 = vmatpush.msra.mxu0 %v2383
    %2463 = vmatmul.f32.gmra.mxu0 0.0
    %v2464 = vpop.f32.mrf.mxu0
    %v2465 = vadd.f32 0.0, %v2464
    %2466 = vdwg.mxu0
    %2467 = vmatpush.msra.mxu0 %v2444
    %2468 = vmatpush.msra.mxu0 %v2440
    %2469 = vmatpush.msra.mxu0 %v2436
    %2470 = vmatpush.msra.mxu0 %v2432
    %2471 = vmatpush.msra.mxu0 %v2428
    %2472 = vmatpush.msra.mxu0 %v2424
    %2473 = vmatpush.msra.mxu0 %v2420
    %2474 = vmatpush.msra.mxu0 %v2416
    %2475 = vmatpush.msra.mxu0 %v2412
    %2476 = vmatpush.msra.mxu0 %v2408
    %2477 = vmatpush.msra.mxu0 %v2404
    %2478 = vmatpush.msra.mxu0 %v2400
    %2479 = vmatpush.msra.mxu0 %v2396
    %2480 = vmatpush.msra.mxu0 %v2392
    %2481 = vmatpush.msra.mxu0 %v2388
    %2482 = vmatpush.msra.mxu0 %v2384
    %2483 = vmatmul.f32.gmra.mxu0 0.0
    %v2484 = vpop.f32.mrf.mxu0
    %v2485 = vadd.f32 0.0, %v2484
    %2486 = vdwg.mxu0
    %2487 = vmatpush.msra.mxu0 %v2445
    %2488 = vmatpush.msra.mxu0 %v2441
    %2489 = vmatpush.msra.mxu0 %v2437
    %2490 = vmatpush.msra.mxu0 %v2433
    %2491 = vmatpush.msra.mxu0 %v2429
    %2492 = vmatpush.msra.mxu0 %v2425
    %2493 = vmatpush.msra.mxu0 %v2421
    %2494 = vmatpush.msra.mxu0 %v2417
    %2495 = vmatpush.msra.mxu0 %v2413
    %2496 = vmatpush.msra.mxu0 %v2409
    %2497 = vmatpush.msra.mxu0 %v2405
    %2498 = vmatpush.msra.mxu0 %v2401
    %2499 = vmatpush.msra.mxu0 %v2397
    %2500 = vmatpush.msra.mxu0 %v2393
    %2501 = vmatpush.msra.mxu0 %v2389
    %2502 = vmatpush.msra.mxu0 %v2385
    %2503 = vmatmul.f32.gmra.mxu0 0.0
    %v2504 = vpop.f32.mrf.mxu0
    %v2505 = vadd.f32 0.0, %v2504
    %2506 = vdwg.mxu0
    %2507 = vmatpush.msra.mxu0 %v2446
    %2508 = vmatpush.msra.mxu0 %v2442
    %2509 = vmatpush.msra.mxu0 %v2438
    %2510 = vmatpush.msra.mxu0 %v2434
    %2511 = vmatpush.msra.mxu0 %v2430
    %2512 = vmatpush.msra.mxu0 %v2426
    %2513 = vmatpush.msra.mxu0 %v2422
    %2514 = vmatpush.msra.mxu0 %v2418
    %2515 = vmatpush.msra.mxu0 %v2414
    %2516 = vmatpush.msra.mxu0 %v2410
    %2517 = vmatpush.msra.mxu0 %v2406
    %2518 = vmatpush.msra.mxu0 %v2402
    %2519 = vmatpush.msra.mxu0 %v2398
    %2520 = vmatpush.msra.mxu0 %v2394
    %2521 = vmatpush.msra.mxu0 %v2390
    %2522 = vmatpush.msra.mxu0 %v2386
    %2523 = vmatmul.f32.gmra.mxu0 0.0
    %v2524 = vpop.f32.mrf.mxu0
    %v2525 = vadd.f32 0.0, %v2524
    %2526 = vdwg.mxu0
    %v2527 = vadd.f32 %v2379, %v2465
    %v2528 = vadd.f32 %v2380, %v2485
    %v2529 = vadd.f32 %v2381, %v2505
    %v2530 = vadd.f32 %v2382, %v2525
    %v2531 = vxor.u32 %v2527, 2147483648
    %v2532 = vxor.u32 %v2528, 2147483648
    %v2533 = vxor.u32 %v2529, 2147483648
    %v2534 = vmul.f32 %v2531, 1.442695
    %v2535 = vpow.pop %v2534
    %v2536 = vmul.f32 %v2532, 1.442695
    %v2537 = vpow.pop %v2536
    %v2538 = vmul.f32 %v2533, 1.442695
    %v2539 = vpow.pop %v2538
    %v2540 = vadd.f32 %v2535, 1.0
    %v2541 = vadd.f32 %v2537, 1.0
    %v2542 = vadd.f32 %v2539, 1.0
    %v2543 = vrcp.pop %v2540
    %v2544 = vmul.f32 %v2540, %v2543
    %v2545 = vsub.f32 1.0, %v2544
    %v2546 = vmul.f32 %v2543, %v2545
    %v2547 = vadd.f32 %v2543, %v2546
    %vm2548 = vweird.f32 %v2540
    %vm2549 = vweird.f32 %v2543
    %vm2550 = vmor %vm2548, %vm2549
    %v2551 = vsel %vm2550, %v2543, %v2547
    %v2552 = vand.u32 2147483647, %v2540
    %vm2553 = vcmp.eq.f32.partialorder %v2552, 8.507059e+37
    %v2554 = vand.u32 %v2540, 2147483648
    %v2555 = vor.u32 1.1754944e-38, %v2554
    %v2556 = vsel %vm2553, %v2555, %v2551
    %v2557 = vmul.f32 1.0, %v2556
    %v2558 = vrcp.pop %v2541
    %v2559 = vmul.f32 %v2541, %v2558
    %v2560 = vsub.f32 1.0, %v2559
    %v2561 = vmul.f32 %v2558, %v2560
    %v2562 = vadd.f32 %v2558, %v2561
    %vm2563 = vweird.f32 %v2541
    %vm2564 = vweird.f32 %v2558
    %vm2565 = vmor %vm2563, %vm2564
    %v2566 = vsel %vm2565, %v2558, %v2562
    %v2567 = vand.u32 2147483647, %v2541
    %vm2568 = vcmp.eq.f32.partialorder %v2567, 8.507059e+37
    %v2569 = vand.u32 %v2541, 2147483648
    %v2570 = vor.u32 1.1754944e-38, %v2569
    %v2571 = vsel %vm2568, %v2570, %v2566
    %v2572 = vmul.f32 1.0, %v2571
    %v2573 = vrcp.pop %v2542
    %v2574 = vmul.f32 %v2542, %v2573
    %v2575 = vsub.f32 1.0, %v2574
    %v2576 = vmul.f32 %v2573, %v2575
    %v2577 = vadd.f32 %v2573, %v2576
    %vm2578 = vweird.f32 %v2542
    %vm2579 = vweird.f32 %v2573
    %vm2580 = vmor %vm2578, %vm2579
    %v2581 = vsel %vm2580, %v2573, %v2577
    %v2582 = vand.u32 2147483647, %v2542
    %vm2583 = vcmp.eq.f32.partialorder %v2582, 8.507059e+37
    %v2584 = vand.u32 %v2542, 2147483648
    %v2585 = vor.u32 1.1754944e-38, %v2584
    %v2586 = vsel %vm2583, %v2585, %v2581
    %v2587 = vmul.f32 1.0, %v2586
    %v2588 = vtanh.pop %v2530
    %v2589 = vmul.f32 %v2572, 0.0
    %v2590 = vmul.f32 %v2557, %v2588
    %v2591 = vadd.f32 %v2589, %v2590
    %v2592 = vtanh.pop %v2591
    %v2593 = vmul.f32 %v2587, %v2592
    %v2594 = vld [vmem:[%s563] sm:$0xff]
    %v2595 = vld [vmem:[%s563 + $0x8] sm:$0xff]
    %v2596 = vld [vmem:[%s563 + $0x10] sm:$0xff]
    %v2597 = vld [vmem:[%s563 + $0x18] sm:$0xff]
    %2598 = vmatpush.msra.mxu0 %v2443
    %2599 = vmatpush.msra.mxu0 %v2439
    %2600 = vmatpush.msra.mxu0 %v2435
    %2601 = vmatpush.msra.mxu0 %v2431
    %2602 = vmatpush.msra.mxu0 %v2427
    %2603 = vmatpush.msra.mxu0 %v2423
    %2604 = vmatpush.msra.mxu0 %v2419
    %2605 = vmatpush.msra.mxu0 %v2415
    %2606 = vmatpush.msra.mxu0 %v2411
    %2607 = vmatpush.msra.mxu0 %v2407
    %2608 = vmatpush.msra.mxu0 %v2403
    %2609 = vmatpush.msra.mxu0 %v2399
    %2610 = vmatpush.msra.mxu0 %v2395
    %2611 = vmatpush.msra.mxu0 %v2391
    %2612 = vmatpush.msra.mxu0 %v2387
    %2613 = vmatpush.msra.mxu0 %v2383
    %2614 = vmatmul.f32.gmra.mxu0 %v2593
    %v2615 = vpop.f32.mrf.mxu0
    %v2616 = vadd.f32 0.0, %v2615
    %2617 = vdwg.mxu0
    %2618 = vmatpush.msra.mxu0 %v2444
    %2619 = vmatpush.msra.mxu0 %v2440
    %2620 = vmatpush.msra.mxu0 %v2436
    %2621 = vmatpush.msra.mxu0 %v2432
    %2622 = vmatpush.msra.mxu0 %v2428
    %2623 = vmatpush.msra.mxu0 %v2424
    %2624 = vmatpush.msra.mxu0 %v2420
    %2625 = vmatpush.msra.mxu0 %v2416
    %2626 = vmatpush.msra.mxu0 %v2412
    %2627 = vmatpush.msra.mxu0 %v2408
    %2628 = vmatpush.msra.mxu0 %v2404
    %2629 = vmatpush.msra.mxu0 %v2400
    %2630 = vmatpush.msra.mxu0 %v2396
    %2631 = vmatpush.msra.mxu0 %v2392
    %2632 = vmatpush.msra.mxu0 %v2388
    %2633 = vmatpush.msra.mxu0 %v2384
    %2634 = vmatmul.f32.gmra.mxu0 %v2593
    %v2635 = vpop.f32.mrf.mxu0
    %v2636 = vadd.f32 0.0, %v2635
    %2637 = vdwg.mxu0
    %2638 = vmatpush.msra.mxu0 %v2445
    %2639 = vmatpush.msra.mxu0 %v2441
    %2640 = vmatpush.msra.mxu0 %v2437
    %2641 = vmatpush.msra.mxu0 %v2433
    %2642 = vmatpush.msra.mxu0 %v2429
    %2643 = vmatpush.msra.mxu0 %v2425
    %2644 = vmatpush.msra.mxu0 %v2421
    %2645 = vmatpush.msra.mxu0 %v2417
    %2646 = vmatpush.msra.mxu0 %v2413
    %2647 = vmatpush.msra.mxu0 %v2409
    %2648 = vmatpush.msra.mxu0 %v2405
    %2649 = vmatpush.msra.mxu0 %v2401
    %2650 = vmatpush.msra.mxu0 %v2397
    %2651 = vmatpush.msra.mxu0 %v2393
    %2652 = vmatpush.msra.mxu0 %v2389
    %2653 = vmatpush.msra.mxu0 %v2385
    %2654 = vmatmul.f32.gmra.mxu0 %v2593
    %v2655 = vpop.f32.mrf.mxu0
    %v2656 = vadd.f32 0.0, %v2655
    %2657 = vdwg.mxu0
    %2658 = vmatpush.msra.mxu0 %v2446
    %2659 = vmatpush.msra.mxu0 %v2442
    %2660 = vmatpush.msra.mxu0 %v2438
    %2661 = vmatpush.msra.mxu0 %v2434
    %2662 = vmatpush.msra.mxu0 %v2430
    %2663 = vmatpush.msra.mxu0 %v2426
    %2664 = vmatpush.msra.mxu0 %v2422
    %2665 = vmatpush.msra.mxu0 %v2418
    %2666 = vmatpush.msra.mxu0 %v2414
    %2667 = vmatpush.msra.mxu0 %v2410
    %2668 = vmatpush.msra.mxu0 %v2406
    %2669 = vmatpush.msra.mxu0 %v2402
    %2670 = vmatpush.msra.mxu0 %v2398
    %2671 = vmatpush.msra.mxu0 %v2394
    %2672 = vmatpush.msra.mxu0 %v2390
    %2673 = vmatpush.msra.mxu0 %v2386
    %2674 = vmatmul.f32.gmra.mxu0 %v2593
    %v2675 = vpop.f32.mrf.mxu0
    %v2676 = vadd.f32 0.0, %v2675
    %2677 = vdwg.mxu0
    %v2678 = vadd.f32 %v2594, %v2616
    %v2679 = vadd.f32 %v2595, %v2636
    %v2680 = vadd.f32 %v2596, %v2656
    %v2681 = vadd.f32 %v2597, %v2676
    %v2682 = vxor.u32 %v2678, 2147483648
    %v2683 = vxor.u32 %v2679, 2147483648
    %v2684 = vxor.u32 %v2680, 2147483648
    %v2685 = vmul.f32 %v2682, 1.442695
    %v2686 = vpow.pop %v2685
    %v2687 = vmul.f32 %v2683, 1.442695
    %v2688 = vpow.pop %v2687
    %v2689 = vmul.f32 %v2684, 1.442695
    %v2690 = vpow.pop %v2689
    %v2691 = vadd.f32 %v2686, 1.0
    %v2692 = vadd.f32 %v2688, 1.0
    %v2693 = vadd.f32 %v2690, 1.0
    %v2694 = vrcp.pop %v2691
    %v2695 = vmul.f32 %v2691, %v2694
    %v2696 = vsub.f32 1.0, %v2695
    %v2697 = vmul.f32 %v2694, %v2696
    %v2698 = vadd.f32 %v2694, %v2697
    %vm2699 = vweird.f32 %v2691
    %vm2700 = vweird.f32 %v2694
    %vm2701 = vmor %vm2699, %vm2700
    %v2702 = vsel %vm2701, %v2694, %v2698
    %v2703 = vand.u32 2147483647, %v2691
    %vm2704 = vcmp.eq.f32.partialorder %v2703, 8.507059e+37
    %v2705 = vand.u32 %v2691, 2147483648
    %v2706 = vor.u32 1.1754944e-38, %v2705
    %v2707 = vsel %vm2704, %v2706, %v2702
    %v2708 = vmul.f32 1.0, %v2707
    %v2709 = vrcp.pop %v2692
    %v2710 = vmul.f32 %v2692, %v2709
    %v2711 = vsub.f32 1.0, %v2710
    %v2712 = vmul.f32 %v2709, %v2711
    %v2713 = vadd.f32 %v2709, %v2712
    %vm2714 = vweird.f32 %v2692
    %vm2715 = vweird.f32 %v2709
    %vm2716 = vmor %vm2714, %vm2715
    %v2717 = vsel %vm2716, %v2709, %v2713
    %v2718 = vand.u32 2147483647, %v2692
    %vm2719 = vcmp.eq.f32.partialorder %v2718, 8.507059e+37
    %v2720 = vand.u32 %v2692, 2147483648
    %v2721 = vor.u32 1.1754944e-38, %v2720
    %v2722 = vsel %vm2719, %v2721, %v2717
    %v2723 = vmul.f32 1.0, %v2722
    %v2724 = vrcp.pop %v2693
    %v2725 = vmul.f32 %v2693, %v2724
    %v2726 = vsub.f32 1.0, %v2725
    %v2727 = vmul.f32 %v2724, %v2726
    %v2728 = vadd.f32 %v2724, %v2727
    %vm2729 = vweird.f32 %v2693
    %vm2730 = vweird.f32 %v2724
    %vm2731 = vmor %vm2729, %vm2730
    %v2732 = vsel %vm2731, %v2724, %v2728
    %v2733 = vand.u32 2147483647, %v2693
    %vm2734 = vcmp.eq.f32.partialorder %v2733, 8.507059e+37
    %v2735 = vand.u32 %v2693, 2147483648
    %v2736 = vor.u32 1.1754944e-38, %v2735
    %v2737 = vsel %vm2734, %v2736, %v2732
    %v2738 = vmul.f32 1.0, %v2737
    %v2739 = vtanh.pop %v2681
    %v2740 = vmul.f32 %v2723, %v2591
    %v2741 = vmul.f32 %v2708, %v2739
    %v2742 = vadd.f32 %v2740, %v2741
    %v2743 = vtanh.pop %v2742
    %v2744 = vmul.f32 %v2738, %v2743
    %v2745 = vld [vmem:[%s783] sm:$0xff]
    %v2746 = vld [vmem:[%s783 + $0x8] sm:$0xff]
    %v2747 = vld [vmem:[%s783 + $0x10] sm:$0xff]
    %v2748 = vld [vmem:[%s783 + $0x18] sm:$0xff]
    %2749 = vmatpush.msra.mxu0 %v2443
    %2750 = vmatpush.msra.mxu0 %v2439
    %2751 = vmatpush.msra.mxu0 %v2435
    %2752 = vmatpush.msra.mxu0 %v2431
    %2753 = vmatpush.msra.mxu0 %v2427
    %2754 = vmatpush.msra.mxu0 %v2423
    %2755 = vmatpush.msra.mxu0 %v2419
    %2756 = vmatpush.msra.mxu0 %v2415
    %2757 = vmatpush.msra.mxu0 %v2411
    %2758 = vmatpush.msra.mxu0 %v2407
    %2759 = vmatpush.msra.mxu0 %v2403
    %2760 = vmatpush.msra.mxu0 %v2399
    %2761 = vmatpush.msra.mxu0 %v2395
    %2762 = vmatpush.msra.mxu0 %v2391
    %2763 = vmatpush.msra.mxu0 %v2387
    %2764 = vmatpush.msra.mxu0 %v2383
    %2765 = vmatmul.f32.gmra.mxu0 %v2744
    %v2766 = vpop.f32.mrf.mxu0
    %v2767 = vadd.f32 0.0, %v2766
    %2768 = vdwg.mxu0
    %2769 = vmatpush.msra.mxu0 %v2444
    %2770 = vmatpush.msra.mxu0 %v2440
    %2771 = vmatpush.msra.mxu0 %v2436
    %2772 = vmatpush.msra.mxu0 %v2432
    %2773 = vmatpush.msra.mxu0 %v2428
    %2774 = vmatpush.msra.mxu0 %v2424
    %2775 = vmatpush.msra.mxu0 %v2420
    %2776 = vmatpush.msra.mxu0 %v2416
    %2777 = vmatpush.msra.mxu0 %v2412
    %2778 = vmatpush.msra.mxu0 %v2408
    %2779 = vmatpush.msra.mxu0 %v2404
    %2780 = vmatpush.msra.mxu0 %v2400
    %2781 = vmatpush.msra.mxu0 %v2396
    %2782 = vmatpush.msra.mxu0 %v2392
    %2783 = vmatpush.msra.mxu0 %v2388
    %2784 = vmatpush.msra.mxu0 %v2384
    %2785 = vmatmul.f32.gmra.mxu0 %v2744
    %v2786 = vpop.f32.mrf.mxu0
    %v2787 = vadd.f32 0.0, %v2786
    %2788 = vdwg.mxu0
    %2789 = vmatpush.msra.mxu0 %v2445
    %2790 = vmatpush.msra.mxu0 %v2441
    %2791 = vmatpush.msra.mxu0 %v2437
    %2792 = vmatpush.msra.mxu0 %v2433
    %2793 = vmatpush.msra.mxu0 %v2429
    %2794 = vmatpush.msra.mxu0 %v2425
    %2795 = vmatpush.msra.mxu0 %v2421
    %2796 = vmatpush.msra.mxu0 %v2417
    %2797 = vmatpush.msra.mxu0 %v2413
    %2798 = vmatpush.msra.mxu0 %v2409
    %2799 = vmatpush.msra.mxu0 %v2405
    %2800 = vmatpush.msra.mxu0 %v2401
    %2801 = vmatpush.msra.mxu0 %v2397
    %2802 = vmatpush.msra.mxu0 %v2393
    %2803 = vmatpush.msra.mxu0 %v2389
    %2804 = vmatpush.msra.mxu0 %v2385
    %2805 = vmatmul.f32.gmra.mxu0 %v2744
    %v2806 = vpop.f32.mrf.mxu0
    %v2807 = vadd.f32 0.0, %v2806
    %2808 = vdwg.mxu0
    %2809 = vmatpush.msra.mxu0 %v2446
    %2810 = vmatpush.msra.mxu0 %v2442
    %2811 = vmatpush.msra.mxu0 %v2438
    %2812 = vmatpush.msra.mxu0 %v2434
    %2813 = vmatpush.msra.mxu0 %v2430
    %2814 = vmatpush.msra.mxu0 %v2426
    %2815 = vmatpush.msra.mxu0 %v2422
    %2816 = vmatpush.msra.mxu0 %v2418
    %2817 = vmatpush.msra.mxu0 %v2414
    %2818 = vmatpush.msra.mxu0 %v2410
    %2819 = vmatpush.msra.mxu0 %v2406
    %2820 = vmatpush.msra.mxu0 %v2402
    %2821 = vmatpush.msra.mxu0 %v2398
    %2822 = vmatpush.msra.mxu0 %v2394
    %2823 = vmatpush.msra.mxu0 %v2390
    %2824 = vmatpush.msra.mxu0 %v2386
    %2825 = vmatmul.f32.gmra.mxu0 %v2744
    %v2826 = vpop.f32.mrf.mxu0
    %v2827 = vadd.f32 0.0, %v2826
    %2828 = vdwg.mxu0
    %v2829 = vadd.f32 %v2745, %v2767
    %v2830 = vadd.f32 %v2746, %v2787
    %v2831 = vadd.f32 %v2747, %v2807
    %v2832 = vadd.f32 %v2748, %v2827
    %v2833 = vxor.u32 %v2829, 2147483648
    %v2834 = vxor.u32 %v2830, 2147483648
    %v2835 = vxor.u32 %v2831, 2147483648
    %v2836 = vmul.f32 %v2833, 1.442695
    %v2837 = vpow.pop %v2836
    %v2838 = vmul.f32 %v2834, 1.442695
    %v2839 = vpow.pop %v2838
    %v2840 = vmul.f32 %v2835, 1.442695
    %v2841 = vpow.pop %v2840
    %v2842 = vadd.f32 %v2837, 1.0
    %v2843 = vadd.f32 %v2839, 1.0
    %v2844 = vadd.f32 %v2841, 1.0
    %v2845 = vrcp.pop %v2842
    %v2846 = vmul.f32 %v2842, %v2845
    %v2847 = vsub.f32 1.0, %v2846
    %v2848 = vmul.f32 %v2845, %v2847
    %v2849 = vadd.f32 %v2845, %v2848
    %vm2850 = vweird.f32 %v2842
    %vm2851 = vweird.f32 %v2845
    %vm2852 = vmor %vm2850, %vm2851
    %v2853 = vsel %vm2852, %v2845, %v2849
    %v2854 = vand.u32 2147483647, %v2842
    %vm2855 = vcmp.eq.f32.partialorder %v2854, 8.507059e+37
    %v2856 = vand.u32 %v2842, 2147483648
    %v2857 = vor.u32 1.1754944e-38, %v2856
    %v2858 = vsel %vm2855, %v2857, %v2853
    %v2859 = vmul.f32 1.0, %v2858
    %v2860 = vrcp.pop %v2843
    %v2861 = vmul.f32 %v2843, %v2860
    %v2862 = vsub.f32 1.0, %v2861
    %v2863 = vmul.f32 %v2860, %v2862
    %v2864 = vadd.f32 %v2860, %v2863
    %vm2865 = vweird.f32 %v2843
    %vm2866 = vweird.f32 %v2860
    %vm2867 = vmor %vm2865, %vm2866
    %v2868 = vsel %vm2867, %v2860, %v2864
    %v2869 = vand.u32 2147483647, %v2843
    %vm2870 = vcmp.eq.f32.partialorder %v2869, 8.507059e+37
    %v2871 = vand.u32 %v2843, 2147483648
    %v2872 = vor.u32 1.1754944e-38, %v2871
    %v2873 = vsel %vm2870, %v2872, %v2868
    %v2874 = vmul.f32 1.0, %v2873
    %v2875 = vrcp.pop %v2844
    %v2876 = vmul.f32 %v2844, %v2875
    %v2877 = vsub.f32 1.0, %v2876
    %v2878 = vmul.f32 %v2875, %v2877
    %v2879 = vadd.f32 %v2875, %v2878
    %vm2880 = vweird.f32 %v2844
    %vm2881 = vweird.f32 %v2875
    %vm2882 = vmor %vm2880, %vm2881
    %v2883 = vsel %vm2882, %v2875, %v2879
    %v2884 = vand.u32 2147483647, %v2844
    %vm2885 = vcmp.eq.f32.partialorder %v2884, 8.507059e+37
    %v2886 = vand.u32 %v2844, 2147483648
    %v2887 = vor.u32 1.1754944e-38, %v2886
    %v2888 = vsel %vm2885, %v2887, %v2883
    %v2889 = vmul.f32 1.0, %v2888
    %v2890 = vtanh.pop %v2832
    %v2891 = vmul.f32 %v2874, %v2742
    %v2892 = vmul.f32 %v2859, %v2890
    %v2893 = vadd.f32 %v2891, %v2892
    %v2894 = vtanh.pop %v2893
    %v2895 = vmul.f32 %v2889, %v2894
    %v2896 = vld [vmem:[%s1003] sm:$0xff]
    %v2897 = vld [vmem:[%s1003 + $0x8] sm:$0xff]
    %v2898 = vld [vmem:[%s1003 + $0x10] sm:$0xff]
    %v2899 = vld [vmem:[%s1003 + $0x18] sm:$0xff]
    %2900 = vmatpush.msra.mxu0 %v2443
    %2901 = vmatpush.msra.mxu0 %v2439
    %2902 = vmatpush.msra.mxu0 %v2435
    %2903 = vmatpush.msra.mxu0 %v2431
    %2904 = vmatpush.msra.mxu0 %v2427
    %2905 = vmatpush.msra.mxu0 %v2423
    %2906 = vmatpush.msra.mxu0 %v2419
    %2907 = vmatpush.msra.mxu0 %v2415
    %2908 = vmatpush.msra.mxu0 %v2411
    %2909 = vmatpush.msra.mxu0 %v2407
    %2910 = vmatpush.msra.mxu0 %v2403
    %2911 = vmatpush.msra.mxu0 %v2399
    %2912 = vmatpush.msra.mxu0 %v2395
    %2913 = vmatpush.msra.mxu0 %v2391
    %2914 = vmatpush.msra.mxu0 %v2387
    %2915 = vmatpush.msra.mxu0 %v2383
    %2916 = vmatmul.f32.gmra.mxu0 %v2895
    %v2917 = vpop.f32.mrf.mxu0
    %v2918 = vadd.f32 0.0, %v2917
    %2919 = vdwg.mxu0
    %2920 = vmatpush.msra.mxu0 %v2444
    %2921 = vmatpush.msra.mxu0 %v2440
    %2922 = vmatpush.msra.mxu0 %v2436
    %2923 = vmatpush.msra.mxu0 %v2432
    %2924 = vmatpush.msra.mxu0 %v2428
    %2925 = vmatpush.msra.mxu0 %v2424
    %2926 = vmatpush.msra.mxu0 %v2420
    %2927 = vmatpush.msra.mxu0 %v2416
    %2928 = vmatpush.msra.mxu0 %v2412
    %2929 = vmatpush.msra.mxu0 %v2408
    %2930 = vmatpush.msra.mxu0 %v2404
    %2931 = vmatpush.msra.mxu0 %v2400
    %2932 = vmatpush.msra.mxu0 %v2396
    %2933 = vmatpush.msra.mxu0 %v2392
    %2934 = vmatpush.msra.mxu0 %v2388
    %2935 = vmatpush.msra.mxu0 %v2384
    %2936 = vmatmul.f32.gmra.mxu0 %v2895
    %v2937 = vpop.f32.mrf.mxu0
    %v2938 = vadd.f32 0.0, %v2937
    %2939 = vdwg.mxu0
    %2940 = vmatpush.msra.mxu0 %v2445
    %2941 = vmatpush.msra.mxu0 %v2441
    %2942 = vmatpush.msra.mxu0 %v2437
    %2943 = vmatpush.msra.mxu0 %v2433
    %2944 = vmatpush.msra.mxu0 %v2429
    %2945 = vmatpush.msra.mxu0 %v2425
    %2946 = vmatpush.msra.mxu0 %v2421
    %2947 = vmatpush.msra.mxu0 %v2417
    %2948 = vmatpush.msra.mxu0 %v2413
    %2949 = vmatpush.msra.mxu0 %v2409
    %2950 = vmatpush.msra.mxu0 %v2405
    %2951 = vmatpush.msra.mxu0 %v2401
    %2952 = vmatpush.msra.mxu0 %v2397
    %2953 = vmatpush.msra.mxu0 %v2393
    %2954 = vmatpush.msra.mxu0 %v2389
    %2955 = vmatpush.msra.mxu0 %v2385
    %2956 = vmatmul.f32.gmra.mxu0 %v2895
    %v2957 = vpop.f32.mrf.mxu0
    %v2958 = vadd.f32 0.0, %v2957
    %2959 = vdwg.mxu0
    %2960 = vmatpush.msra.mxu0 %v2446
    %2961 = vmatpush.msra.mxu0 %v2442
    %2962 = vmatpush.msra.mxu0 %v2438
    %2963 = vmatpush.msra.mxu0 %v2434
    %2964 = vmatpush.msra.mxu0 %v2430
    %2965 = vmatpush.msra.mxu0 %v2426
    %2966 = vmatpush.msra.mxu0 %v2422
    %2967 = vmatpush.msra.mxu0 %v2418
    %2968 = vmatpush.msra.mxu0 %v2414
    %2969 = vmatpush.msra.mxu0 %v2410
    %2970 = vmatpush.msra.mxu0 %v2406
    %2971 = vmatpush.msra.mxu0 %v2402
    %2972 = vmatpush.msra.mxu0 %v2398
    %2973 = vmatpush.msra.mxu0 %v2394
    %2974 = vmatpush.msra.mxu0 %v2390
    %2975 = vmatpush.msra.mxu0 %v2386
    %2976 = vmatmul.f32.gmra.mxu0 %v2895
    %v2977 = vpop.f32.mrf.mxu0
    %v2978 = vadd.f32 0.0, %v2977
    %2979 = vdwg.mxu0
    %v2980 = vadd.f32 %v2896, %v2918
    %v2981 = vadd.f32 %v2897, %v2938
    %v2982 = vadd.f32 %v2898, %v2958
    %v2983 = vadd.f32 %v2899, %v2978
    %v2984 = vxor.u32 %v2980, 2147483648
    %v2985 = vxor.u32 %v2981, 2147483648
    %v2986 = vxor.u32 %v2982, 2147483648
    %v2987 = vmul.f32 %v2984, 1.442695
    %v2988 = vpow.pop %v2987
    %v2989 = vmul.f32 %v2985, 1.442695
    %v2990 = vpow.pop %v2989
    %v2991 = vmul.f32 %v2986, 1.442695
    %v2992 = vpow.pop %v2991
    %v2993 = vadd.f32 %v2988, 1.0
    %v2994 = vadd.f32 %v2990, 1.0
    %v2995 = vadd.f32 %v2992, 1.0
    %v2996 = vrcp.pop %v2993
    %v2997 = vmul.f32 %v2993, %v2996
    %v2998 = vsub.f32 1.0, %v2997
    %v2999 = vmul.f32 %v2996, %v2998
    %v3000 = vadd.f32 %v2996, %v2999
    %vm3001 = vweird.f32 %v2993
    %vm3002 = vweird.f32 %v2996
    %vm3003 = vmor %vm3001, %vm3002
    %v3004 = vsel %vm3003, %v2996, %v3000
    %v3005 = vand.u32 2147483647, %v2993
    %vm3006 = vcmp.eq.f32.partialorder %v3005, 8.507059e+37
    %v3007 = vand.u32 %v2993, 2147483648
    %v3008 = vor.u32 1.1754944e-38, %v3007
    %v3009 = vsel %vm3006, %v3008, %v3004
    %v3010 = vmul.f32 1.0, %v3009
    %v3011 = vrcp.pop %v2994
    %v3012 = vmul.f32 %v2994, %v3011
    %v3013 = vsub.f32 1.0, %v3012
    %v3014 = vmul.f32 %v3011, %v3013
    %v3015 = vadd.f32 %v3011, %v3014
    %vm3016 = vweird.f32 %v2994
    %vm3017 = vweird.f32 %v3011
    %vm3018 = vmor %vm3016, %vm3017
    %v3019 = vsel %vm3018, %v3011, %v3015
    %v3020 = vand.u32 2147483647, %v2994
    %vm3021 = vcmp.eq.f32.partialorder %v3020, 8.507059e+37
    %v3022 = vand.u32 %v2994, 2147483648
    %v3023 = vor.u32 1.1754944e-38, %v3022
    %v3024 = vsel %vm3021, %v3023, %v3019
    %v3025 = vmul.f32 1.0, %v3024
    %v3026 = vrcp.pop %v2995
    %v3027 = vmul.f32 %v2995, %v3026
    %v3028 = vsub.f32 1.0, %v3027
    %v3029 = vmul.f32 %v3026, %v3028
    %v3030 = vadd.f32 %v3026, %v3029
    %vm3031 = vweird.f32 %v2995
    %vm3032 = vweird.f32 %v3026
    %vm3033 = vmor %vm3031, %vm3032
    %v3034 = vsel %vm3033, %v3026, %v3030
    %v3035 = vand.u32 2147483647, %v2995
    %vm3036 = vcmp.eq.f32.partialorder %v3035, 8.507059e+37
    %v3037 = vand.u32 %v2995, 2147483648
    %v3038 = vor.u32 1.1754944e-38, %v3037
    %v3039 = vsel %vm3036, %v3038, %v3034
    %v3040 = vmul.f32 1.0, %v3039
    %v3041 = vtanh.pop %v2983
    %v3042 = vmul.f32 %v3025, %v2893
    %v3043 = vmul.f32 %v3010, %v3041
    %v3044 = vadd.f32 %v3042, %v3043
    %v3045 = vtanh.pop %v3044
    %v3046 = vmul.f32 %v3040, %v3045
    %v3047 = vld [vmem:[%s1223] sm:$0xff]
    %v3048 = vld [vmem:[%s1223 + $0x8] sm:$0xff]
    %v3049 = vld [vmem:[%s1223 + $0x10] sm:$0xff]
    %v3050 = vld [vmem:[%s1223 + $0x18] sm:$0xff]
    %3051 = vmatpush.msra.mxu0 %v2443
    %3052 = vmatpush.msra.mxu0 %v2439
    %3053 = vmatpush.msra.mxu0 %v2435
    %3054 = vmatpush.msra.mxu0 %v2431
    %3055 = vmatpush.msra.mxu0 %v2427
    %3056 = vmatpush.msra.mxu0 %v2423
    %3057 = vmatpush.msra.mxu0 %v2419
    %3058 = vmatpush.msra.mxu0 %v2415
    %3059 = vmatpush.msra.mxu0 %v2411
    %3060 = vmatpush.msra.mxu0 %v2407
    %3061 = vmatpush.msra.mxu0 %v2403
    %3062 = vmatpush.msra.mxu0 %v2399
    %3063 = vmatpush.msra.mxu0 %v2395
    %3064 = vmatpush.msra.mxu0 %v2391
    %3065 = vmatpush.msra.mxu0 %v2387
    %3066 = vmatpush.msra.mxu0 %v2383
    %3067 = vmatmul.f32.gmra.mxu0 %v3046
    %v3068 = vpop.f32.mrf.mxu0
    %v3069 = vadd.f32 0.0, %v3068
    %3070 = vdwg.mxu0
    %3071 = vmatpush.msra.mxu0 %v2444
    %3072 = vmatpush.msra.mxu0 %v2440
    %3073 = vmatpush.msra.mxu0 %v2436
    %3074 = vmatpush.msra.mxu0 %v2432
    %3075 = vmatpush.msra.mxu0 %v2428
    %3076 = vmatpush.msra.mxu0 %v2424
    %3077 = vmatpush.msra.mxu0 %v2420
    %3078 = vmatpush.msra.mxu0 %v2416
    %3079 = vmatpush.msra.mxu0 %v2412
    %3080 = vmatpush.msra.mxu0 %v2408
    %3081 = vmatpush.msra.mxu0 %v2404
    %3082 = vmatpush.msra.mxu0 %v2400
    %3083 = vmatpush.msra.mxu0 %v2396
    %3084 = vmatpush.msra.mxu0 %v2392
    %3085 = vmatpush.msra.mxu0 %v2388
    %3086 = vmatpush.msra.mxu0 %v2384
    %3087 = vmatmul.f32.gmra.mxu0 %v3046
    %v3088 = vpop.f32.mrf.mxu0
    %v3089 = vadd.f32 0.0, %v3088
    %3090 = vdwg.mxu0
    %3091 = vmatpush.msra.mxu0 %v2445
    %3092 = vmatpush.msra.mxu0 %v2441
    %3093 = vmatpush.msra.mxu0 %v2437
    %3094 = vmatpush.msra.mxu0 %v2433
    %3095 = vmatpush.msra.mxu0 %v2429
    %3096 = vmatpush.msra.mxu0 %v2425
    %3097 = vmatpush.msra.mxu0 %v2421
    %3098 = vmatpush.msra.mxu0 %v2417
    %3099 = vmatpush.msra.mxu0 %v2413
    %3100 = vmatpush.msra.mxu0 %v2409
    %3101 = vmatpush.msra.mxu0 %v2405
    %3102 = vmatpush.msra.mxu0 %v2401
    %3103 = vmatpush.msra.mxu0 %v2397
    %3104 = vmatpush.msra.mxu0 %v2393
    %3105 = vmatpush.msra.mxu0 %v2389
    %3106 = vmatpush.msra.mxu0 %v2385
    %3107 = vmatmul.f32.gmra.mxu0 %v3046
    %v3108 = vpop.f32.mrf.mxu0
    %v3109 = vadd.f32 0.0, %v3108
    %3110 = vdwg.mxu0
    %3111 = vmatpush.msra.mxu0 %v2446
    %3112 = vmatpush.msra.mxu0 %v2442
    %3113 = vmatpush.msra.mxu0 %v2438
    %3114 = vmatpush.msra.mxu0 %v2434
    %3115 = vmatpush.msra.mxu0 %v2430
    %3116 = vmatpush.msra.mxu0 %v2426
    %3117 = vmatpush.msra.mxu0 %v2422
    %3118 = vmatpush.msra.mxu0 %v2418
    %3119 = vmatpush.msra.mxu0 %v2414
    %3120 = vmatpush.msra.mxu0 %v2410
    %3121 = vmatpush.msra.mxu0 %v2406
    %3122 = vmatpush.msra.mxu0 %v2402
    %3123 = vmatpush.msra.mxu0 %v2398
    %3124 = vmatpush.msra.mxu0 %v2394
    %3125 = vmatpush.msra.mxu0 %v2390
    %3126 = vmatpush.msra.mxu0 %v2386
    %3127 = vmatmul.f32.gmra.mxu0 %v3046
    %v3128 = vpop.f32.mrf.mxu0
    %v3129 = vadd.f32 0.0, %v3128
    %3130 = vdwg.mxu0
    %v3131 = vadd.f32 %v3047, %v3069
    %v3132 = vadd.f32 %v3048, %v3089
    %v3133 = vadd.f32 %v3049, %v3109
    %v3134 = vadd.f32 %v3050, %v3129
    %v3135 = vxor.u32 %v3131, 2147483648
    %v3136 = vxor.u32 %v3132, 2147483648
    %v3137 = vxor.u32 %v3133, 2147483648
    %v3138 = vmul.f32 %v3135, 1.442695
    %v3139 = vpow.pop %v3138
    %v3140 = vmul.f32 %v3136, 1.442695
    %v3141 = vpow.pop %v3140
    %v3142 = vmul.f32 %v3137, 1.442695
    %v3143 = vpow.pop %v3142
    %v3144 = vadd.f32 %v3139, 1.0
    %v3145 = vadd.f32 %v3141, 1.0
    %v3146 = vadd.f32 %v3143, 1.0
    %v3147 = vrcp.pop %v3144
    %v3148 = vmul.f32 %v3144, %v3147
    %v3149 = vsub.f32 1.0, %v3148
    %v3150 = vmul.f32 %v3147, %v3149
    %v3151 = vadd.f32 %v3147, %v3150
    %vm3152 = vweird.f32 %v3144
    %vm3153 = vweird.f32 %v3147
    %vm3154 = vmor %vm3152, %vm3153
    %v3155 = vsel %vm3154, %v3147, %v3151
    %v3156 = vand.u32 2147483647, %v3144
    %vm3157 = vcmp.eq.f32.partialorder %v3156, 8.507059e+37
    %v3158 = vand.u32 %v3144, 2147483648
    %v3159 = vor.u32 1.1754944e-38, %v3158
    %v3160 = vsel %vm3157, %v3159, %v3155
    %v3161 = vmul.f32 1.0, %v3160
    %v3162 = vrcp.pop %v3145
    %v3163 = vmul.f32 %v3145, %v3162
    %v3164 = vsub.f32 1.0, %v3163
    %v3165 = vmul.f32 %v3162, %v3164
    %v3166 = vadd.f32 %v3162, %v3165
    %vm3167 = vweird.f32 %v3145
    %vm3168 = vweird.f32 %v3162
    %vm3169 = vmor %vm3167, %vm3168
    %v3170 = vsel %vm3169, %v3162, %v3166
    %v3171 = vand.u32 2147483647, %v3145
    %vm3172 = vcmp.eq.f32.partialorder %v3171, 8.507059e+37
    %v3173 = vand.u32 %v3145, 2147483648
    %v3174 = vor.u32 1.1754944e-38, %v3173
    %v3175 = vsel %vm3172, %v3174, %v3170
    %v3176 = vmul.f32 1.0, %v3175
    %v3177 = vrcp.pop %v3146
    %v3178 = vmul.f32 %v3146, %v3177
    %v3179 = vsub.f32 1.0, %v3178
    %v3180 = vmul.f32 %v3177, %v3179
    %v3181 = vadd.f32 %v3177, %v3180
    %vm3182 = vweird.f32 %v3146
    %vm3183 = vweird.f32 %v3177
    %vm3184 = vmor %vm3182, %vm3183
    %v3185 = vsel %vm3184, %v3177, %v3181
    %v3186 = vand.u32 2147483647, %v3146
    %vm3187 = vcmp.eq.f32.partialorder %v3186, 8.507059e+37
    %v3188 = vand.u32 %v3146, 2147483648
    %v3189 = vor.u32 1.1754944e-38, %v3188
    %v3190 = vsel %vm3187, %v3189, %v3185
    %v3191 = vmul.f32 1.0, %v3190
    %v3192 = vtanh.pop %v3134
    %v3193 = vmul.f32 %v3176, %v3044
    %v3194 = vmul.f32 %v3161, %v3192
    %v3195 = vadd.f32 %v3193, %v3194
    %v3196 = vtanh.pop %v3195
    %v3197 = vmul.f32 %v3191, %v3196
    %v3198 = vld [vmem:[%s1443] sm:$0xff]
    %v3199 = vld [vmem:[%s1443 + $0x8] sm:$0xff]
    %v3200 = vld [vmem:[%s1443 + $0x10] sm:$0xff]
    %v3201 = vld [vmem:[%s1443 + $0x18] sm:$0xff]
    %3202 = vmatpush.msra.mxu0 %v2443
    %3203 = vmatpush.msra.mxu0 %v2439
    %3204 = vmatpush.msra.mxu0 %v2435
    %3205 = vmatpush.msra.mxu0 %v2431
    %3206 = vmatpush.msra.mxu0 %v2427
    %3207 = vmatpush.msra.mxu0 %v2423
    %3208 = vmatpush.msra.mxu0 %v2419
    %3209 = vmatpush.msra.mxu0 %v2415
    %3210 = vmatpush.msra.mxu0 %v2411
    %3211 = vmatpush.msra.mxu0 %v2407
    %3212 = vmatpush.msra.mxu0 %v2403
    %3213 = vmatpush.msra.mxu0 %v2399
    %3214 = vmatpush.msra.mxu0 %v2395
    %3215 = vmatpush.msra.mxu0 %v2391
    %3216 = vmatpush.msra.mxu0 %v2387
    %3217 = vmatpush.msra.mxu0 %v2383
    %3218 = vmatmul.f32.gmra.mxu0 %v3197
    %v3219 = vpop.f32.mrf.mxu0
    %v3220 = vadd.f32 0.0, %v3219
    %3221 = vdwg.mxu0
    %3222 = vmatpush.msra.mxu0 %v2444
    %3223 = vmatpush.msra.mxu0 %v2440
    %3224 = vmatpush.msra.mxu0 %v2436
    %3225 = vmatpush.msra.mxu0 %v2432
    %3226 = vmatpush.msra.mxu0 %v2428
    %3227 = vmatpush.msra.mxu0 %v2424
    %3228 = vmatpush.msra.mxu0 %v2420
    %3229 = vmatpush.msra.mxu0 %v2416
    %3230 = vmatpush.msra.mxu0 %v2412
    %3231 = vmatpush.msra.mxu0 %v2408
    %3232 = vmatpush.msra.mxu0 %v2404
    %3233 = vmatpush.msra.mxu0 %v2400
    %3234 = vmatpush.msra.mxu0 %v2396
    %3235 = vmatpush.msra.mxu0 %v2392
    %3236 = vmatpush.msra.mxu0 %v2388
    %3237 = vmatpush.msra.mxu0 %v2384
    %3238 = vmatmul.f32.gmra.mxu0 %v3197
    %v3239 = vpop.f32.mrf.mxu0
    %v3240 = vadd.f32 0.0, %v3239
    %3241 = vdwg.mxu0
    %3242 = vmatpush.msra.mxu0 %v2445
    %3243 = vmatpush.msra.mxu0 %v2441
    %3244 = vmatpush.msra.mxu0 %v2437
    %3245 = vmatpush.msra.mxu0 %v2433
    %3246 = vmatpush.msra.mxu0 %v2429
    %3247 = vmatpush.msra.mxu0 %v2425
    %3248 = vmatpush.msra.mxu0 %v2421
    %3249 = vmatpush.msra.mxu0 %v2417
    %3250 = vmatpush.msra.mxu0 %v2413
    %3251 = vmatpush.msra.mxu0 %v2409
    %3252 = vmatpush.msra.mxu0 %v2405
    %3253 = vmatpush.msra.mxu0 %v2401
    %3254 = vmatpush.msra.mxu0 %v2397
    %3255 = vmatpush.msra.mxu0 %v2393
    %3256 = vmatpush.msra.mxu0 %v2389
    %3257 = vmatpush.msra.mxu0 %v2385
    %3258 = vmatmul.f32.gmra.mxu0 %v3197
    %v3259 = vpop.f32.mrf.mxu0
    %v3260 = vadd.f32 0.0, %v3259
    %3261 = vdwg.mxu0
    %3262 = vmatpush.msra.mxu0 %v2446
    %3263 = vmatpush.msra.mxu0 %v2442
    %3264 = vmatpush.msra.mxu0 %v2438
    %3265 = vmatpush.msra.mxu0 %v2434
    %3266 = vmatpush.msra.mxu0 %v2430
    %3267 = vmatpush.msra.mxu0 %v2426
    %3268 = vmatpush.msra.mxu0 %v2422
    %3269 = vmatpush.msra.mxu0 %v2418
    %3270 = vmatpush.msra.mxu0 %v2414
    %3271 = vmatpush.msra.mxu0 %v2410
    %3272 = vmatpush.msra.mxu0 %v2406
    %3273 = vmatpush.msra.mxu0 %v2402
    %3274 = vmatpush.msra.mxu0 %v2398
    %3275 = vmatpush.msra.mxu0 %v2394
    %3276 = vmatpush.msra.mxu0 %v2390
    %3277 = vmatpush.msra.mxu0 %v2386
    %3278 = vmatmul.f32.gmra.mxu0 %v3197
    %v3279 = vpop.f32.mrf.mxu0
    %v3280 = vadd.f32 0.0, %v3279
    %3281 = vdwg.mxu0
    %v3282 = vadd.f32 %v3198, %v3220
    %v3283 = vadd.f32 %v3199, %v3240
    %v3284 = vadd.f32 %v3200, %v3260
    %v3285 = vadd.f32 %v3201, %v3280
    %v3286 = vxor.u32 %v3282, 2147483648
    %v3287 = vxor.u32 %v3283, 2147483648
    %v3288 = vxor.u32 %v3284, 2147483648
    %v3289 = vmul.f32 %v3286, 1.442695
    %v3290 = vpow.pop %v3289
    %v3291 = vmul.f32 %v3287, 1.442695
    %v3292 = vpow.pop %v3291
    %v3293 = vmul.f32 %v3288, 1.442695
    %v3294 = vpow.pop %v3293
    %v3295 = vadd.f32 %v3290, 1.0
    %v3296 = vadd.f32 %v3292, 1.0
    %v3297 = vadd.f32 %v3294, 1.0
    %v3298 = vrcp.pop %v3295
    %v3299 = vmul.f32 %v3295, %v3298
    %v3300 = vsub.f32 1.0, %v3299
    %v3301 = vmul.f32 %v3298, %v3300
    %v3302 = vadd.f32 %v3298, %v3301
    %vm3303 = vweird.f32 %v3295
    %vm3304 = vweird.f32 %v3298
    %vm3305 = vmor %vm3303, %vm3304
    %v3306 = vsel %vm3305, %v3298, %v3302
    %v3307 = vand.u32 2147483647, %v3295
    %vm3308 = vcmp.eq.f32.partialorder %v3307, 8.507059e+37
    %v3309 = vand.u32 %v3295, 2147483648
    %v3310 = vor.u32 1.1754944e-38, %v3309
    %v3311 = vsel %vm3308, %v3310, %v3306
    %v3312 = vmul.f32 1.0, %v3311
    %v3313 = vrcp.pop %v3296
    %v3314 = vmul.f32 %v3296, %v3313
    %v3315 = vsub.f32 1.0, %v3314
    %v3316 = vmul.f32 %v3313, %v3315
    %v3317 = vadd.f32 %v3313, %v3316
    %vm3318 = vweird.f32 %v3296
    %vm3319 = vweird.f32 %v3313
    %vm3320 = vmor %vm3318, %vm3319
    %v3321 = vsel %vm3320, %v3313, %v3317
    %v3322 = vand.u32 2147483647, %v3296
    %vm3323 = vcmp.eq.f32.partialorder %v3322, 8.507059e+37
    %v3324 = vand.u32 %v3296, 2147483648
    %v3325 = vor.u32 1.1754944e-38, %v3324
    %v3326 = vsel %vm3323, %v3325, %v3321
    %v3327 = vmul.f32 1.0, %v3326
    %v3328 = vrcp.pop %v3297
    %v3329 = vmul.f32 %v3297, %v3328
    %v3330 = vsub.f32 1.0, %v3329
    %v3331 = vmul.f32 %v3328, %v3330
    %v3332 = vadd.f32 %v3328, %v3331
    %vm3333 = vweird.f32 %v3297
    %vm3334 = vweird.f32 %v3328
    %vm3335 = vmor %vm3333, %vm3334
    %v3336 = vsel %vm3335, %v3328, %v3332
    %v3337 = vand.u32 2147483647, %v3297
    %vm3338 = vcmp.eq.f32.partialorder %v3337, 8.507059e+37
    %v3339 = vand.u32 %v3297, 2147483648
    %v3340 = vor.u32 1.1754944e-38, %v3339
    %v3341 = vsel %vm3338, %v3340, %v3336
    %v3342 = vmul.f32 1.0, %v3341
    %v3343 = vtanh.pop %v3285
    %v3344 = vmul.f32 %v3327, %v3195
    %v3345 = vmul.f32 %v3312, %v3343
    %v3346 = vadd.f32 %v3344, %v3345
    %v3347 = vtanh.pop %v3346
    %v3348 = vmul.f32 %v3342, %v3347
    %v3349 = vld [vmem:[%s1663] sm:$0xff]
    %v3350 = vld [vmem:[%s1663 + $0x8] sm:$0xff]
    %v3351 = vld [vmem:[%s1663 + $0x10] sm:$0xff]
    %v3352 = vld [vmem:[%s1663 + $0x18] sm:$0xff]
    %3353 = vmatpush.msra.mxu0 %v2443
    %3354 = vmatpush.msra.mxu0 %v2439
    %3355 = vmatpush.msra.mxu0 %v2435
    %3356 = vmatpush.msra.mxu0 %v2431
    %3357 = vmatpush.msra.mxu0 %v2427
    %3358 = vmatpush.msra.mxu0 %v2423
    %3359 = vmatpush.msra.mxu0 %v2419
    %3360 = vmatpush.msra.mxu0 %v2415
    %3361 = vmatpush.msra.mxu0 %v2411
    %3362 = vmatpush.msra.mxu0 %v2407
    %3363 = vmatpush.msra.mxu0 %v2403
    %3364 = vmatpush.msra.mxu0 %v2399
    %3365 = vmatpush.msra.mxu0 %v2395
    %3366 = vmatpush.msra.mxu0 %v2391
    %3367 = vmatpush.msra.mxu0 %v2387
    %3368 = vmatpush.msra.mxu0 %v2383
    %3369 = vmatmul.f32.gmra.mxu0 %v3348
    %v3370 = vpop.f32.mrf.mxu0
    %v3371 = vadd.f32 0.0, %v3370
    %3372 = vdwg.mxu0
    %3373 = vmatpush.msra.mxu0 %v2444
    %3374 = vmatpush.msra.mxu0 %v2440
    %3375 = vmatpush.msra.mxu0 %v2436
    %3376 = vmatpush.msra.mxu0 %v2432
    %3377 = vmatpush.msra.mxu0 %v2428
    %3378 = vmatpush.msra.mxu0 %v2424
    %3379 = vmatpush.msra.mxu0 %v2420
    %3380 = vmatpush.msra.mxu0 %v2416
    %3381 = vmatpush.msra.mxu0 %v2412
    %3382 = vmatpush.msra.mxu0 %v2408
    %3383 = vmatpush.msra.mxu0 %v2404
    %3384 = vmatpush.msra.mxu0 %v2400
    %3385 = vmatpush.msra.mxu0 %v2396
    %3386 = vmatpush.msra.mxu0 %v2392
    %3387 = vmatpush.msra.mxu0 %v2388
    %3388 = vmatpush.msra.mxu0 %v2384
    %3389 = vmatmul.f32.gmra.mxu0 %v3348
    %v3390 = vpop.f32.mrf.mxu0
    %v3391 = vadd.f32 0.0, %v3390
    %3392 = vdwg.mxu0
    %3393 = vmatpush.msra.mxu0 %v2445
    %3394 = vmatpush.msra.mxu0 %v2441
    %3395 = vmatpush.msra.mxu0 %v2437
    %3396 = vmatpush.msra.mxu0 %v2433
    %3397 = vmatpush.msra.mxu0 %v2429
    %3398 = vmatpush.msra.mxu0 %v2425
    %3399 = vmatpush.msra.mxu0 %v2421
    %3400 = vmatpush.msra.mxu0 %v2417
    %3401 = vmatpush.msra.mxu0 %v2413
    %3402 = vmatpush.msra.mxu0 %v2409
    %3403 = vmatpush.msra.mxu0 %v2405
    %3404 = vmatpush.msra.mxu0 %v2401
    %3405 = vmatpush.msra.mxu0 %v2397
    %3406 = vmatpush.msra.mxu0 %v2393
    %3407 = vmatpush.msra.mxu0 %v2389
    %3408 = vmatpush.msra.mxu0 %v2385
    %3409 = vmatmul.f32.gmra.mxu0 %v3348
    %v3410 = vpop.f32.mrf.mxu0
    %v3411 = vadd.f32 0.0, %v3410
    %3412 = vdwg.mxu0
    %3413 = vmatpush.msra.mxu0 %v2446
    %3414 = vmatpush.msra.mxu0 %v2442
    %3415 = vmatpush.msra.mxu0 %v2438
    %3416 = vmatpush.msra.mxu0 %v2434
    %3417 = vmatpush.msra.mxu0 %v2430
    %3418 = vmatpush.msra.mxu0 %v2426
    %3419 = vmatpush.msra.mxu0 %v2422
    %3420 = vmatpush.msra.mxu0 %v2418
    %3421 = vmatpush.msra.mxu0 %v2414
    %3422 = vmatpush.msra.mxu0 %v2410
    %3423 = vmatpush.msra.mxu0 %v2406
    %3424 = vmatpush.msra.mxu0 %v2402
    %3425 = vmatpush.msra.mxu0 %v2398
    %3426 = vmatpush.msra.mxu0 %v2394
    %3427 = vmatpush.msra.mxu0 %v2390
    %3428 = vmatpush.msra.mxu0 %v2386
    %3429 = vmatmul.f32.gmra.mxu0 %v3348
    %v3430 = vpop.f32.mrf.mxu0
    %v3431 = vadd.f32 0.0, %v3430
    %3432 = vdwg.mxu0
    %v3433 = vadd.f32 %v3349, %v3371
    %v3434 = vadd.f32 %v3350, %v3391
    %v3435 = vadd.f32 %v3351, %v3411
    %v3436 = vadd.f32 %v3352, %v3431
    %v3437 = vxor.u32 %v3433, 2147483648
    %v3438 = vxor.u32 %v3434, 2147483648
    %v3439 = vxor.u32 %v3435, 2147483648
    %v3440 = vmul.f32 %v3437, 1.442695
    %v3441 = vpow.pop %v3440
    %v3442 = vmul.f32 %v3438, 1.442695
    %v3443 = vpow.pop %v3442
    %v3444 = vmul.f32 %v3439, 1.442695
    %v3445 = vpow.pop %v3444
    %v3446 = vadd.f32 %v3441, 1.0
    %v3447 = vadd.f32 %v3443, 1.0
    %v3448 = vadd.f32 %v3445, 1.0
    %v3449 = vrcp.pop %v3446
    %v3450 = vmul.f32 %v3446, %v3449
    %v3451 = vsub.f32 1.0, %v3450
    %v3452 = vmul.f32 %v3449, %v3451
    %v3453 = vadd.f32 %v3449, %v3452
    %vm3454 = vweird.f32 %v3446
    %vm3455 = vweird.f32 %v3449
    %vm3456 = vmor %vm3454, %vm3455
    %v3457 = vsel %vm3456, %v3449, %v3453
    %v3458 = vand.u32 2147483647, %v3446
    %vm3459 = vcmp.eq.f32.partialorder %v3458, 8.507059e+37
    %v3460 = vand.u32 %v3446, 2147483648
    %v3461 = vor.u32 1.1754944e-38, %v3460
    %v3462 = vsel %vm3459, %v3461, %v3457
    %v3463 = vmul.f32 1.0, %v3462
    %v3464 = vrcp.pop %v3447
    %v3465 = vmul.f32 %v3447, %v3464
    %v3466 = vsub.f32 1.0, %v3465
    %v3467 = vmul.f32 %v3464, %v3466
    %v3468 = vadd.f32 %v3464, %v3467
    %vm3469 = vweird.f32 %v3447
    %vm3470 = vweird.f32 %v3464
    %vm3471 = vmor %vm3469, %vm3470
    %v3472 = vsel %vm3471, %v3464, %v3468
    %v3473 = vand.u32 2147483647, %v3447
    %vm3474 = vcmp.eq.f32.partialorder %v3473, 8.507059e+37
    %v3475 = vand.u32 %v3447, 2147483648
    %v3476 = vor.u32 1.1754944e-38, %v3475
    %v3477 = vsel %vm3474, %v3476, %v3472
    %v3478 = vmul.f32 1.0, %v3477
    %v3479 = vrcp.pop %v3448
    %v3480 = vmul.f32 %v3448, %v3479
    %v3481 = vsub.f32 1.0, %v3480
    %v3482 = vmul.f32 %v3479, %v3481
    %v3483 = vadd.f32 %v3479, %v3482
    %vm3484 = vweird.f32 %v3448
    %vm3485 = vweird.f32 %v3479
    %vm3486 = vmor %vm3484, %vm3485
    %v3487 = vsel %vm3486, %v3479, %v3483
    %v3488 = vand.u32 2147483647, %v3448
    %vm3489 = vcmp.eq.f32.partialorder %v3488, 8.507059e+37
    %v3490 = vand.u32 %v3448, 2147483648
    %v3491 = vor.u32 1.1754944e-38, %v3490
    %v3492 = vsel %vm3489, %v3491, %v3487
    %v3493 = vmul.f32 1.0, %v3492
    %v3494 = vtanh.pop %v3436
    %v3495 = vmul.f32 %v3478, %v3346
    %v3496 = vmul.f32 %v3463, %v3494
    %v3497 = vadd.f32 %v3495, %v3496
    %v3498 = vtanh.pop %v3497
    %v3499 = vmul.f32 %v3493, %v3498
    %v3500 = vld [vmem:[%s1883] sm:$0xff]
    %v3501 = vld [vmem:[%s1883 + $0x8] sm:$0xff]
    %v3502 = vld [vmem:[%s1883 + $0x10] sm:$0xff]
    %v3503 = vld [vmem:[%s1883 + $0x18] sm:$0xff]
    %3504 = vmatpush.msra.mxu0 %v2443
    %3505 = vmatpush.msra.mxu0 %v2439
    %3506 = vmatpush.msra.mxu0 %v2435
    %3507 = vmatpush.msra.mxu0 %v2431
    %3508 = vmatpush.msra.mxu0 %v2427
    %3509 = vmatpush.msra.mxu0 %v2423
    %3510 = vmatpush.msra.mxu0 %v2419
    %3511 = vmatpush.msra.mxu0 %v2415
    %3512 = vmatpush.msra.mxu0 %v2411
    %3513 = vmatpush.msra.mxu0 %v2407
    %3514 = vmatpush.msra.mxu0 %v2403
    %3515 = vmatpush.msra.mxu0 %v2399
    %3516 = vmatpush.msra.mxu0 %v2395
    %3517 = vmatpush.msra.mxu0 %v2391
    %3518 = vmatpush.msra.mxu0 %v2387
    %3519 = vmatpush.msra.mxu0 %v2383
    %3520 = vmatmul.f32.gmra.mxu0 %v3499
    %v3521 = vpop.f32.mrf.mxu0
    %v3522 = vadd.f32 0.0, %v3521
    %3523 = vdwg.mxu0
    %3524 = vmatpush.msra.mxu0 %v2444
    %3525 = vmatpush.msra.mxu0 %v2440
    %3526 = vmatpush.msra.mxu0 %v2436
    %3527 = vmatpush.msra.mxu0 %v2432
    %3528 = vmatpush.msra.mxu0 %v2428
    %3529 = vmatpush.msra.mxu0 %v2424
    %3530 = vmatpush.msra.mxu0 %v2420
    %3531 = vmatpush.msra.mxu0 %v2416
    %3532 = vmatpush.msra.mxu0 %v2412
    %3533 = vmatpush.msra.mxu0 %v2408
    %3534 = vmatpush.msra.mxu0 %v2404
    %3535 = vmatpush.msra.mxu0 %v2400
    %3536 = vmatpush.msra.mxu0 %v2396
    %3537 = vmatpush.msra.mxu0 %v2392
    %3538 = vmatpush.msra.mxu0 %v2388
    %3539 = vmatpush.msra.mxu0 %v2384
    %3540 = vmatmul.f32.gmra.mxu0 %v3499
    %v3541 = vpop.f32.mrf.mxu0
    %v3542 = vadd.f32 0.0, %v3541
    %3543 = vdwg.mxu0
    %3544 = vmatpush.msra.mxu0 %v2445
    %3545 = vmatpush.msra.mxu0 %v2441
    %3546 = vmatpush.msra.mxu0 %v2437
    %3547 = vmatpush.msra.mxu0 %v2433
    %3548 = vmatpush.msra.mxu0 %v2429
    %3549 = vmatpush.msra.mxu0 %v2425
    %3550 = vmatpush.msra.mxu0 %v2421
    %3551 = vmatpush.msra.mxu0 %v2417
    %3552 = vmatpush.msra.mxu0 %v2413
    %3553 = vmatpush.msra.mxu0 %v2409
    %3554 = vmatpush.msra.mxu0 %v2405
    %3555 = vmatpush.msra.mxu0 %v2401
    %3556 = vmatpush.msra.mxu0 %v2397
    %3557 = vmatpush.msra.mxu0 %v2393
    %3558 = vmatpush.msra.mxu0 %v2389
    %3559 = vmatpush.msra.mxu0 %v2385
    %3560 = vmatmul.f32.gmra.mxu0 %v3499
    %v3561 = vpop.f32.mrf.mxu0
    %v3562 = vadd.f32 0.0, %v3561
    %3563 = vdwg.mxu0
    %3564 = vmatpush.msra.mxu0 %v2446
    %3565 = vmatpush.msra.mxu0 %v2442
    %3566 = vmatpush.msra.mxu0 %v2438
    %3567 = vmatpush.msra.mxu0 %v2434
    %3568 = vmatpush.msra.mxu0 %v2430
    %3569 = vmatpush.msra.mxu0 %v2426
    %3570 = vmatpush.msra.mxu0 %v2422
    %3571 = vmatpush.msra.mxu0 %v2418
    %3572 = vmatpush.msra.mxu0 %v2414
    %3573 = vmatpush.msra.mxu0 %v2410
    %3574 = vmatpush.msra.mxu0 %v2406
    %3575 = vmatpush.msra.mxu0 %v2402
    %3576 = vmatpush.msra.mxu0 %v2398
    %3577 = vmatpush.msra.mxu0 %v2394
    %3578 = vmatpush.msra.mxu0 %v2390
    %3579 = vmatpush.msra.mxu0 %v2386
    %3580 = vmatmul.f32.gmra.mxu0 %v3499
    %v3581 = vpop.f32.mrf.mxu0
    %v3582 = vadd.f32 0.0, %v3581
    %3583 = vdwg.mxu0
    %v3584 = vadd.f32 %v3500, %v3522
    %v3585 = vadd.f32 %v3501, %v3542
    %v3586 = vadd.f32 %v3502, %v3562
    %v3587 = vadd.f32 %v3503, %v3582
    %v3588 = vxor.u32 %v3584, 2147483648
    %v3589 = vxor.u32 %v3585, 2147483648
    %v3590 = vxor.u32 %v3586, 2147483648
    %v3591 = vmul.f32 %v3588, 1.442695
    %v3592 = vpow.pop %v3591
    %v3593 = vmul.f32 %v3589, 1.442695
    %v3594 = vpow.pop %v3593
    %v3595 = vmul.f32 %v3590, 1.442695
    %v3596 = vpow.pop %v3595
    %v3597 = vadd.f32 %v3592, 1.0
    %v3598 = vadd.f32 %v3594, 1.0
    %v3599 = vadd.f32 %v3596, 1.0
    %v3600 = vrcp.pop %v3597
    %v3601 = vmul.f32 %v3597, %v3600
    %v3602 = vsub.f32 1.0, %v3601
    %v3603 = vmul.f32 %v3600, %v3602
    %v3604 = vadd.f32 %v3600, %v3603
    %vm3605 = vweird.f32 %v3597
    %vm3606 = vweird.f32 %v3600
    %vm3607 = vmor %vm3605, %vm3606
    %v3608 = vsel %vm3607, %v3600, %v3604
    %v3609 = vand.u32 2147483647, %v3597
    %vm3610 = vcmp.eq.f32.partialorder %v3609, 8.507059e+37
    %v3611 = vand.u32 %v3597, 2147483648
    %v3612 = vor.u32 1.1754944e-38, %v3611
    %v3613 = vsel %vm3610, %v3612, %v3608
    %v3614 = vmul.f32 1.0, %v3613
    %v3615 = vrcp.pop %v3598
    %v3616 = vmul.f32 %v3598, %v3615
    %v3617 = vsub.f32 1.0, %v3616
    %v3618 = vmul.f32 %v3615, %v3617
    %v3619 = vadd.f32 %v3615, %v3618
    %vm3620 = vweird.f32 %v3598
    %vm3621 = vweird.f32 %v3615
    %vm3622 = vmor %vm3620, %vm3621
    %v3623 = vsel %vm3622, %v3615, %v3619
    %v3624 = vand.u32 2147483647, %v3598
    %vm3625 = vcmp.eq.f32.partialorder %v3624, 8.507059e+37
    %v3626 = vand.u32 %v3598, 2147483648
    %v3627 = vor.u32 1.1754944e-38, %v3626
    %v3628 = vsel %vm3625, %v3627, %v3623
    %v3629 = vmul.f32 1.0, %v3628
    %v3630 = vrcp.pop %v3599
    %v3631 = vmul.f32 %v3599, %v3630
    %v3632 = vsub.f32 1.0, %v3631
    %v3633 = vmul.f32 %v3630, %v3632
    %v3634 = vadd.f32 %v3630, %v3633
    %vm3635 = vweird.f32 %v3599
    %vm3636 = vweird.f32 %v3630
    %vm3637 = vmor %vm3635, %vm3636
    %v3638 = vsel %vm3637, %v3630, %v3634
    %v3639 = vand.u32 2147483647, %v3599
    %vm3640 = vcmp.eq.f32.partialorder %v3639, 8.507059e+37
    %v3641 = vand.u32 %v3599, 2147483648
    %v3642 = vor.u32 1.1754944e-38, %v3641
    %v3643 = vsel %vm3640, %v3642, %v3638
    %v3644 = vmul.f32 1.0, %v3643
    %v3645 = vtanh.pop %v3587
    %v3646 = vmul.f32 %v3629, %v3497
    %v3647 = vmul.f32 %v3614, %v3645
    %v3648 = vadd.f32 %v3646, %v3647
    %v3649 = vtanh.pop %v3648
    %v3650 = vmul.f32 %v3644, %v3649
    %v3651 = vld [vmem:[#allocation9] sm:$0xff]
    %v3652 = vld [vmem:[#allocation9 + $0x8] sm:$0xff]
    %v3653 = vld [vmem:[#allocation9 + $0x10] sm:$0xff]
    %v3654 = vld [vmem:[#allocation9 + $0x18] sm:$0xff]
    %v3655 = vld [vmem:[#allocation9 + $0x20] sm:$0xff]
    %v3656 = vld [vmem:[#allocation9 + $0x28] sm:$0xff]
    %v3657 = vld [vmem:[#allocation9 + $0x30] sm:$0xff]
    %v3658 = vld [vmem:[#allocation9 + $0x38] sm:$0xff]
    %v3659 = vld [vmem:[#allocation9 + $0x40] sm:$0xff]
    %v3660 = vld [vmem:[#allocation9 + $0x48] sm:$0xff]
    %v3661 = vld [vmem:[#allocation9 + $0x50] sm:$0xff]
    %v3662 = vld [vmem:[#allocation9 + $0x58] sm:$0xff]
    %v3663 = vld [vmem:[#allocation9 + $0x60] sm:$0xff]
    %v3664 = vld [vmem:[#allocation9 + $0x68] sm:$0xff]
    %v3665 = vld [vmem:[#allocation9 + $0x70] sm:$0xff]
    %v3666 = vld [vmem:[#allocation9 + $0x78] sm:$0xff]
    %v3667 = vld [vmem:[%s8] sm:$0x1]
    %v3669 = vperm.slane %v3667, 0
    %3671 = vmatpush.msra.mxu0 %v3666
    %3672 = vmatpush.msra.mxu0 %v3665
    %3673 = vmatpush.msra.mxu0 %v3664
    %3674 = vmatpush.msra.mxu0 %v3663
    %3675 = vmatpush.msra.mxu0 %v3662
    %3676 = vmatpush.msra.mxu0 %v3661
    %3677 = vmatpush.msra.mxu0 %v3660
    %3678 = vmatpush.msra.mxu0 %v3659
    %3679 = vmatpush.msra.mxu0 %v3658
    %3680 = vmatpush.msra.mxu0 %v3657
    %3681 = vmatpush.msra.mxu0 %v3656
    %3682 = vmatpush.msra.mxu0 %v3655
    %3683 = vmatpush.msra.mxu0 %v3654
    %3684 = vmatpush.msra.mxu0 %v3653
    %3685 = vmatpush.msra.mxu0 %v3652
    %3686 = vmatpush.msra.mxu0 %v3651
    %3687 = vmatmul.f32.gmra.mxu0 %v3650
    %v3688 = vpop.f32.mrf.mxu0
    %v3689 = vadd.f32 %v3669, %v3688
    %3690 = vdwg.mxu0
    %3691 = vst [vmem:[%s9] sm:$0xff] %v3689
    // Predicated region
    $region54: #{lstm_model_forward.1} parent=1 // pred_check
      _
    $region55: #{lstm_model_forward.1} parent=1 // pred_check_branch
      %3693 = sbr.rel (0) target = $region57
    $region56: #{lstm_model_forward.1} parent=1 // pred_region
      _
    $region57: #{lstm_model_forward.1} parent=1 // pred_fallthru
      _
    // Predicated region
    $region58: #{lstm_model_forward.1} parent=1 // pred_check
      _
    $region59: #{lstm_model_forward.1} parent=1 // pred_check_branch
      %3695 = sbr.rel (0) target = $region61
    $region60: #{lstm_model_forward.1} parent=1 // pred_region
      _
    $region61: #{lstm_model_forward.1} parent=1 // pred_fallthru
      _
    %3696 = vsyncpa [#allocation5], 1
    %3697 = vsyncpa [#allocation7], 1
    %3698 = vsyncpa [#allocation10], 1

</llo_original>
